<compile_context>
chip_gen: v7x
topology: tpu7x:2x2x1
jax: 0.10.0
libtpu: 0.0.40
codegen_flags: <defaults>
</compile_context>

<pallas_src>
import jax
import jax.numpy as jnp
from jax.experimental import pallas as pl
from jax.experimental.pallas import tpu as pltpu

BN_EPS = 1e-5


def _fused_kernel(x1_ref, w1_ref, gamma_ref, beta_ref, x2_ref, w2_ref, out_ref):
    # Block shapes for grid step i (tile over Cmid; tc = Cmid tile width):
    #   x1_ref:    (P,  Cin)    bf16  conv1 input, resident (same block every step)
    #   w1_ref:    (Cin, tc)    bf16  conv1 weight tile (pre-transposed)
    #   gamma_ref: (1,   tc)    f32
    #   beta_ref:  (1,   tc)    f32
    #   x2_ref:    (P,   tc)    f32   residual tile
    #   w2_ref:    (tc,  Cout)  bf16  conv2 weight tile (pre-transposed)
    #   out_ref:   (1, P, Cout) f32   per-tile partial output (summed in wrapper)
    p = x1_ref.shape[0]

    # conv1 (1x1) for this channel tile: (P, Cin) @ (Cin, tc) -> (P, tc), f32 acc (MXU).
    h = jnp.dot(x1_ref[...], w1_ref[...], preferred_element_type=jnp.float32)

    # BatchNorm2d, training-mode batch statistics.  Each channel's full set of
    # P = N*H*W positions lives inside this tile, so per-tile stats == batch stats.
    # One-pass form: var = E[h^2] - mean^2, clamped >= 0; fold gamma/beta into
    # scale/shift so BN + residual + ReLU is a single fused pass.
    inv_p = 1.0 / float(p)
    mean = jnp.sum(h, axis=0, keepdims=True) * inv_p           # (1, tc)
    ex2 = jnp.sum(h * h, axis=0, keepdims=True) * inv_p        # (1, tc)
    var = jnp.maximum(ex2 - mean * mean, 0.0)
    inv_std = jax.lax.rsqrt(var + BN_EPS)
    scale = gamma_ref[...] * inv_std                           # (1, tc)
    shift = beta_ref[...] - mean * scale                       # (1, tc)

    y = jnp.maximum(h * scale + (shift + x2_ref[...]), 0.0)    # (P, tc)

    # conv2 (1x1) partial product: (P, tc) @ (tc, Cout) -> (P, Cout).
    out_ref[0, :, :] = jnp.dot(y.astype(jnp.bfloat16), w2_ref[...],
                               preferred_element_type=jnp.float32)


def fused_block(x146, x150, w1t, gamma, beta, w2t, tile_cmid=1024):
    """x146: (N, Cin, H, W), x150: (N, Cmid, H, W) NCHW.

    w1t: (Cmid, Cin)  == conv2d45.weight.reshape(Cmid, Cin)   (1x1 kernel squeezed)
    w2t: (Cout, Cmid) == conv2d47.weight.reshape(Cout, Cmid)
    Returns (N, Cout, H, W).
    """
    N, Cin, H, W = x146.shape
    Cmid = x150.shape[1]
    Cout = w2t.shape[0]
    P = N * H * W

    # (P, C) activation layout: channels land on the lane (fast) dimension.
    # x1 is pre-cast to bf16 once here (resident block; cast hoisted out of grid).
    x1 = jnp.transpose(x146, (0, 2, 3, 1)).reshape(P, Cin).astype(jnp.bfloat16)
    x2 = jnp.transpose(x150, (0, 2, 3, 1)).reshape(P, Cmid)           # f32 residual

    gamma2 = gamma.reshape(1, Cmid)
    beta2 = beta.reshape(1, Cmid)

    # Pre-transposed bf16 weights (in production, store them this way).
    w1 = jnp.transpose(w1t).astype(jnp.bfloat16)    # (Cin, Cmid)
    w2 = jnp.transpose(w2t).astype(jnp.bfloat16)    # (Cmid, Cout)

    tc = min(tile_cmid, Cmid)
    assert Cmid % tc == 0, (Cmid, tc)
    nt = Cmid // tc

    flops = 2 * P * Cin * Cmid + 2 * P * Cmid * Cout
    bytes_accessed = (w1.size * 2 + w2.size * 2 + x1.size * 2 + x2.size * 4
                      + nt * P * Cout * 4 + Cmid * 8)

    partials = pl.pallas_call(
        _fused_kernel,
        out_shape=jax.ShapeDtypeStruct((nt, P, Cout), jnp.float32),
        grid_spec=pltpu.PrefetchScalarGridSpec(
            num_scalar_prefetch=0,
            grid=(nt,),
            in_specs=[
                pl.BlockSpec((P, Cin), lambda i: (0, 0)),     # x1 (resident, bf16)
                pl.BlockSpec((Cin, tc), lambda i: (0, i)),    # w1 tile (bf16)
                pl.BlockSpec((1, tc), lambda i: (0, i)),      # gamma tile (lane-dense)
                pl.BlockSpec((1, tc), lambda i: (0, i)),      # beta tile (lane-dense)
                pl.BlockSpec((P, tc), lambda i: (0, i)),      # residual tile
                pl.BlockSpec((tc, Cout), lambda i: (i, 0)),   # w2 tile (bf16)
            ],
            out_specs=pl.BlockSpec((1, P, Cout), lambda i: (i, 0, 0)),  # partials
        ),
        compiler_params=pltpu.CompilerParams(
            dimension_semantics=("parallel",),
            vmem_limit_bytes=32 << 20,
        ),
        cost_estimate=pl.CostEstimate(
            flops=flops, transcendentals=Cmid, bytes_accessed=bytes_accessed),
    )(x1, w1, gamma2, beta2, x2, w2)

    out = jnp.sum(partials, axis=0)                           # (P, Cout)
    return jnp.transpose(out.reshape(N, H, W, Cout), (0, 3, 1, 2))


def _reference(x146, x150, w1t, gamma, beta, w2t):
    """Pure-JAX reference mimicking the kernel's bf16 weight/activation rounding."""
    N, Cin, H, W = x146.shape
    Cmid = x150.shape[1]
    Cout = w2t.shape[0]
    P = N * H * W
    x1 = jnp.transpose(x146, (1, 0, 2, 3)).reshape(Cin, P)
    x2 = jnp.transpose(x150, (1, 0, 2, 3)).reshape(Cmid, P)
    w1f = w1t.astype(jnp.bfloat16).astype(jnp.float32)
    w2f = w2t.astype(jnp.bfloat16).astype(jnp.float32)
    x1f = x1.astype(jnp.bfloat16).astype(jnp.float32)
    h = jnp.dot(w1f, x1f, precision=jax.lax.Precision.HIGHEST)
    mean = jnp.mean(h, axis=1, keepdims=True)
    var = jnp.mean((h - mean) ** 2, axis=1, keepdims=True)
    hn = (h - mean) / jnp.sqrt(var + BN_EPS) * gamma[:, None] + beta[:, None]
    y = jnp.maximum(hn + x2, 0.0)
    yf = y.astype(jnp.bfloat16).astype(jnp.float32)
    o = jnp.dot(w2f, yf, precision=jax.lax.Precision.HIGHEST)
    return jnp.transpose(o.reshape(Cout, N, H, W), (1, 0, 2, 3))


if __name__ == "__main__":
    # Module shapes: x146 [1,512,7,7], x150 [1,2048,7,7]
    N, Cin, Cmid, Cout, H, W = 1, 512, 2048, 512, 7, 7

    key = jax.random.PRNGKey(0)
    k1, k2, k3, k4, k5, k6 = jax.random.split(key, 6)

    x146 = jax.random.normal(k1, (N, Cin, H, W), dtype=jnp.float32)
    x150 = jax.random.normal(k2, (N, Cmid, H, W), dtype=jnp.float32)

    # Conv weights in PyTorch (Cout, Cin) layout with the 1x1 kernel dims squeezed.
    w1t = jax.random.normal(k3, (Cmid, Cin), dtype=jnp.float32) * 0.02
    w2t = jax.random.normal(k4, (Cout, Cmid), dtype=jnp.float32) * 0.02
    gamma = 1.0 + 0.1 * jax.random.normal(k5, (Cmid,), dtype=jnp.float32)
    beta = 0.1 * jax.random.normal(k6, (Cmid,), dtype=jnp.float32)

    fused = jax.jit(fused_block)
    out = fused(x146, x150, w1t, gamma, beta, w2t)
    out = jax.block_until_ready(out)

    ref = _reference(x146, x150, w1t, gamma, beta, w2t)
    assert out.shape == (N, Cout, H, W), out.shape
    max_err = float(jnp.max(jnp.abs(out - ref)))
    assert jnp.allclose(out, ref, atol=2e-3, rtol=2e-3), max_err

    print("KERNEL_OK")
</pallas_src>

<mosaic_0001>
module attributes {stable_mosaic.version = 11 : i64} {
  func.func @_fused_kernel(%arg0: i32, %arg1: memref<49x512xbf16, #tpu.memory_space<vmem>>, %arg2: memref<512x1024xbf16, #tpu.memory_space<vmem>>, %arg3: memref<1x1024xf32, #tpu.memory_space<vmem>>, %arg4: memref<1x1024xf32, #tpu.memory_space<vmem>>, %arg5: memref<49x1024xf32, #tpu.memory_space<vmem>>, %arg6: memref<1024x512xbf16, #tpu.memory_space<vmem>>, %arg7: memref<1x49x512xf32, #tpu.memory_space<vmem>>) attributes {dimension_semantics = [#tpu.dimension_semantics<parallel>], iteration_bounds = array<i64: 2>, scalar_prefetch = 0 : i64, scratch_operands = 0 : i64, tpu.core_type = #tpu.core_type<tc>, window_params = [{pipeline_mode = #tpu.pipeline_mode<synchronous>, transform_indices = @transform_0, window_bounds = array<i64: 49, 512>}, {transform_indices = @transform_1, window_bounds = array<i64: 512, 1024>}, {transform_indices = @transform_2, window_bounds = array<i64: 1, 1024>}, {transform_indices = @transform_3, window_bounds = array<i64: 1, 1024>}, {transform_indices = @transform_4, window_bounds = array<i64: 49, 1024>}, {transform_indices = @transform_5, window_bounds = array<i64: 1024, 512>}, {transform_indices = @transform_6, window_bounds = array<i64: 1, 49, 512>}]} {
    %c0 = arith.constant 0 : index
    %c0_0 = arith.constant 0 : index
    %0 = vector.load %arg1[%c0, %c0_0] : memref<49x512xbf16, #tpu.memory_space<vmem>>, vector<49x512xbf16>
    %c0_1 = arith.constant 0 : index
    %c0_2 = arith.constant 0 : index
    %1 = vector.load %arg2[%c0_1, %c0_2] : memref<512x1024xbf16, #tpu.memory_space<vmem>>, vector<512x1024xbf16>
    %cst = arith.constant dense<0.000000e+00> : vector<49x1024xf32>
    %2 = tpu.matmul %0, %1, %cst {dimension_numbers = #tpu.dot_dimension_numbers<[1], [0], [0], [1], [0, 0, 1, 1], [], []>} : vector<49x512xbf16>, vector<512x1024xbf16>, vector<49x1024xf32> -> vector<49x1024xf32>
    %cst_3 = arith.constant dense<0.000000e+00> : vector<1024xf32>
    %3 = vector.multi_reduction <add>, %2, %cst_3 [0] : vector<49x1024xf32> to vector<1024xf32>
    %4 = vector.shape_cast %3 : vector<1024xf32> to vector<1x1024xf32>
    %cst_4 = arith.constant 0.0204081628 : f32
    %5 = vector.broadcast %cst_4 : f32 to vector<1x1024xf32>
    %6 = arith.mulf %4, %5 : vector<1x1024xf32>
    %7 = arith.mulf %2, %2 : vector<49x1024xf32>
    %cst_5 = arith.constant dense<0.000000e+00> : vector<1024xf32>
    %8 = vector.multi_reduction <add>, %7, %cst_5 [0] : vector<49x1024xf32> to vector<1024xf32>
    %9 = vector.shape_cast %8 : vector<1024xf32> to vector<1x1024xf32>
    %cst_6 = arith.constant 0.0204081628 : f32
    %10 = vector.broadcast %cst_6 : f32 to vector<1x1024xf32>
    %11 = arith.mulf %9, %10 : vector<1x1024xf32>
    %12 = arith.mulf %6, %6 : vector<1x1024xf32>
    %13 = arith.subf %11, %12 : vector<1x1024xf32>
    %cst_7 = arith.constant 0.000000e+00 : f32
    %14 = vector.broadcast %cst_7 : f32 to vector<1x1024xf32>
    %15 = arith.maximumf %13, %14 : vector<1x1024xf32>
    %cst_8 = arith.constant 9.99999974E-6 : f32
    %16 = vector.broadcast %cst_8 : f32 to vector<1x1024xf32>
    %17 = arith.addf %15, %16 : vector<1x1024xf32>
    %18 = math.rsqrt %17 : vector<1x1024xf32>
    %c0_9 = arith.constant 0 : index
    %c0_10 = arith.constant 0 : index
    %19 = vector.load %arg3[%c0_9, %c0_10] : memref<1x1024xf32, #tpu.memory_space<vmem>>, vector<1x1024xf32>
    %20 = arith.mulf %19, %18 : vector<1x1024xf32>
    %c0_11 = arith.constant 0 : index
    %c0_12 = arith.constant 0 : index
    %21 = vector.load %arg4[%c0_11, %c0_12] : memref<1x1024xf32, #tpu.memory_space<vmem>>, vector<1x1024xf32>
    %22 = arith.mulf %6, %20 : vector<1x1024xf32>
    %23 = arith.subf %21, %22 : vector<1x1024xf32>
    %24 = vector.broadcast %20 : vector<1x1024xf32> to vector<49x1024xf32>
    %25 = arith.mulf %2, %24 : vector<49x1024xf32>
    %c0_13 = arith.constant 0 : index
    %c0_14 = arith.constant 0 : index
    %26 = vector.load %arg5[%c0_13, %c0_14] : memref<49x1024xf32, #tpu.memory_space<vmem>>, vector<49x1024xf32>
    %27 = vector.broadcast %23 : vector<1x1024xf32> to vector<49x1024xf32>
    %28 = arith.addf %27, %26 : vector<49x1024xf32>
    %29 = arith.addf %25, %28 : vector<49x1024xf32>
    %cst_15 = arith.constant 0.000000e+00 : f32
    %30 = vector.broadcast %cst_15 : f32 to vector<49x1024xf32>
    %31 = arith.maximumf %29, %30 : vector<49x1024xf32>
    %32 = arith.truncf %31 : vector<49x1024xf32> to vector<49x1024xbf16>
    %c0_16 = arith.constant 0 : index
    %c0_17 = arith.constant 0 : index
    %33 = vector.load %arg6[%c0_16, %c0_17] : memref<1024x512xbf16, #tpu.memory_space<vmem>>, vector<1024x512xbf16>
    %cst_18 = arith.constant dense<0.000000e+00> : vector<49x512xf32>
    %34 = tpu.matmul %32, %33, %cst_18 {dimension_numbers = #tpu.dot_dimension_numbers<[1], [0], [0], [1], [0, 0, 1, 1], [], []>} : vector<49x1024xbf16>, vector<1024x512xbf16>, vector<49x512xf32> -> vector<49x512xf32>
    %c0_19 = arith.constant 0 : index
    %c0_20 = arith.constant 0 : index
    %c0_21 = arith.constant 0 : index
    %35 = vector.load %arg7[%c0_19, %c0_20, %c0_21] : memref<1x49x512xf32, #tpu.memory_space<vmem>>, vector<1x49x512xf32>
    %36 = vector.shape_cast %35 : vector<1x49x512xf32> to vector<49x512xf32>
    %37 = vector.shape_cast %34 : vector<49x512xf32> to vector<1x49x512xf32>
    tpu.vector_store %arg7[%c0_19, %c0_20, %c0_21], %37 {strides = array<i32>} : memref<1x49x512xf32, #tpu.memory_space<vmem>>, vector<1x49x512xf32>,
    return
  }
  func.func @transform_0(%arg0: i32) -> (i32, i32) {
    %c0_i32 = arith.constant 0 : i32
    %c0_i32_0 = arith.constant 0 : i32
    %c0_i32_1 = arith.constant 0 : i32
    return %c0_i32, %c0_i32_0 : i32, i32
  }
  func.func @transform_1(%arg0: i32) -> (i32, i32) {
    %c0_i32 = arith.constant 0 : i32
    %c0_i32_0 = arith.constant 0 : i32
    return %c0_i32, %arg0 : i32, i32
  }
  func.func @transform_2(%arg0: i32) -> (i32, i32) {
    %c0_i32 = arith.constant 0 : i32
    %c0_i32_0 = arith.constant 0 : i32
    return %c0_i32, %arg0 : i32, i32
  }
  func.func @transform_3(%arg0: i32) -> (i32, i32) {
    %c0_i32 = arith.constant 0 : i32
    %c0_i32_0 = arith.constant 0 : i32
    return %c0_i32, %arg0 : i32, i32
  }
  func.func @transform_4(%arg0: i32) -> (i32, i32) {
    %c0_i32 = arith.constant 0 : i32
    %c0_i32_0 = arith.constant 0 : i32
    return %c0_i32, %arg0 : i32, i32
  }
  func.func @transform_5(%arg0: i32) -> (i32, i32) {
    %c0_i32 = arith.constant 0 : i32
    %c0_i32_0 = arith.constant 0 : i32
    return %arg0, %c0_i32 : i32, i32
  }
  func.func @transform_6(%arg0: i32) -> (i32, i32, i32) {
    %c0_i32 = arith.constant 0 : i32
    %c0_i32_0 = arith.constant 0 : i32
    %c0_i32_1 = arith.constant 0 : i32
    return %arg0, %c0_i32, %c0_i32_0 : i32, i32, i32
  }
}

</mosaic_0001>

<llo_original>
// kernel: fused_block.1
$region0: #{fused_block.1}
  #allocation0 [shape = 'u32[]', space=smem, size = 0x4, offset = 0x4, fixed_abs, tag = 'smem constant byte address 0x4 - core index']
  #allocation1 [shape = 'u32[144,128]{1,0:T(1,128)}', space=vmem, size = 0x12000, scoped, tag = 'internal scratch']
  %s0 = inlined_call_operand.vmem [shape: bf16[49,512], index: 0, kind: input, shape index: {}]
  %s1 = inlined_call_operand.vmem [shape: bf16[512,2048], index: 1, kind: input, shape index: {}]
  %s2 = inlined_call_operand.vmem [shape: f32[1,2048], index: 2, kind: input, shape index: {}]
  %s3 = inlined_call_operand.vmem [shape: f32[1,2048], index: 3, kind: input, shape index: {}]
  %s4 = inlined_call_operand.vmem [shape: f32[49,2048], index: 4, kind: input, shape index: {}]
  %s5 = inlined_call_operand.vmem [shape: bf16[2048,512], index: 5, kind: input, shape index: {}]
  %s6 = inlined_call_operand.vmem [shape: f32[2,49,512], index: 6, kind: output, shape index: {}]
  %s7 = sld [smem:[#allocation0]]
  $region103: #{fused_block.1} parent=0
    _
  %s9 = ssub.s32 1, %s7
  %s10 = scalar_select 0, %s9, %s7
  $region1: #{fused_block.1} parent=0
    #allocation2 [shape = 'u8[2097152]{0}', space=vmem, size = 0x200000, scoped, tag = 'input window, operand 1']
    #allocation3 [shape = 'u8[458752]{0}', space=vmem, size = 0x70000, scoped, tag = 'input window, operand 4']
    loop: start=0, step=1, limit=4
    $region2: #{fused_block.1} parent=1 // loop_pre_header
      _
    $region3: #{fused_block.1} parent=1 // loop_header
      %s12 = sphi 0, %s16
      %p13 = scmp.ge.s32.totalorder %s12, 4
      %s20 = sphi 0, %s20
      %s22 = sphi 0, %s20
      %s23 = sphi 0, %s22
      %s37 = sphi 0, %s23
      %s43 = sphi 0, %s45
      %s46 = sphi 0, %s43
      %s47 = sphi 0, %s46
      %s63 = sphi 0, %s47
      %s69 = sphi 0, %s71
      %s72 = sphi 0, %s69
      %s73 = sphi 0, %s72
      %s89 = sphi 0, %s73
      %s95 = sphi 0, %s97
      %s98 = sphi 0, %s95
      %s99 = sphi 0, %s98
      %s115 = sphi 0, %s99
      %s121 = sphi 0, %s123
      %s124 = sphi 0, %s121
      %s125 = sphi 0, %s124
      %s141 = sphi 0, %s125
      %s147 = sphi 0, %s149
      %s150 = sphi 0, %s147
      %s151 = sphi 0, %s150
      %s167 = sphi 0, %s151
      %s173 = sphi 0, %s175
      %s176 = sphi 0, %s173
      %s177 = sphi 0, %s176
      %s193 = sphi 0, %s177
    $region4: #{fused_block.1} parent=1 // loop_header_branch
      %15 = sbr.rel (%p13) target = $region8
    $region5: #{fused_block.1} parent=1 // loop_body
      %s17 = ssub.s32 %s12, 1
      %s18 = ssub.s32 %s12, 2
      %s19 = sadd.s32 %s12, 1
      %s21 = sadd.s32 %s20, 1
      %p24 = scmp.eq.s32.totalorder %s12, 1
      %p25 = scmp.ne.s32.totalorder %s20, %s22
      %p26 = scmp.eq.s32.totalorder %s12, 0
      %p27 = por %p25, %p26
      %p28 = scmp.ne.s32.totalorder %s20, %s22
      %p29 = scmp.eq.s32.totalorder %s17, 1
      %p30 = por %p28, %p29
      %p31 = scmp.ne.s32.totalorder %s22, %s23
      %p32 = scmp.eq.s32.totalorder %s17, 0
      %p33 = por %p31, %p32
      %p34 = scmp.ne.s32.totalorder %s22, %s23
      %p35 = scmp.eq.s32.totalorder %s18, 1
      %p36 = por %p34, %p35
      %p38 = scmp.ne.s32.totalorder %s23, %s37
      %p39 = scmp.eq.s32.totalorder %s18, 0
      %p40 = por %p38, %p39
      %s41 = ssub.s32 %s12, %s19
      %p42 = scmp.eq.s32.totalorder %s41, 0
      %s44 = sadd.s32 %s43, 1
      %s45 = scalar_select %p42, %s43, %s44
      %p48 = pneg %p42
      %p49 = scmp.eq.s32.totalorder %s12, 1
      %p50 = por %p48, %p49
      %p51 = scmp.ne.s32.totalorder %s43, %s46
      %p52 = scmp.eq.s32.totalorder %s12, 0
      %p53 = por %p51, %p52
      %p54 = scmp.ne.s32.totalorder %s43, %s46
      %p55 = scmp.eq.s32.totalorder %s17, 1
      %p56 = por %p54, %p55
      %p57 = scmp.ne.s32.totalorder %s46, %s47
      %p58 = scmp.eq.s32.totalorder %s17, 0
      %p59 = por %p57, %p58
      %p60 = scmp.ne.s32.totalorder %s46, %s47
      %p61 = scmp.eq.s32.totalorder %s18, 1
      %p62 = por %p60, %p61
      %p64 = scmp.ne.s32.totalorder %s47, %s63
      %p65 = scmp.eq.s32.totalorder %s18, 0
      %p66 = por %p64, %p65
      %s67 = ssub.s32 %s12, %s19
      %p68 = scmp.eq.s32.totalorder %s67, 0
      %s70 = sadd.s32 %s69, 1
      %s71 = scalar_select %p68, %s69, %s70
      %p74 = pneg %p68
      %p75 = scmp.eq.s32.totalorder %s12, 1
      %p76 = por %p74, %p75
      %p77 = scmp.ne.s32.totalorder %s69, %s72
      %p78 = scmp.eq.s32.totalorder %s12, 0
      %p79 = por %p77, %p78
      %p80 = scmp.ne.s32.totalorder %s69, %s72
      %p81 = scmp.eq.s32.totalorder %s17, 1
      %p82 = por %p80, %p81
      %p83 = scmp.ne.s32.totalorder %s72, %s73
      %p84 = scmp.eq.s32.totalorder %s17, 0
      %p85 = por %p83, %p84
      %p86 = scmp.ne.s32.totalorder %s72, %s73
      %p87 = scmp.eq.s32.totalorder %s18, 1
      %p88 = por %p86, %p87
      %p90 = scmp.ne.s32.totalorder %s73, %s89
      %p91 = scmp.eq.s32.totalorder %s18, 0
      %p92 = por %p90, %p91
      %s93 = ssub.s32 %s12, %s19
      %p94 = scmp.eq.s32.totalorder %s93, 0
      %s96 = sadd.s32 %s95, 1
      %s97 = scalar_select %p94, %s95, %s96
      %p100 = pneg %p94
      %p101 = scmp.eq.s32.totalorder %s12, 1
      %p102 = por %p100, %p101
      %p103 = scmp.ne.s32.totalorder %s95, %s98
      %p104 = scmp.eq.s32.totalorder %s12, 0
      %p105 = por %p103, %p104
      %p106 = scmp.ne.s32.totalorder %s95, %s98
      %p107 = scmp.eq.s32.totalorder %s17, 1
      %p108 = por %p106, %p107
      %p109 = scmp.ne.s32.totalorder %s98, %s99
      %p110 = scmp.eq.s32.totalorder %s17, 0
      %p111 = por %p109, %p110
      %p112 = scmp.ne.s32.totalorder %s98, %s99
      %p113 = scmp.eq.s32.totalorder %s18, 1
      %p114 = por %p112, %p113
      %p116 = scmp.ne.s32.totalorder %s99, %s115
      %p117 = scmp.eq.s32.totalorder %s18, 0
      %p118 = por %p116, %p117
      %s119 = ssub.s32 %s12, %s19
      %p120 = scmp.eq.s32.totalorder %s119, 0
      %s122 = sadd.s32 %s121, 1
      %s123 = scalar_select %p120, %s121, %s122
      %p126 = pneg %p120
      %p127 = scmp.eq.s32.totalorder %s12, 1
      %p128 = por %p126, %p127
      %p129 = scmp.ne.s32.totalorder %s121, %s124
      %p130 = scmp.eq.s32.totalorder %s12, 0
      %p131 = por %p129, %p130
      %p132 = scmp.ne.s32.totalorder %s121, %s124
      %p133 = scmp.eq.s32.totalorder %s17, 1
      %p134 = por %p132, %p133
      %p135 = scmp.ne.s32.totalorder %s124, %s125
      %p136 = scmp.eq.s32.totalorder %s17, 0
      %p137 = por %p135, %p136
      %p138 = scmp.ne.s32.totalorder %s124, %s125
      %p139 = scmp.eq.s32.totalorder %s18, 1
      %p140 = por %p138, %p139
      %p142 = scmp.ne.s32.totalorder %s125, %s141
      %p143 = scmp.eq.s32.totalorder %s18, 0
      %p144 = por %p142, %p143
      %s145 = ssub.s32 %s12, %s19
      %p146 = scmp.eq.s32.totalorder %s145, 0
      %s148 = sadd.s32 %s147, 1
      %s149 = scalar_select %p146, %s147, %s148
      %p152 = pneg %p146
      %p153 = scmp.eq.s32.totalorder %s12, 1
      %p154 = por %p152, %p153
      %p155 = scmp.ne.s32.totalorder %s147, %s150
      %p156 = scmp.eq.s32.totalorder %s12, 0
      %p157 = por %p155, %p156
      %p158 = scmp.ne.s32.totalorder %s147, %s150
      %p159 = scmp.eq.s32.totalorder %s17, 1
      %p160 = por %p158, %p159
      %p161 = scmp.ne.s32.totalorder %s150, %s151
      %p162 = scmp.eq.s32.totalorder %s17, 0
      %p163 = por %p161, %p162
      %p164 = scmp.ne.s32.totalorder %s150, %s151
      %p165 = scmp.eq.s32.totalorder %s18, 1
      %p166 = por %p164, %p165
      %p168 = scmp.ne.s32.totalorder %s151, %s167
      %p169 = scmp.eq.s32.totalorder %s18, 0
      %p170 = por %p168, %p169
      %s171 = ssub.s32 %s12, %s19
      %p172 = scmp.eq.s32.totalorder %s171, 0
      %s174 = sadd.s32 %s173, 1
      %s175 = scalar_select %p172, %s173, %s174
      %p178 = pneg %p172
      %p179 = scmp.eq.s32.totalorder %s12, 1
      %p180 = por %p178, %p179
      %p181 = scmp.ne.s32.totalorder %s173, %s176
      %p182 = scmp.eq.s32.totalorder %s12, 0
      %p183 = por %p181, %p182
      %p184 = scmp.ne.s32.totalorder %s173, %s176
      %p185 = scmp.eq.s32.totalorder %s17, 1
      %p186 = por %p184, %p185
      %p187 = scmp.ne.s32.totalorder %s176, %s177
      %p188 = scmp.eq.s32.totalorder %s17, 0
      %p189 = por %p187, %p188
      %p190 = scmp.ne.s32.totalorder %s176, %s177
      %p191 = scmp.eq.s32.totalorder %s18, 1
      %p192 = por %p190, %p191
      %p194 = scmp.ne.s32.totalorder %s177, %s193
      %p195 = scmp.eq.s32.totalorder %s18, 0
      %p196 = por %p194, %p195
      %p197 = scmp.le.s32.totalorder 1, %s12
      %p198 = scmp.lt.s32.totalorder %s12, 3
      %p199 = pnand %p197, %p198
      %p200 = pneg %p199
      // Predicated region
      $region9: #{fused_block.1} parent=5 // pred_check
        _
      $region10: #{fused_block.1} parent=5 // pred_check_branch
        %202 = sbr.rel (%p199) target = $region12
      $region11: #{fused_block.1} parent=5 // pred_region
        %s203 = ssub.s32 %s12, 1
        // Predicated region
        $region13: #{fused_block.1} parent=11 // pred_check
          %p204 = pneg %p33
        $region14: #{fused_block.1} parent=11 // pred_check_branch
          %206 = sbr.rel (%p204) target = $region16
        $region15: #{fused_block.1} parent=11 // pred_region
          _
        $region16: #{fused_block.1} parent=11 // pred_fallthru
          _
      $region12: #{fused_block.1} parent=5 // pred_fallthru
        _
      %p207 = scmp.lt.s32.totalorder %s12, 2
      // Predicated region
      $region17: #{fused_block.1} parent=5 // pred_check
        %p208 = pneg %p207
      $region18: #{fused_block.1} parent=5 // pred_check_branch
        %210 = sbr.rel (%p208) target = $region20
      $region19: #{fused_block.1} parent=5 // pred_region
        // Predicated region
        $region21: #{fused_block.1} parent=19 // pred_check
          %p211 = pneg %p53
        $region22: #{fused_block.1} parent=19 // pred_check_branch
          %213 = sbr.rel (%p211) target = $region24
        $region23: #{fused_block.1} parent=19 // pred_region
          %s214 = sand.u32 %s43, 1
          %s215 = sand.u32 %s43, 1
          %s216 = smul.addr %s215, 2048
          %s217 = scalar_lea.vmem [#allocation2], %s216
          %s218 = smul.u32 8, %s12
          %s219 = smul.addr %s218, 4
          %s220 = scalar_lea.vmem %s1, %s219
          // Predicated region
          $region25: #{fused_block.1} parent=23 // pred_check
            _
          $region26: #{fused_block.1} parent=23 // pred_check_branch
            %222 = sbr.rel (0) target = $region28
          $region27: #{fused_block.1} parent=23 // pred_region
            // Predicated region
            $region29: #{fused_block.1} parent=27 // pred_check
              _
            $region30: #{fused_block.1} parent=27 // pred_check_branch
              %224 = sbr.rel (0) target = $region32
            $region31: #{fused_block.1} parent=27 // pred_region
              loop: start=0, step=1, limit=1
              $region33: #{fused_block.1} parent=31 // loop_pre_header
                _
              $region34: #{fused_block.1} parent=31 // loop_header
                %s226 = sphi 0, %s230
                %p227 = scmp.ge.s32.totalorder %s226, 1
                %s231 = sphi %s220, %s220
                %s232 = sphi %s217, %s217
              $region35: #{fused_block.1} parent=31 // loop_header_branch
                %229 = sbr.rel (%p227) target = $region39
              $region36: #{fused_block.1} parent=31 // loop_body
                %v233 = vld [vmem:[%s231] sm:$0xff]
                %234 = vst [vmem:[%s232] sm:$0xff] %v233
                %v235 = vld [vmem:[%s231 + $0x8] sm:$0xff]
                %236 = vst [vmem:[%s232 + $0x8] sm:$0xff] %v235
                %v237 = vld [vmem:[%s231 + $0x10] sm:$0xff]
                %238 = vst [vmem:[%s232 + $0x10] sm:$0xff] %v237
                %v239 = vld [vmem:[%s231 + $0x18] sm:$0xff]
                %240 = vst [vmem:[%s232 + $0x18] sm:$0xff] %v239
                %v241 = vld [vmem:[%s231 + $0x40] sm:$0xff]
                %242 = vst [vmem:[%s232 + $0x20] sm:$0xff] %v241
                %v243 = vld [vmem:[%s231 + $0x48] sm:$0xff]
                %244 = vst [vmem:[%s232 + $0x28] sm:$0xff] %v243
                %v245 = vld [vmem:[%s231 + $0x50] sm:$0xff]
                %246 = vst [vmem:[%s232 + $0x30] sm:$0xff] %v245
                %v247 = vld [vmem:[%s231 + $0x58] sm:$0xff]
                %248 = vst [vmem:[%s232 + $0x38] sm:$0xff] %v247
                %v249 = vld [vmem:[%s231 + $0x80] sm:$0xff]
                %250 = vst [vmem:[%s232 + $0x40] sm:$0xff] %v249
                %v251 = vld [vmem:[%s231 + $0x88] sm:$0xff]
                %252 = vst [vmem:[%s232 + $0x48] sm:$0xff] %v251
                %v253 = vld [vmem:[%s231 + $0x90] sm:$0xff]
                %254 = vst [vmem:[%s232 + $0x50] sm:$0xff] %v253
                %v255 = vld [vmem:[%s231 + $0x98] sm:$0xff]
                %256 = vst [vmem:[%s232 + $0x58] sm:$0xff] %v255
                %v257 = vld [vmem:[%s231 + $0xc0] sm:$0xff]
                %258 = vst [vmem:[%s232 + $0x60] sm:$0xff] %v257
                %v259 = vld [vmem:[%s231 + $0xc8] sm:$0xff]
                %260 = vst [vmem:[%s232 + $0x68] sm:$0xff] %v259
                %v261 = vld [vmem:[%s231 + $0xd0] sm:$0xff]
                %262 = vst [vmem:[%s232 + $0x70] sm:$0xff] %v261
                %v263 = vld [vmem:[%s231 + $0xd8] sm:$0xff]
                %264 = vst [vmem:[%s232 + $0x78] sm:$0xff] %v263
                %v265 = vld [vmem:[%s231 + $0x100] sm:$0xff]
                %266 = vst [vmem:[%s232 + $0x80] sm:$0xff] %v265
                %v267 = vld [vmem:[%s231 + $0x108] sm:$0xff]
                %268 = vst [vmem:[%s232 + $0x88] sm:$0xff] %v267
                %v269 = vld [vmem:[%s231 + $0x110] sm:$0xff]
                %270 = vst [vmem:[%s232 + $0x90] sm:$0xff] %v269
                %v271 = vld [vmem:[%s231 + $0x118] sm:$0xff]
                %272 = vst [vmem:[%s232 + $0x98] sm:$0xff] %v271
                %v273 = vld [vmem:[%s231 + $0x140] sm:$0xff]
                %274 = vst [vmem:[%s232 + $0xa0] sm:$0xff] %v273
                %v275 = vld [vmem:[%s231 + $0x148] sm:$0xff]
                %276 = vst [vmem:[%s232 + $0xa8] sm:$0xff] %v275
                %v277 = vld [vmem:[%s231 + $0x150] sm:$0xff]
                %278 = vst [vmem:[%s232 + $0xb0] sm:$0xff] %v277
                %v279 = vld [vmem:[%s231 + $0x158] sm:$0xff]
                %280 = vst [vmem:[%s232 + $0xb8] sm:$0xff] %v279
                %v281 = vld [vmem:[%s231 + $0x180] sm:$0xff]
                %282 = vst [vmem:[%s232 + $0xc0] sm:$0xff] %v281
                %v283 = vld [vmem:[%s231 + $0x188] sm:$0xff]
                %284 = vst [vmem:[%s232 + $0xc8] sm:$0xff] %v283
                %v285 = vld [vmem:[%s231 + $0x190] sm:$0xff]
                %286 = vst [vmem:[%s232 + $0xd0] sm:$0xff] %v285
                %v287 = vld [vmem:[%s231 + $0x198] sm:$0xff]
                %288 = vst [vmem:[%s232 + $0xd8] sm:$0xff] %v287
                %v289 = vld [vmem:[%s231 + $0x1c0] sm:$0xff]
                %290 = vst [vmem:[%s232 + $0xe0] sm:$0xff] %v289
                %v291 = vld [vmem:[%s231 + $0x1c8] sm:$0xff]
                %292 = vst [vmem:[%s232 + $0xe8] sm:$0xff] %v291
                %v293 = vld [vmem:[%s231 + $0x1d0] sm:$0xff]
                %294 = vst [vmem:[%s232 + $0xf0] sm:$0xff] %v293
                %v295 = vld [vmem:[%s231 + $0x1d8] sm:$0xff]
                %296 = vst [vmem:[%s232 + $0xf8] sm:$0xff] %v295
                %v297 = vld [vmem:[%s231 + $0x200] sm:$0xff]
                %298 = vst [vmem:[%s232 + $0x100] sm:$0xff] %v297
                %v299 = vld [vmem:[%s231 + $0x208] sm:$0xff]
                %300 = vst [vmem:[%s232 + $0x108] sm:$0xff] %v299
                %v301 = vld [vmem:[%s231 + $0x210] sm:$0xff]
                %302 = vst [vmem:[%s232 + $0x110] sm:$0xff] %v301
                %v303 = vld [vmem:[%s231 + $0x218] sm:$0xff]
                %304 = vst [vmem:[%s232 + $0x118] sm:$0xff] %v303
                %v305 = vld [vmem:[%s231 + $0x240] sm:$0xff]
                %306 = vst [vmem:[%s232 + $0x120] sm:$0xff] %v305
                %v307 = vld [vmem:[%s231 + $0x248] sm:$0xff]
                %308 = vst [vmem:[%s232 + $0x128] sm:$0xff] %v307
                %v309 = vld [vmem:[%s231 + $0x250] sm:$0xff]
                %310 = vst [vmem:[%s232 + $0x130] sm:$0xff] %v309
                %v311 = vld [vmem:[%s231 + $0x258] sm:$0xff]
                %312 = vst [vmem:[%s232 + $0x138] sm:$0xff] %v311
                %v313 = vld [vmem:[%s231 + $0x280] sm:$0xff]
                %314 = vst [vmem:[%s232 + $0x140] sm:$0xff] %v313
                %v315 = vld [vmem:[%s231 + $0x288] sm:$0xff]
                %316 = vst [vmem:[%s232 + $0x148] sm:$0xff] %v315
                %v317 = vld [vmem:[%s231 + $0x290] sm:$0xff]
                %318 = vst [vmem:[%s232 + $0x150] sm:$0xff] %v317
                %v319 = vld [vmem:[%s231 + $0x298] sm:$0xff]
                %320 = vst [vmem:[%s232 + $0x158] sm:$0xff] %v319
                %v321 = vld [vmem:[%s231 + $0x2c0] sm:$0xff]
                %322 = vst [vmem:[%s232 + $0x160] sm:$0xff] %v321
                %v323 = vld [vmem:[%s231 + $0x2c8] sm:$0xff]
                %324 = vst [vmem:[%s232 + $0x168] sm:$0xff] %v323
                %v325 = vld [vmem:[%s231 + $0x2d0] sm:$0xff]
                %326 = vst [vmem:[%s232 + $0x170] sm:$0xff] %v325
                %v327 = vld [vmem:[%s231 + $0x2d8] sm:$0xff]
                %328 = vst [vmem:[%s232 + $0x178] sm:$0xff] %v327
                %v329 = vld [vmem:[%s231 + $0x300] sm:$0xff]
                %330 = vst [vmem:[%s232 + $0x180] sm:$0xff] %v329
                %v331 = vld [vmem:[%s231 + $0x308] sm:$0xff]
                %332 = vst [vmem:[%s232 + $0x188] sm:$0xff] %v331
                %v333 = vld [vmem:[%s231 + $0x310] sm:$0xff]
                %334 = vst [vmem:[%s232 + $0x190] sm:$0xff] %v333
                %v335 = vld [vmem:[%s231 + $0x318] sm:$0xff]
                %336 = vst [vmem:[%s232 + $0x198] sm:$0xff] %v335
                %v337 = vld [vmem:[%s231 + $0x340] sm:$0xff]
                %338 = vst [vmem:[%s232 + $0x1a0] sm:$0xff] %v337
                %v339 = vld [vmem:[%s231 + $0x348] sm:$0xff]
                %340 = vst [vmem:[%s232 + $0x1a8] sm:$0xff] %v339
                %v341 = vld [vmem:[%s231 + $0x350] sm:$0xff]
                %342 = vst [vmem:[%s232 + $0x1b0] sm:$0xff] %v341
                %v343 = vld [vmem:[%s231 + $0x358] sm:$0xff]
                %344 = vst [vmem:[%s232 + $0x1b8] sm:$0xff] %v343
                %v345 = vld [vmem:[%s231 + $0x380] sm:$0xff]
                %346 = vst [vmem:[%s232 + $0x1c0] sm:$0xff] %v345
                %v347 = vld [vmem:[%s231 + $0x388] sm:$0xff]
                %348 = vst [vmem:[%s232 + $0x1c8] sm:$0xff] %v347
                %v349 = vld [vmem:[%s231 + $0x390] sm:$0xff]
                %350 = vst [vmem:[%s232 + $0x1d0] sm:$0xff] %v349
                %v351 = vld [vmem:[%s231 + $0x398] sm:$0xff]
                %352 = vst [vmem:[%s232 + $0x1d8] sm:$0xff] %v351
                %v353 = vld [vmem:[%s231 + $0x3c0] sm:$0xff]
                %354 = vst [vmem:[%s232 + $0x1e0] sm:$0xff] %v353
                %v355 = vld [vmem:[%s231 + $0x3c8] sm:$0xff]
                %356 = vst [vmem:[%s232 + $0x1e8] sm:$0xff] %v355
                %v357 = vld [vmem:[%s231 + $0x3d0] sm:$0xff]
                %358 = vst [vmem:[%s232 + $0x1f0] sm:$0xff] %v357
                %v359 = vld [vmem:[%s231 + $0x3d8] sm:$0xff]
                %360 = vst [vmem:[%s232 + $0x1f8] sm:$0xff] %v359
                %v361 = vld [vmem:[%s231 + $0x400] sm:$0xff]
                %362 = vst [vmem:[%s232 + $0x200] sm:$0xff] %v361
                %v363 = vld [vmem:[%s231 + $0x408] sm:$0xff]
                %364 = vst [vmem:[%s232 + $0x208] sm:$0xff] %v363
                %v365 = vld [vmem:[%s231 + $0x410] sm:$0xff]
                %366 = vst [vmem:[%s232 + $0x210] sm:$0xff] %v365
                %v367 = vld [vmem:[%s231 + $0x418] sm:$0xff]
                %368 = vst [vmem:[%s232 + $0x218] sm:$0xff] %v367
                %v369 = vld [vmem:[%s231 + $0x440] sm:$0xff]
                %370 = vst [vmem:[%s232 + $0x220] sm:$0xff] %v369
                %v371 = vld [vmem:[%s231 + $0x448] sm:$0xff]
                %372 = vst [vmem:[%s232 + $0x228] sm:$0xff] %v371
                %v373 = vld [vmem:[%s231 + $0x450] sm:$0xff]
                %374 = vst [vmem:[%s232 + $0x230] sm:$0xff] %v373
                %v375 = vld [vmem:[%s231 + $0x458] sm:$0xff]
                %376 = vst [vmem:[%s232 + $0x238] sm:$0xff] %v375
                %v377 = vld [vmem:[%s231 + $0x480] sm:$0xff]
                %378 = vst [vmem:[%s232 + $0x240] sm:$0xff] %v377
                %v379 = vld [vmem:[%s231 + $0x488] sm:$0xff]
                %380 = vst [vmem:[%s232 + $0x248] sm:$0xff] %v379
                %v381 = vld [vmem:[%s231 + $0x490] sm:$0xff]
                %382 = vst [vmem:[%s232 + $0x250] sm:$0xff] %v381
                %v383 = vld [vmem:[%s231 + $0x498] sm:$0xff]
                %384 = vst [vmem:[%s232 + $0x258] sm:$0xff] %v383
                %v385 = vld [vmem:[%s231 + $0x4c0] sm:$0xff]
                %386 = vst [vmem:[%s232 + $0x260] sm:$0xff] %v385
                %v387 = vld [vmem:[%s231 + $0x4c8] sm:$0xff]
                %388 = vst [vmem:[%s232 + $0x268] sm:$0xff] %v387
                %v389 = vld [vmem:[%s231 + $0x4d0] sm:$0xff]
                %390 = vst [vmem:[%s232 + $0x270] sm:$0xff] %v389
                %v391 = vld [vmem:[%s231 + $0x4d8] sm:$0xff]
                %392 = vst [vmem:[%s232 + $0x278] sm:$0xff] %v391
                %v393 = vld [vmem:[%s231 + $0x500] sm:$0xff]
                %394 = vst [vmem:[%s232 + $0x280] sm:$0xff] %v393
                %v395 = vld [vmem:[%s231 + $0x508] sm:$0xff]
                %396 = vst [vmem:[%s232 + $0x288] sm:$0xff] %v395
                %v397 = vld [vmem:[%s231 + $0x510] sm:$0xff]
                %398 = vst [vmem:[%s232 + $0x290] sm:$0xff] %v397
                %v399 = vld [vmem:[%s231 + $0x518] sm:$0xff]
                %400 = vst [vmem:[%s232 + $0x298] sm:$0xff] %v399
                %v401 = vld [vmem:[%s231 + $0x540] sm:$0xff]
                %402 = vst [vmem:[%s232 + $0x2a0] sm:$0xff] %v401
                %v403 = vld [vmem:[%s231 + $0x548] sm:$0xff]
                %404 = vst [vmem:[%s232 + $0x2a8] sm:$0xff] %v403
                %v405 = vld [vmem:[%s231 + $0x550] sm:$0xff]
                %406 = vst [vmem:[%s232 + $0x2b0] sm:$0xff] %v405
                %v407 = vld [vmem:[%s231 + $0x558] sm:$0xff]
                %408 = vst [vmem:[%s232 + $0x2b8] sm:$0xff] %v407
                %v409 = vld [vmem:[%s231 + $0x580] sm:$0xff]
                %410 = vst [vmem:[%s232 + $0x2c0] sm:$0xff] %v409
                %v411 = vld [vmem:[%s231 + $0x588] sm:$0xff]
                %412 = vst [vmem:[%s232 + $0x2c8] sm:$0xff] %v411
                %v413 = vld [vmem:[%s231 + $0x590] sm:$0xff]
                %414 = vst [vmem:[%s232 + $0x2d0] sm:$0xff] %v413
                %v415 = vld [vmem:[%s231 + $0x598] sm:$0xff]
                %416 = vst [vmem:[%s232 + $0x2d8] sm:$0xff] %v415
                %v417 = vld [vmem:[%s231 + $0x5c0] sm:$0xff]
                %418 = vst [vmem:[%s232 + $0x2e0] sm:$0xff] %v417
                %v419 = vld [vmem:[%s231 + $0x5c8] sm:$0xff]
                %420 = vst [vmem:[%s232 + $0x2e8] sm:$0xff] %v419
                %v421 = vld [vmem:[%s231 + $0x5d0] sm:$0xff]
                %422 = vst [vmem:[%s232 + $0x2f0] sm:$0xff] %v421
                %v423 = vld [vmem:[%s231 + $0x5d8] sm:$0xff]
                %424 = vst [vmem:[%s232 + $0x2f8] sm:$0xff] %v423
                %v425 = vld [vmem:[%s231 + $0x600] sm:$0xff]
                %426 = vst [vmem:[%s232 + $0x300] sm:$0xff] %v425
                %v427 = vld [vmem:[%s231 + $0x608] sm:$0xff]
                %428 = vst [vmem:[%s232 + $0x308] sm:$0xff] %v427
                %v429 = vld [vmem:[%s231 + $0x610] sm:$0xff]
                %430 = vst [vmem:[%s232 + $0x310] sm:$0xff] %v429
                %v431 = vld [vmem:[%s231 + $0x618] sm:$0xff]
                %432 = vst [vmem:[%s232 + $0x318] sm:$0xff] %v431
                %v433 = vld [vmem:[%s231 + $0x640] sm:$0xff]
                %434 = vst [vmem:[%s232 + $0x320] sm:$0xff] %v433
                %v435 = vld [vmem:[%s231 + $0x648] sm:$0xff]
                %436 = vst [vmem:[%s232 + $0x328] sm:$0xff] %v435
                %v437 = vld [vmem:[%s231 + $0x650] sm:$0xff]
                %438 = vst [vmem:[%s232 + $0x330] sm:$0xff] %v437
                %v439 = vld [vmem:[%s231 + $0x658] sm:$0xff]
                %440 = vst [vmem:[%s232 + $0x338] sm:$0xff] %v439
                %v441 = vld [vmem:[%s231 + $0x680] sm:$0xff]
                %442 = vst [vmem:[%s232 + $0x340] sm:$0xff] %v441
                %v443 = vld [vmem:[%s231 + $0x688] sm:$0xff]
                %444 = vst [vmem:[%s232 + $0x348] sm:$0xff] %v443
                %v445 = vld [vmem:[%s231 + $0x690] sm:$0xff]
                %446 = vst [vmem:[%s232 + $0x350] sm:$0xff] %v445
                %v447 = vld [vmem:[%s231 + $0x698] sm:$0xff]
                %448 = vst [vmem:[%s232 + $0x358] sm:$0xff] %v447
                %v449 = vld [vmem:[%s231 + $0x6c0] sm:$0xff]
                %450 = vst [vmem:[%s232 + $0x360] sm:$0xff] %v449
                %v451 = vld [vmem:[%s231 + $0x6c8] sm:$0xff]
                %452 = vst [vmem:[%s232 + $0x368] sm:$0xff] %v451
                %v453 = vld [vmem:[%s231 + $0x6d0] sm:$0xff]
                %454 = vst [vmem:[%s232 + $0x370] sm:$0xff] %v453
                %v455 = vld [vmem:[%s231 + $0x6d8] sm:$0xff]
                %456 = vst [vmem:[%s232 + $0x378] sm:$0xff] %v455
                %v457 = vld [vmem:[%s231 + $0x700] sm:$0xff]
                %458 = vst [vmem:[%s232 + $0x380] sm:$0xff] %v457
                %v459 = vld [vmem:[%s231 + $0x708] sm:$0xff]
                %460 = vst [vmem:[%s232 + $0x388] sm:$0xff] %v459
                %v461 = vld [vmem:[%s231 + $0x710] sm:$0xff]
                %462 = vst [vmem:[%s232 + $0x390] sm:$0xff] %v461
                %v463 = vld [vmem:[%s231 + $0x718] sm:$0xff]
                %464 = vst [vmem:[%s232 + $0x398] sm:$0xff] %v463
                %v465 = vld [vmem:[%s231 + $0x740] sm:$0xff]
                %466 = vst [vmem:[%s232 + $0x3a0] sm:$0xff] %v465
                %v467 = vld [vmem:[%s231 + $0x748] sm:$0xff]
                %468 = vst [vmem:[%s232 + $0x3a8] sm:$0xff] %v467
                %v469 = vld [vmem:[%s231 + $0x750] sm:$0xff]
                %470 = vst [vmem:[%s232 + $0x3b0] sm:$0xff] %v469
                %v471 = vld [vmem:[%s231 + $0x758] sm:$0xff]
                %472 = vst [vmem:[%s232 + $0x3b8] sm:$0xff] %v471
                %v473 = vld [vmem:[%s231 + $0x780] sm:$0xff]
                %474 = vst [vmem:[%s232 + $0x3c0] sm:$0xff] %v473
                %v475 = vld [vmem:[%s231 + $0x788] sm:$0xff]
                %476 = vst [vmem:[%s232 + $0x3c8] sm:$0xff] %v475
                %v477 = vld [vmem:[%s231 + $0x790] sm:$0xff]
                %478 = vst [vmem:[%s232 + $0x3d0] sm:$0xff] %v477
                %v479 = vld [vmem:[%s231 + $0x798] sm:$0xff]
                %480 = vst [vmem:[%s232 + $0x3d8] sm:$0xff] %v479
                %v481 = vld [vmem:[%s231 + $0x7c0] sm:$0xff]
                %482 = vst [vmem:[%s232 + $0x3e0] sm:$0xff] %v481
                %v483 = vld [vmem:[%s231 + $0x7c8] sm:$0xff]
                %484 = vst [vmem:[%s232 + $0x3e8] sm:$0xff] %v483
                %v485 = vld [vmem:[%s231 + $0x7d0] sm:$0xff]
                %486 = vst [vmem:[%s232 + $0x3f0] sm:$0xff] %v485
                %v487 = vld [vmem:[%s231 + $0x7d8] sm:$0xff]
                %488 = vst [vmem:[%s232 + $0x3f8] sm:$0xff] %v487
                %v489 = vld [vmem:[%s231 + $0x800] sm:$0xff]
                %490 = vst [vmem:[%s232 + $0x400] sm:$0xff] %v489
                %v491 = vld [vmem:[%s231 + $0x808] sm:$0xff]
                %492 = vst [vmem:[%s232 + $0x408] sm:$0xff] %v491
                %v493 = vld [vmem:[%s231 + $0x810] sm:$0xff]
                %494 = vst [vmem:[%s232 + $0x410] sm:$0xff] %v493
                %v495 = vld [vmem:[%s231 + $0x818] sm:$0xff]
                %496 = vst [vmem:[%s232 + $0x418] sm:$0xff] %v495
                %v497 = vld [vmem:[%s231 + $0x840] sm:$0xff]
                %498 = vst [vmem:[%s232 + $0x420] sm:$0xff] %v497
                %v499 = vld [vmem:[%s231 + $0x848] sm:$0xff]
                %500 = vst [vmem:[%s232 + $0x428] sm:$0xff] %v499
                %v501 = vld [vmem:[%s231 + $0x850] sm:$0xff]
                %502 = vst [vmem:[%s232 + $0x430] sm:$0xff] %v501
                %v503 = vld [vmem:[%s231 + $0x858] sm:$0xff]
                %504 = vst [vmem:[%s232 + $0x438] sm:$0xff] %v503
                %v505 = vld [vmem:[%s231 + $0x880] sm:$0xff]
                %506 = vst [vmem:[%s232 + $0x440] sm:$0xff] %v505
                %v507 = vld [vmem:[%s231 + $0x888] sm:$0xff]
                %508 = vst [vmem:[%s232 + $0x448] sm:$0xff] %v507
                %v509 = vld [vmem:[%s231 + $0x890] sm:$0xff]
                %510 = vst [vmem:[%s232 + $0x450] sm:$0xff] %v509
                %v511 = vld [vmem:[%s231 + $0x898] sm:$0xff]
                %512 = vst [vmem:[%s232 + $0x458] sm:$0xff] %v511
                %v513 = vld [vmem:[%s231 + $0x8c0] sm:$0xff]
                %514 = vst [vmem:[%s232 + $0x460] sm:$0xff] %v513
                %v515 = vld [vmem:[%s231 + $0x8c8] sm:$0xff]
                %516 = vst [vmem:[%s232 + $0x468] sm:$0xff] %v515
                %v517 = vld [vmem:[%s231 + $0x8d0] sm:$0xff]
                %518 = vst [vmem:[%s232 + $0x470] sm:$0xff] %v517
                %v519 = vld [vmem:[%s231 + $0x8d8] sm:$0xff]
                %520 = vst [vmem:[%s232 + $0x478] sm:$0xff] %v519
                %v521 = vld [vmem:[%s231 + $0x900] sm:$0xff]
                %522 = vst [vmem:[%s232 + $0x480] sm:$0xff] %v521
                %v523 = vld [vmem:[%s231 + $0x908] sm:$0xff]
                %524 = vst [vmem:[%s232 + $0x488] sm:$0xff] %v523
                %v525 = vld [vmem:[%s231 + $0x910] sm:$0xff]
                %526 = vst [vmem:[%s232 + $0x490] sm:$0xff] %v525
                %v527 = vld [vmem:[%s231 + $0x918] sm:$0xff]
                %528 = vst [vmem:[%s232 + $0x498] sm:$0xff] %v527
                %v529 = vld [vmem:[%s231 + $0x940] sm:$0xff]
                %530 = vst [vmem:[%s232 + $0x4a0] sm:$0xff] %v529
                %v531 = vld [vmem:[%s231 + $0x948] sm:$0xff]
                %532 = vst [vmem:[%s232 + $0x4a8] sm:$0xff] %v531
                %v533 = vld [vmem:[%s231 + $0x950] sm:$0xff]
                %534 = vst [vmem:[%s232 + $0x4b0] sm:$0xff] %v533
                %v535 = vld [vmem:[%s231 + $0x958] sm:$0xff]
                %536 = vst [vmem:[%s232 + $0x4b8] sm:$0xff] %v535
                %v537 = vld [vmem:[%s231 + $0x980] sm:$0xff]
                %538 = vst [vmem:[%s232 + $0x4c0] sm:$0xff] %v537
                %v539 = vld [vmem:[%s231 + $0x988] sm:$0xff]
                %540 = vst [vmem:[%s232 + $0x4c8] sm:$0xff] %v539
                %v541 = vld [vmem:[%s231 + $0x990] sm:$0xff]
                %542 = vst [vmem:[%s232 + $0x4d0] sm:$0xff] %v541
                %v543 = vld [vmem:[%s231 + $0x998] sm:$0xff]
                %544 = vst [vmem:[%s232 + $0x4d8] sm:$0xff] %v543
                %v545 = vld [vmem:[%s231 + $0x9c0] sm:$0xff]
                %546 = vst [vmem:[%s232 + $0x4e0] sm:$0xff] %v545
                %v547 = vld [vmem:[%s231 + $0x9c8] sm:$0xff]
                %548 = vst [vmem:[%s232 + $0x4e8] sm:$0xff] %v547
                %v549 = vld [vmem:[%s231 + $0x9d0] sm:$0xff]
                %550 = vst [vmem:[%s232 + $0x4f0] sm:$0xff] %v549
                %v551 = vld [vmem:[%s231 + $0x9d8] sm:$0xff]
                %552 = vst [vmem:[%s232 + $0x4f8] sm:$0xff] %v551
                %v553 = vld [vmem:[%s231 + $0xa00] sm:$0xff]
                %554 = vst [vmem:[%s232 + $0x500] sm:$0xff] %v553
                %v555 = vld [vmem:[%s231 + $0xa08] sm:$0xff]
                %556 = vst [vmem:[%s232 + $0x508] sm:$0xff] %v555
                %v557 = vld [vmem:[%s231 + $0xa10] sm:$0xff]
                %558 = vst [vmem:[%s232 + $0x510] sm:$0xff] %v557
                %v559 = vld [vmem:[%s231 + $0xa18] sm:$0xff]
                %560 = vst [vmem:[%s232 + $0x518] sm:$0xff] %v559
                %v561 = vld [vmem:[%s231 + $0xa40] sm:$0xff]
                %562 = vst [vmem:[%s232 + $0x520] sm:$0xff] %v561
                %v563 = vld [vmem:[%s231 + $0xa48] sm:$0xff]
                %564 = vst [vmem:[%s232 + $0x528] sm:$0xff] %v563
                %v565 = vld [vmem:[%s231 + $0xa50] sm:$0xff]
                %566 = vst [vmem:[%s232 + $0x530] sm:$0xff] %v565
                %v567 = vld [vmem:[%s231 + $0xa58] sm:$0xff]
                %568 = vst [vmem:[%s232 + $0x538] sm:$0xff] %v567
                %v569 = vld [vmem:[%s231 + $0xa80] sm:$0xff]
                %570 = vst [vmem:[%s232 + $0x540] sm:$0xff] %v569
                %v571 = vld [vmem:[%s231 + $0xa88] sm:$0xff]
                %572 = vst [vmem:[%s232 + $0x548] sm:$0xff] %v571
                %v573 = vld [vmem:[%s231 + $0xa90] sm:$0xff]
                %574 = vst [vmem:[%s232 + $0x550] sm:$0xff] %v573
                %v575 = vld [vmem:[%s231 + $0xa98] sm:$0xff]
                %576 = vst [vmem:[%s232 + $0x558] sm:$0xff] %v575
                %v577 = vld [vmem:[%s231 + $0xac0] sm:$0xff]
                %578 = vst [vmem:[%s232 + $0x560] sm:$0xff] %v577
                %v579 = vld [vmem:[%s231 + $0xac8] sm:$0xff]
                %580 = vst [vmem:[%s232 + $0x568] sm:$0xff] %v579
                %v581 = vld [vmem:[%s231 + $0xad0] sm:$0xff]
                %582 = vst [vmem:[%s232 + $0x570] sm:$0xff] %v581
                %v583 = vld [vmem:[%s231 + $0xad8] sm:$0xff]
                %584 = vst [vmem:[%s232 + $0x578] sm:$0xff] %v583
                %v585 = vld [vmem:[%s231 + $0xb00] sm:$0xff]
                %586 = vst [vmem:[%s232 + $0x580] sm:$0xff] %v585
                %v587 = vld [vmem:[%s231 + $0xb08] sm:$0xff]
                %588 = vst [vmem:[%s232 + $0x588] sm:$0xff] %v587
                %v589 = vld [vmem:[%s231 + $0xb10] sm:$0xff]
                %590 = vst [vmem:[%s232 + $0x590] sm:$0xff] %v589
                %v591 = vld [vmem:[%s231 + $0xb18] sm:$0xff]
                %592 = vst [vmem:[%s232 + $0x598] sm:$0xff] %v591
                %v593 = vld [vmem:[%s231 + $0xb40] sm:$0xff]
                %594 = vst [vmem:[%s232 + $0x5a0] sm:$0xff] %v593
                %v595 = vld [vmem:[%s231 + $0xb48] sm:$0xff]
                %596 = vst [vmem:[%s232 + $0x5a8] sm:$0xff] %v595
                %v597 = vld [vmem:[%s231 + $0xb50] sm:$0xff]
                %598 = vst [vmem:[%s232 + $0x5b0] sm:$0xff] %v597
                %v599 = vld [vmem:[%s231 + $0xb58] sm:$0xff]
                %600 = vst [vmem:[%s232 + $0x5b8] sm:$0xff] %v599
                %v601 = vld [vmem:[%s231 + $0xb80] sm:$0xff]
                %602 = vst [vmem:[%s232 + $0x5c0] sm:$0xff] %v601
                %v603 = vld [vmem:[%s231 + $0xb88] sm:$0xff]
                %604 = vst [vmem:[%s232 + $0x5c8] sm:$0xff] %v603
                %v605 = vld [vmem:[%s231 + $0xb90] sm:$0xff]
                %606 = vst [vmem:[%s232 + $0x5d0] sm:$0xff] %v605
                %v607 = vld [vmem:[%s231 + $0xb98] sm:$0xff]
                %608 = vst [vmem:[%s232 + $0x5d8] sm:$0xff] %v607
                %v609 = vld [vmem:[%s231 + $0xbc0] sm:$0xff]
                %610 = vst [vmem:[%s232 + $0x5e0] sm:$0xff] %v609
                %v611 = vld [vmem:[%s231 + $0xbc8] sm:$0xff]
                %612 = vst [vmem:[%s232 + $0x5e8] sm:$0xff] %v611
                %v613 = vld [vmem:[%s231 + $0xbd0] sm:$0xff]
                %614 = vst [vmem:[%s232 + $0x5f0] sm:$0xff] %v613
                %v615 = vld [vmem:[%s231 + $0xbd8] sm:$0xff]
                %616 = vst [vmem:[%s232 + $0x5f8] sm:$0xff] %v615
                %v617 = vld [vmem:[%s231 + $0xc00] sm:$0xff]
                %618 = vst [vmem:[%s232 + $0x600] sm:$0xff] %v617
                %v619 = vld [vmem:[%s231 + $0xc08] sm:$0xff]
                %620 = vst [vmem:[%s232 + $0x608] sm:$0xff] %v619
                %v621 = vld [vmem:[%s231 + $0xc10] sm:$0xff]
                %622 = vst [vmem:[%s232 + $0x610] sm:$0xff] %v621
                %v623 = vld [vmem:[%s231 + $0xc18] sm:$0xff]
                %624 = vst [vmem:[%s232 + $0x618] sm:$0xff] %v623
                %v625 = vld [vmem:[%s231 + $0xc40] sm:$0xff]
                %626 = vst [vmem:[%s232 + $0x620] sm:$0xff] %v625
                %v627 = vld [vmem:[%s231 + $0xc48] sm:$0xff]
                %628 = vst [vmem:[%s232 + $0x628] sm:$0xff] %v627
                %v629 = vld [vmem:[%s231 + $0xc50] sm:$0xff]
                %630 = vst [vmem:[%s232 + $0x630] sm:$0xff] %v629
                %v631 = vld [vmem:[%s231 + $0xc58] sm:$0xff]
                %632 = vst [vmem:[%s232 + $0x638] sm:$0xff] %v631
                %v633 = vld [vmem:[%s231 + $0xc80] sm:$0xff]
                %634 = vst [vmem:[%s232 + $0x640] sm:$0xff] %v633
                %v635 = vld [vmem:[%s231 + $0xc88] sm:$0xff]
                %636 = vst [vmem:[%s232 + $0x648] sm:$0xff] %v635
                %v637 = vld [vmem:[%s231 + $0xc90] sm:$0xff]
                %638 = vst [vmem:[%s232 + $0x650] sm:$0xff] %v637
                %v639 = vld [vmem:[%s231 + $0xc98] sm:$0xff]
                %640 = vst [vmem:[%s232 + $0x658] sm:$0xff] %v639
                %v641 = vld [vmem:[%s231 + $0xcc0] sm:$0xff]
                %642 = vst [vmem:[%s232 + $0x660] sm:$0xff] %v641
                %v643 = vld [vmem:[%s231 + $0xcc8] sm:$0xff]
                %644 = vst [vmem:[%s232 + $0x668] sm:$0xff] %v643
                %v645 = vld [vmem:[%s231 + $0xcd0] sm:$0xff]
                %646 = vst [vmem:[%s232 + $0x670] sm:$0xff] %v645
                %v647 = vld [vmem:[%s231 + $0xcd8] sm:$0xff]
                %648 = vst [vmem:[%s232 + $0x678] sm:$0xff] %v647
                %v649 = vld [vmem:[%s231 + $0xd00] sm:$0xff]
                %650 = vst [vmem:[%s232 + $0x680] sm:$0xff] %v649
                %v651 = vld [vmem:[%s231 + $0xd08] sm:$0xff]
                %652 = vst [vmem:[%s232 + $0x688] sm:$0xff] %v651
                %v653 = vld [vmem:[%s231 + $0xd10] sm:$0xff]
                %654 = vst [vmem:[%s232 + $0x690] sm:$0xff] %v653
                %v655 = vld [vmem:[%s231 + $0xd18] sm:$0xff]
                %656 = vst [vmem:[%s232 + $0x698] sm:$0xff] %v655
                %v657 = vld [vmem:[%s231 + $0xd40] sm:$0xff]
                %658 = vst [vmem:[%s232 + $0x6a0] sm:$0xff] %v657
                %v659 = vld [vmem:[%s231 + $0xd48] sm:$0xff]
                %660 = vst [vmem:[%s232 + $0x6a8] sm:$0xff] %v659
                %v661 = vld [vmem:[%s231 + $0xd50] sm:$0xff]
                %662 = vst [vmem:[%s232 + $0x6b0] sm:$0xff] %v661
                %v663 = vld [vmem:[%s231 + $0xd58] sm:$0xff]
                %664 = vst [vmem:[%s232 + $0x6b8] sm:$0xff] %v663
                %v665 = vld [vmem:[%s231 + $0xd80] sm:$0xff]
                %666 = vst [vmem:[%s232 + $0x6c0] sm:$0xff] %v665
                %v667 = vld [vmem:[%s231 + $0xd88] sm:$0xff]
                %668 = vst [vmem:[%s232 + $0x6c8] sm:$0xff] %v667
                %v669 = vld [vmem:[%s231 + $0xd90] sm:$0xff]
                %670 = vst [vmem:[%s232 + $0x6d0] sm:$0xff] %v669
                %v671 = vld [vmem:[%s231 + $0xd98] sm:$0xff]
                %672 = vst [vmem:[%s232 + $0x6d8] sm:$0xff] %v671
                %v673 = vld [vmem:[%s231 + $0xdc0] sm:$0xff]
                %674 = vst [vmem:[%s232 + $0x6e0] sm:$0xff] %v673
                %v675 = vld [vmem:[%s231 + $0xdc8] sm:$0xff]
                %676 = vst [vmem:[%s232 + $0x6e8] sm:$0xff] %v675
                %v677 = vld [vmem:[%s231 + $0xdd0] sm:$0xff]
                %678 = vst [vmem:[%s232 + $0x6f0] sm:$0xff] %v677
                %v679 = vld [vmem:[%s231 + $0xdd8] sm:$0xff]
                %680 = vst [vmem:[%s232 + $0x6f8] sm:$0xff] %v679
                %v681 = vld [vmem:[%s231 + $0xe00] sm:$0xff]
                %682 = vst [vmem:[%s232 + $0x700] sm:$0xff] %v681
                %v683 = vld [vmem:[%s231 + $0xe08] sm:$0xff]
                %684 = vst [vmem:[%s232 + $0x708] sm:$0xff] %v683
                %v685 = vld [vmem:[%s231 + $0xe10] sm:$0xff]
                %686 = vst [vmem:[%s232 + $0x710] sm:$0xff] %v685
                %v687 = vld [vmem:[%s231 + $0xe18] sm:$0xff]
                %688 = vst [vmem:[%s232 + $0x718] sm:$0xff] %v687
                %v689 = vld [vmem:[%s231 + $0xe40] sm:$0xff]
                %690 = vst [vmem:[%s232 + $0x720] sm:$0xff] %v689
                %v691 = vld [vmem:[%s231 + $0xe48] sm:$0xff]
                %692 = vst [vmem:[%s232 + $0x728] sm:$0xff] %v691
                %v693 = vld [vmem:[%s231 + $0xe50] sm:$0xff]
                %694 = vst [vmem:[%s232 + $0x730] sm:$0xff] %v693
                %v695 = vld [vmem:[%s231 + $0xe58] sm:$0xff]
                %696 = vst [vmem:[%s232 + $0x738] sm:$0xff] %v695
                %v697 = vld [vmem:[%s231 + $0xe80] sm:$0xff]
                %698 = vst [vmem:[%s232 + $0x740] sm:$0xff] %v697
                %v699 = vld [vmem:[%s231 + $0xe88] sm:$0xff]
                %700 = vst [vmem:[%s232 + $0x748] sm:$0xff] %v699
                %v701 = vld [vmem:[%s231 + $0xe90] sm:$0xff]
                %702 = vst [vmem:[%s232 + $0x750] sm:$0xff] %v701
                %v703 = vld [vmem:[%s231 + $0xe98] sm:$0xff]
                %704 = vst [vmem:[%s232 + $0x758] sm:$0xff] %v703
                %v705 = vld [vmem:[%s231 + $0xec0] sm:$0xff]
                %706 = vst [vmem:[%s232 + $0x760] sm:$0xff] %v705
                %v707 = vld [vmem:[%s231 + $0xec8] sm:$0xff]
                %708 = vst [vmem:[%s232 + $0x768] sm:$0xff] %v707
                %v709 = vld [vmem:[%s231 + $0xed0] sm:$0xff]
                %710 = vst [vmem:[%s232 + $0x770] sm:$0xff] %v709
                %v711 = vld [vmem:[%s231 + $0xed8] sm:$0xff]
                %712 = vst [vmem:[%s232 + $0x778] sm:$0xff] %v711
                %v713 = vld [vmem:[%s231 + $0xf00] sm:$0xff]
                %714 = vst [vmem:[%s232 + $0x780] sm:$0xff] %v713
                %v715 = vld [vmem:[%s231 + $0xf08] sm:$0xff]
                %716 = vst [vmem:[%s232 + $0x788] sm:$0xff] %v715
                %v717 = vld [vmem:[%s231 + $0xf10] sm:$0xff]
                %718 = vst [vmem:[%s232 + $0x790] sm:$0xff] %v717
                %v719 = vld [vmem:[%s231 + $0xf18] sm:$0xff]
                %720 = vst [vmem:[%s232 + $0x798] sm:$0xff] %v719
                %v721 = vld [vmem:[%s231 + $0xf40] sm:$0xff]
                %722 = vst [vmem:[%s232 + $0x7a0] sm:$0xff] %v721
                %v723 = vld [vmem:[%s231 + $0xf48] sm:$0xff]
                %724 = vst [vmem:[%s232 + $0x7a8] sm:$0xff] %v723
                %v725 = vld [vmem:[%s231 + $0xf50] sm:$0xff]
                %726 = vst [vmem:[%s232 + $0x7b0] sm:$0xff] %v725
                %v727 = vld [vmem:[%s231 + $0xf58] sm:$0xff]
                %728 = vst [vmem:[%s232 + $0x7b8] sm:$0xff] %v727
                %v729 = vld [vmem:[%s231 + $0xf80] sm:$0xff]
                %730 = vst [vmem:[%s232 + $0x7c0] sm:$0xff] %v729
                %v731 = vld [vmem:[%s231 + $0xf88] sm:$0xff]
                %732 = vst [vmem:[%s232 + $0x7c8] sm:$0xff] %v731
                %v733 = vld [vmem:[%s231 + $0xf90] sm:$0xff]
                %734 = vst [vmem:[%s232 + $0x7d0] sm:$0xff] %v733
                %v735 = vld [vmem:[%s231 + $0xf98] sm:$0xff]
                %736 = vst [vmem:[%s232 + $0x7d8] sm:$0xff] %v735
                %v737 = vld [vmem:[%s231 + $0xfc0] sm:$0xff]
                %738 = vst [vmem:[%s232 + $0x7e0] sm:$0xff] %v737
                %v739 = vld [vmem:[%s231 + $0xfc8] sm:$0xff]
                %740 = vst [vmem:[%s232 + $0x7e8] sm:$0xff] %v739
                %v741 = vld [vmem:[%s231 + $0xfd0] sm:$0xff]
                %742 = vst [vmem:[%s232 + $0x7f0] sm:$0xff] %v741
                %v743 = vld [vmem:[%s231 + $0xfd8] sm:$0xff]
                %744 = vst [vmem:[%s232 + $0x7f8] sm:$0xff] %v743
              $region37: #{fused_block.1} parent=31 // loop_footer
                %s230 = sadd.s32 1, %s226
              $region38: #{fused_block.1} parent=31 // loop_footer_branch
                %225 = sbr.rel target = $region34
              $region39: #{fused_block.1} parent=31 // loop_exit
                _
            $region32: #{fused_block.1} parent=27 // pred_fallthru
              _
            // Predicated region
            $region40: #{fused_block.1} parent=27 // pred_check
              _
            $region41: #{fused_block.1} parent=27 // pred_check_branch
              %746 = sbr.rel target = $region43
            $region42: #{fused_block.1} parent=27 // pred_region
              _
            $region43: #{fused_block.1} parent=27 // pred_fallthru
              _
          $region28: #{fused_block.1} parent=23 // pred_fallthru
            _
          %747 = vnop
        $region24: #{fused_block.1} parent=19 // pred_fallthru
          _
        // Predicated region
        $region44: #{fused_block.1} parent=19 // pred_check
          %p748 = pneg %p79
        $region45: #{fused_block.1} parent=19 // pred_check_branch
          %750 = sbr.rel (%p748) target = $region47
        $region46: #{fused_block.1} parent=19 // pred_region
          %s751 = smul.u32 8, %s12
          %p752 = scmp.lt.s32.totalorder %s751, 15
          %s753 = scalar_select %p752, %s751, 15
          %s754 = scalar_lea.vmem %s2, %s753
          %s755 = smul.u32 8, %s12
        $region47: #{fused_block.1} parent=19 // pred_fallthru
          _
        // Predicated region
        $region48: #{fused_block.1} parent=19 // pred_check
          %p756 = pneg %p105
        $region49: #{fused_block.1} parent=19 // pred_check_branch
          %758 = sbr.rel (%p756) target = $region51
        $region50: #{fused_block.1} parent=19 // pred_region
          %s759 = smul.u32 8, %s12
          %p760 = scmp.lt.s32.totalorder %s759, 15
          %s761 = scalar_select %p760, %s759, 15
          %s762 = scalar_lea.vmem %s3, %s761
          %s763 = smul.u32 8, %s12
        $region51: #{fused_block.1} parent=19 // pred_fallthru
          _
        // Predicated region
        $region52: #{fused_block.1} parent=19 // pred_check
          %p764 = pneg %p131
        $region53: #{fused_block.1} parent=19 // pred_check_branch
          %766 = sbr.rel (%p764) target = $region55
        $region54: #{fused_block.1} parent=19 // pred_region
          %s767 = sand.u32 %s121, 1
          %s768 = sand.u32 %s121, 1
          %s769 = smul.addr %s768, 448
          %s770 = scalar_lea.vmem [#allocation3], %s769
          %s771 = smul.u32 8, %s12
          %s772 = smul.addr %s771, 8
          %s773 = scalar_lea.vmem %s4, %s772
          // Predicated region
          $region56: #{fused_block.1} parent=54 // pred_check
            _
          $region57: #{fused_block.1} parent=54 // pred_check_branch
            %775 = sbr.rel (0) target = $region59
          $region58: #{fused_block.1} parent=54 // pred_region
            // Predicated region
            $region60: #{fused_block.1} parent=58 // pred_check
              _
            $region61: #{fused_block.1} parent=58 // pred_check_branch
              %777 = sbr.rel (0) target = $region63
            $region62: #{fused_block.1} parent=58 // pred_region
              loop: start=0, step=1, limit=1
              $region64: #{fused_block.1} parent=62 // loop_pre_header
                _
              $region65: #{fused_block.1} parent=62 // loop_header
                %s779 = sphi 0, %s783
                %p780 = scmp.ge.s32.totalorder %s779, 1
                %s784 = sphi %s773, %s773
                %s785 = sphi %s770, %s770
              $region66: #{fused_block.1} parent=62 // loop_header_branch
                %782 = sbr.rel (%p780) target = $region70
              $region67: #{fused_block.1} parent=62 // loop_body
                %v786 = vld [vmem:[%s784] sm:$0xff]
                %787 = vst [vmem:[%s785] sm:$0xff] %v786
                %v788 = vld [vmem:[%s784 + $0x8] sm:$0xff]
                %789 = vst [vmem:[%s785 + $0x8] sm:$0xff] %v788
                %v790 = vld [vmem:[%s784 + $0x10] sm:$0xff]
                %791 = vst [vmem:[%s785 + $0x10] sm:$0xff] %v790
                %v792 = vld [vmem:[%s784 + $0x18] sm:$0xff]
                %793 = vst [vmem:[%s785 + $0x18] sm:$0xff] %v792
                %v794 = vld [vmem:[%s784 + $0x20] sm:$0xff]
                %795 = vst [vmem:[%s785 + $0x20] sm:$0xff] %v794
                %v796 = vld [vmem:[%s784 + $0x28] sm:$0xff]
                %797 = vst [vmem:[%s785 + $0x28] sm:$0xff] %v796
                %v798 = vld [vmem:[%s784 + $0x30] sm:$0xff]
                %799 = vst [vmem:[%s785 + $0x30] sm:$0xff] %v798
                %v800 = vld [vmem:[%s784 + $0x38] sm:$0xff]
                %801 = vst [vmem:[%s785 + $0x38] sm:$0xff] %v800
                %v802 = vld [vmem:[%s784 + $0x80] sm:$0xff]
                %803 = vst [vmem:[%s785 + $0x40] sm:$0xff] %v802
                %v804 = vld [vmem:[%s784 + $0x88] sm:$0xff]
                %805 = vst [vmem:[%s785 + $0x48] sm:$0xff] %v804
                %v806 = vld [vmem:[%s784 + $0x90] sm:$0xff]
                %807 = vst [vmem:[%s785 + $0x50] sm:$0xff] %v806
                %v808 = vld [vmem:[%s784 + $0x98] sm:$0xff]
                %809 = vst [vmem:[%s785 + $0x58] sm:$0xff] %v808
                %v810 = vld [vmem:[%s784 + $0xa0] sm:$0xff]
                %811 = vst [vmem:[%s785 + $0x60] sm:$0xff] %v810
                %v812 = vld [vmem:[%s784 + $0xa8] sm:$0xff]
                %813 = vst [vmem:[%s785 + $0x68] sm:$0xff] %v812
                %v814 = vld [vmem:[%s784 + $0xb0] sm:$0xff]
                %815 = vst [vmem:[%s785 + $0x70] sm:$0xff] %v814
                %v816 = vld [vmem:[%s784 + $0xb8] sm:$0xff]
                %817 = vst [vmem:[%s785 + $0x78] sm:$0xff] %v816
                %v818 = vld [vmem:[%s784 + $0x100] sm:$0xff]
                %819 = vst [vmem:[%s785 + $0x80] sm:$0xff] %v818
                %v820 = vld [vmem:[%s784 + $0x108] sm:$0xff]
                %821 = vst [vmem:[%s785 + $0x88] sm:$0xff] %v820
                %v822 = vld [vmem:[%s784 + $0x110] sm:$0xff]
                %823 = vst [vmem:[%s785 + $0x90] sm:$0xff] %v822
                %v824 = vld [vmem:[%s784 + $0x118] sm:$0xff]
                %825 = vst [vmem:[%s785 + $0x98] sm:$0xff] %v824
                %v826 = vld [vmem:[%s784 + $0x120] sm:$0xff]
                %827 = vst [vmem:[%s785 + $0xa0] sm:$0xff] %v826
                %v828 = vld [vmem:[%s784 + $0x128] sm:$0xff]
                %829 = vst [vmem:[%s785 + $0xa8] sm:$0xff] %v828
                %v830 = vld [vmem:[%s784 + $0x130] sm:$0xff]
                %831 = vst [vmem:[%s785 + $0xb0] sm:$0xff] %v830
                %v832 = vld [vmem:[%s784 + $0x138] sm:$0xff]
                %833 = vst [vmem:[%s785 + $0xb8] sm:$0xff] %v832
                %v834 = vld [vmem:[%s784 + $0x180] sm:$0xff]
                %835 = vst [vmem:[%s785 + $0xc0] sm:$0xff] %v834
                %v836 = vld [vmem:[%s784 + $0x188] sm:$0xff]
                %837 = vst [vmem:[%s785 + $0xc8] sm:$0xff] %v836
                %v838 = vld [vmem:[%s784 + $0x190] sm:$0xff]
                %839 = vst [vmem:[%s785 + $0xd0] sm:$0xff] %v838
                %v840 = vld [vmem:[%s784 + $0x198] sm:$0xff]
                %841 = vst [vmem:[%s785 + $0xd8] sm:$0xff] %v840
                %v842 = vld [vmem:[%s784 + $0x1a0] sm:$0xff]
                %843 = vst [vmem:[%s785 + $0xe0] sm:$0xff] %v842
                %v844 = vld [vmem:[%s784 + $0x1a8] sm:$0xff]
                %845 = vst [vmem:[%s785 + $0xe8] sm:$0xff] %v844
                %v846 = vld [vmem:[%s784 + $0x1b0] sm:$0xff]
                %847 = vst [vmem:[%s785 + $0xf0] sm:$0xff] %v846
                %v848 = vld [vmem:[%s784 + $0x1b8] sm:$0xff]
                %849 = vst [vmem:[%s785 + $0xf8] sm:$0xff] %v848
                %v850 = vld [vmem:[%s784 + $0x200] sm:$0xff]
                %851 = vst [vmem:[%s785 + $0x100] sm:$0xff] %v850
                %v852 = vld [vmem:[%s784 + $0x208] sm:$0xff]
                %853 = vst [vmem:[%s785 + $0x108] sm:$0xff] %v852
                %v854 = vld [vmem:[%s784 + $0x210] sm:$0xff]
                %855 = vst [vmem:[%s785 + $0x110] sm:$0xff] %v854
                %v856 = vld [vmem:[%s784 + $0x218] sm:$0xff]
                %857 = vst [vmem:[%s785 + $0x118] sm:$0xff] %v856
                %v858 = vld [vmem:[%s784 + $0x220] sm:$0xff]
                %859 = vst [vmem:[%s785 + $0x120] sm:$0xff] %v858
                %v860 = vld [vmem:[%s784 + $0x228] sm:$0xff]
                %861 = vst [vmem:[%s785 + $0x128] sm:$0xff] %v860
                %v862 = vld [vmem:[%s784 + $0x230] sm:$0xff]
                %863 = vst [vmem:[%s785 + $0x130] sm:$0xff] %v862
                %v864 = vld [vmem:[%s784 + $0x238] sm:$0xff]
                %865 = vst [vmem:[%s785 + $0x138] sm:$0xff] %v864
                %v866 = vld [vmem:[%s784 + $0x280] sm:$0xff]
                %867 = vst [vmem:[%s785 + $0x140] sm:$0xff] %v866
                %v868 = vld [vmem:[%s784 + $0x288] sm:$0xff]
                %869 = vst [vmem:[%s785 + $0x148] sm:$0xff] %v868
                %v870 = vld [vmem:[%s784 + $0x290] sm:$0xff]
                %871 = vst [vmem:[%s785 + $0x150] sm:$0xff] %v870
                %v872 = vld [vmem:[%s784 + $0x298] sm:$0xff]
                %873 = vst [vmem:[%s785 + $0x158] sm:$0xff] %v872
                %v874 = vld [vmem:[%s784 + $0x2a0] sm:$0xff]
                %875 = vst [vmem:[%s785 + $0x160] sm:$0xff] %v874
                %v876 = vld [vmem:[%s784 + $0x2a8] sm:$0xff]
                %877 = vst [vmem:[%s785 + $0x168] sm:$0xff] %v876
                %v878 = vld [vmem:[%s784 + $0x2b0] sm:$0xff]
                %879 = vst [vmem:[%s785 + $0x170] sm:$0xff] %v878
                %v880 = vld [vmem:[%s784 + $0x2b8] sm:$0xff]
                %881 = vst [vmem:[%s785 + $0x178] sm:$0xff] %v880
                %v882 = vld [vmem:[%s784 + $0x300] sm:$0xff]
                %883 = vst [vmem:[%s785 + $0x180] sm:$0xff] %v882
                %v884 = vld [vmem:[%s784 + $0x308] sm:$0xff]
                %885 = vst [vmem:[%s785 + $0x188] sm:$0xff] %v884
                %v886 = vld [vmem:[%s784 + $0x310] sm:$0xff]
                %887 = vst [vmem:[%s785 + $0x190] sm:$0xff] %v886
                %v888 = vld [vmem:[%s784 + $0x318] sm:$0xff]
                %889 = vst [vmem:[%s785 + $0x198] sm:$0xff] %v888
                %v890 = vld [vmem:[%s784 + $0x320] sm:$0xff]
                %891 = vst [vmem:[%s785 + $0x1a0] sm:$0xff] %v890
                %v892 = vld [vmem:[%s784 + $0x328] sm:$0xff]
                %893 = vst [vmem:[%s785 + $0x1a8] sm:$0xff] %v892
                %v894 = vld [vmem:[%s784 + $0x330] sm:$0xff]
                %895 = vst [vmem:[%s785 + $0x1b0] sm:$0xff] %v894
                %v896 = vld [vmem:[%s784 + $0x338] sm:$0xff]
                %897 = vst [vmem:[%s785 + $0x1b8] sm:$0xff] %v896
              $region68: #{fused_block.1} parent=62 // loop_footer
                %s783 = sadd.s32 1, %s779
              $region69: #{fused_block.1} parent=62 // loop_footer_branch
                %778 = sbr.rel target = $region65
              $region70: #{fused_block.1} parent=62 // loop_exit
                _
            $region63: #{fused_block.1} parent=58 // pred_fallthru
              _
            // Predicated region
            $region71: #{fused_block.1} parent=58 // pred_check
              _
            $region72: #{fused_block.1} parent=58 // pred_check_branch
              %899 = sbr.rel target = $region74
            $region73: #{fused_block.1} parent=58 // pred_region
              _
            $region74: #{fused_block.1} parent=58 // pred_fallthru
              _
          $region59: #{fused_block.1} parent=54 // pred_fallthru
            _
          %900 = vnop
        $region55: #{fused_block.1} parent=19 // pred_fallthru
          _
        // Predicated region
        $region75: #{fused_block.1} parent=19 // pred_check
          %p901 = pneg %p157
        $region76: #{fused_block.1} parent=19 // pred_check_branch
          %903 = sbr.rel (%p901) target = $region78
        $region77: #{fused_block.1} parent=19 // pred_region
          %s904 = smul.u32 128, %s12
          %p905 = scmp.lt.s32.totalorder %s904, 255
          %s906 = scalar_select %p905, %s904, 255
          %s907 = smul.addr %s906, 4
          %s908 = smul.addr %s907, 4
          %s909 = scalar_lea.vmem %s5, %s908
          %s910 = smul.u32 128, %s12
        $region78: #{fused_block.1} parent=19 // pred_fallthru
          _
      $region20: #{fused_block.1} parent=5 // pred_fallthru
        _
      %p911 = scmp.le.s32.totalorder 1, %s12
      %p912 = scmp.lt.s32.totalorder %s12, 3
      %p913 = pnand %p911, %p912
      %p914 = pneg %p913
      // Predicated region
      $region79: #{fused_block.1} parent=5 // pred_check
        _
      $region80: #{fused_block.1} parent=5 // pred_check_branch
        %916 = sbr.rel (%p913) target = $region82
      $region81: #{fused_block.1} parent=5 // pred_region
        %s917 = ssub.s32 %s12, 1
        %s918 = sand.u32 %s46, 1
        %s919 = sand.u32 %s46, 1
        %s920 = smul.addr %s919, 2048
        %s921 = scalar_lea.vmem [#allocation2], %s920
        // Predicated region
        $region83: #{fused_block.1} parent=81 // pred_check
          %p922 = pneg %p59
        $region84: #{fused_block.1} parent=81 // pred_check_branch
          %924 = sbr.rel (%p922) target = $region86
        $region85: #{fused_block.1} parent=81 // pred_region
          _
        $region86: #{fused_block.1} parent=81 // pred_fallthru
          _
        %s925 = sand.u32 %s124, 1
        %s926 = sand.u32 %s124, 1
        %s927 = smul.addr %s926, 448
        %s928 = scalar_lea.vmem [#allocation3], %s927
        // Predicated region
        $region87: #{fused_block.1} parent=81 // pred_check
          %p929 = pneg %p137
        $region88: #{fused_block.1} parent=81 // pred_check_branch
          %931 = sbr.rel (%p929) target = $region90
        $region89: #{fused_block.1} parent=81 // pred_region
          _
        $region90: #{fused_block.1} parent=81 // pred_fallthru
          _
        %p932 = pneg %p33
        %p933 = pneg %p30
        %s934 = sand.u32 %s46, 1
        %s935 = sand.u32 %s46, 1
        %s936 = smul.addr %s935, 2048
        %s937 = scalar_lea.vmem [#allocation2], %s936
        %p938 = pneg %p59
        %p939 = pneg %p56
        %s940 = smul.u32 8, %s17
        %p941 = scmp.lt.s32.totalorder %s940, 15
        %s942 = scalar_select %p941, %s940, 15
        %s943 = scalar_lea.vmem %s2, %s942
        %p944 = pneg %p85
        %p945 = pneg %p82
        %s946 = smul.u32 8, %s17
        %p947 = scmp.lt.s32.totalorder %s946, 15
        %s948 = scalar_select %p947, %s946, 15
        %s949 = scalar_lea.vmem %s3, %s948
        %p950 = pneg %p111
        %p951 = pneg %p108
        %s952 = sand.u32 %s124, 1
        %s953 = sand.u32 %s124, 1
        %s954 = smul.addr %s953, 448
        %s955 = scalar_lea.vmem [#allocation3], %s954
        %p956 = pneg %p137
        %p957 = pneg %p134
        %s958 = smul.u32 128, %s17
        %p959 = scmp.lt.s32.totalorder %s958, 255
        %s960 = scalar_select %p959, %s958, 255
        %s961 = smul.addr %s960, 4
        %s962 = smul.addr %s961, 4
        %s963 = scalar_lea.vmem %s5, %s962
        %p964 = pneg %p163
        %p965 = pneg %p160
        %p966 = pneg %p189
        %p967 = pneg %p186
        %p968 = scmp.lt.s32.totalorder %s17, 1
        %s969 = scalar_select %p968, %s17, 1
        %s970 = smul.addr %s969, 28
        %s971 = smul.addr %s970, 8
        %s972 = scalar_lea.vmem %s6, %s971
        %s973 = smul.u32 8, %s17
        %s974 = smul.u32 8, %s17
        %p975 = scmp.lt.s32.totalorder %s974, 15
        %s976 = scalar_select %p975, %s974, 15
        %s977 = scalar_lea.vmem %s2, %s976
        %s978 = smul.u32 8, %s17
        %s979 = smul.u32 8, %s17
        %p980 = scmp.lt.s32.totalorder %s979, 15
        %s981 = scalar_select %p980, %s979, 15
        %s982 = scalar_lea.vmem %s3, %s981
        %s983 = smul.u32 8, %s17
        %s984 = smul.u32 8, %s17
        %s985 = smul.u32 128, %s17
        %p986 = scmp.lt.s32.totalorder %s985, 255
        %s987 = scalar_select %p986, %s985, 255
        %s988 = smul.addr %s987, 4
        %s989 = smul.addr %s988, 4
        %s990 = scalar_lea.vmem %s5, %s989
        %s991 = smul.u32 128, %s17
        %p992 = scmp.lt.s32.totalorder %s17, 1
        %s993 = scalar_select %p992, %s17, 1
        %s994 = smul.addr %s993, 28
        %s995 = smul.addr %s994, 8
        %s996 = scalar_lea.vmem %s6, %s995
        %v997 = vld [vmem:[%s0] sm:$0xff]
        %v998 = vld [vmem:[%s0 + $0x8] sm:$0xff]
        %v999 = vld [vmem:[%s0 + $0x10] sm:$0xff]
        %v1000 = vld [vmem:[%s0 + $0x18] sm:$0xff]
        %v1001 = vld [vmem:[%s0 + $0x20] sm:$0xff]
        %v1002 = vld [vmem:[%s0 + $0x28] sm:$0xff]
        %v1003 = vld [vmem:[%s0 + $0x30] sm:$0xff]
        %v1004 = vld [vmem:[%s0 + $0x38] sm:$0xff]
        %v1005 = vld [vmem:[%s0 + $0x40] sm:$0xff]
        %v1006 = vld [vmem:[%s0 + $0x48] sm:$0xff]
        %v1007 = vld [vmem:[%s0 + $0x50] sm:$0xff]
        %v1008 = vld [vmem:[%s0 + $0x58] sm:$0xff]
        %v1009 = vld [vmem:[%s0 + $0x60] sm:$0x11]
        %v1010 = vld [vmem:[%s0 + $0x68] sm:$0x11]
        %v1011 = vld [vmem:[%s921] sm:$0xff]
        %v1012 = vld [vmem:[%s921 + $0x8] sm:$0xff]
        %v1013 = vld [vmem:[%s921 + $0x10] sm:$0xff]
        %v1014 = vld [vmem:[%s921 + $0x18] sm:$0xff]
        %v1015 = vld [vmem:[%s921 + $0x20] sm:$0xff]
        %v1016 = vld [vmem:[%s921 + $0x28] sm:$0xff]
        %v1017 = vld [vmem:[%s921 + $0x30] sm:$0xff]
        %v1018 = vld [vmem:[%s921 + $0x38] sm:$0xff]
        %v1019 = vld [vmem:[%s921 + $0x40] sm:$0xff]
        %v1020 = vld [vmem:[%s921 + $0x48] sm:$0xff]
        %v1021 = vld [vmem:[%s921 + $0x50] sm:$0xff]
        %v1022 = vld [vmem:[%s921 + $0x58] sm:$0xff]
        %v1023 = vld [vmem:[%s921 + $0x60] sm:$0xff]
        %v1024 = vld [vmem:[%s921 + $0x68] sm:$0xff]
        %v1025 = vld [vmem:[%s921 + $0x70] sm:$0xff]
        %v1026 = vld [vmem:[%s921 + $0x78] sm:$0xff]
        %v1027 = vld [vmem:[%s921 + $0x80] sm:$0xff]
        %v1028 = vld [vmem:[%s921 + $0x88] sm:$0xff]
        %v1029 = vld [vmem:[%s921 + $0x90] sm:$0xff]
        %v1030 = vld [vmem:[%s921 + $0x98] sm:$0xff]
        %v1031 = vld [vmem:[%s921 + $0xa0] sm:$0xff]
        %v1032 = vld [vmem:[%s921 + $0xa8] sm:$0xff]
        %v1033 = vld [vmem:[%s921 + $0xb0] sm:$0xff]
        %v1034 = vld [vmem:[%s921 + $0xb8] sm:$0xff]
        %v1035 = vld [vmem:[%s921 + $0xc0] sm:$0xff]
        %v1036 = vld [vmem:[%s921 + $0xc8] sm:$0xff]
        %v1037 = vld [vmem:[%s921 + $0xd0] sm:$0xff]
        %v1038 = vld [vmem:[%s921 + $0xd8] sm:$0xff]
        %v1039 = vld [vmem:[%s921 + $0xe0] sm:$0xff]
        %v1040 = vld [vmem:[%s921 + $0xe8] sm:$0xff]
        %v1041 = vld [vmem:[%s921 + $0xf0] sm:$0xff]
        %v1042 = vld [vmem:[%s921 + $0xf8] sm:$0xff]
        %v1043 = vld [vmem:[%s921 + $0x100] sm:$0xff]
        %v1044 = vld [vmem:[%s921 + $0x108] sm:$0xff]
        %v1045 = vld [vmem:[%s921 + $0x110] sm:$0xff]
        %v1046 = vld [vmem:[%s921 + $0x118] sm:$0xff]
        %v1047 = vld [vmem:[%s921 + $0x120] sm:$0xff]
        %v1048 = vld [vmem:[%s921 + $0x128] sm:$0xff]
        %v1049 = vld [vmem:[%s921 + $0x130] sm:$0xff]
        %v1050 = vld [vmem:[%s921 + $0x138] sm:$0xff]
        %v1051 = vld [vmem:[%s921 + $0x140] sm:$0xff]
        %v1052 = vld [vmem:[%s921 + $0x148] sm:$0xff]
        %v1053 = vld [vmem:[%s921 + $0x150] sm:$0xff]
        %v1054 = vld [vmem:[%s921 + $0x158] sm:$0xff]
        %v1055 = vld [vmem:[%s921 + $0x160] sm:$0xff]
        %v1056 = vld [vmem:[%s921 + $0x168] sm:$0xff]
        %v1057 = vld [vmem:[%s921 + $0x170] sm:$0xff]
        %v1058 = vld [vmem:[%s921 + $0x178] sm:$0xff]
        %v1059 = vld [vmem:[%s921 + $0x180] sm:$0xff]
        %v1060 = vld [vmem:[%s921 + $0x188] sm:$0xff]
        %v1061 = vld [vmem:[%s921 + $0x190] sm:$0xff]
        %v1062 = vld [vmem:[%s921 + $0x198] sm:$0xff]
        %v1063 = vld [vmem:[%s921 + $0x1a0] sm:$0xff]
        %v1064 = vld [vmem:[%s921 + $0x1a8] sm:$0xff]
        %v1065 = vld [vmem:[%s921 + $0x1b0] sm:$0xff]
        %v1066 = vld [vmem:[%s921 + $0x1b8] sm:$0xff]
        %v1067 = vld [vmem:[%s921 + $0x1c0] sm:$0xff]
        %v1068 = vld [vmem:[%s921 + $0x1c8] sm:$0xff]
        %v1069 = vld [vmem:[%s921 + $0x1d0] sm:$0xff]
        %v1070 = vld [vmem:[%s921 + $0x1d8] sm:$0xff]
        %v1071 = vld [vmem:[%s921 + $0x1e0] sm:$0xff]
        %v1072 = vld [vmem:[%s921 + $0x1e8] sm:$0xff]
        %v1073 = vld [vmem:[%s921 + $0x1f0] sm:$0xff]
        %v1074 = vld [vmem:[%s921 + $0x1f8] sm:$0xff]
        %v1075 = vld [vmem:[%s921 + $0x200] sm:$0xff]
        %v1076 = vld [vmem:[%s921 + $0x208] sm:$0xff]
        %v1077 = vld [vmem:[%s921 + $0x210] sm:$0xff]
        %v1078 = vld [vmem:[%s921 + $0x218] sm:$0xff]
        %v1079 = vld [vmem:[%s921 + $0x220] sm:$0xff]
        %v1080 = vld [vmem:[%s921 + $0x228] sm:$0xff]
        %v1081 = vld [vmem:[%s921 + $0x230] sm:$0xff]
        %v1082 = vld [vmem:[%s921 + $0x238] sm:$0xff]
        %v1083 = vld [vmem:[%s921 + $0x240] sm:$0xff]
        %v1084 = vld [vmem:[%s921 + $0x248] sm:$0xff]
        %v1085 = vld [vmem:[%s921 + $0x250] sm:$0xff]
        %v1086 = vld [vmem:[%s921 + $0x258] sm:$0xff]
        %v1087 = vld [vmem:[%s921 + $0x260] sm:$0xff]
        %v1088 = vld [vmem:[%s921 + $0x268] sm:$0xff]
        %v1089 = vld [vmem:[%s921 + $0x270] sm:$0xff]
        %v1090 = vld [vmem:[%s921 + $0x278] sm:$0xff]
        %v1091 = vld [vmem:[%s921 + $0x280] sm:$0xff]
        %v1092 = vld [vmem:[%s921 + $0x288] sm:$0xff]
        %v1093 = vld [vmem:[%s921 + $0x290] sm:$0xff]
        %v1094 = vld [vmem:[%s921 + $0x298] sm:$0xff]
        %v1095 = vld [vmem:[%s921 + $0x2a0] sm:$0xff]
        %v1096 = vld [vmem:[%s921 + $0x2a8] sm:$0xff]
        %v1097 = vld [vmem:[%s921 + $0x2b0] sm:$0xff]
        %v1098 = vld [vmem:[%s921 + $0x2b8] sm:$0xff]
        %v1099 = vld [vmem:[%s921 + $0x2c0] sm:$0xff]
        %v1100 = vld [vmem:[%s921 + $0x2c8] sm:$0xff]
        %v1101 = vld [vmem:[%s921 + $0x2d0] sm:$0xff]
        %v1102 = vld [vmem:[%s921 + $0x2d8] sm:$0xff]
        %v1103 = vld [vmem:[%s921 + $0x2e0] sm:$0xff]
        %v1104 = vld [vmem:[%s921 + $0x2e8] sm:$0xff]
        %v1105 = vld [vmem:[%s921 + $0x2f0] sm:$0xff]
        %v1106 = vld [vmem:[%s921 + $0x2f8] sm:$0xff]
        %v1107 = vld [vmem:[%s921 + $0x300] sm:$0xff]
        %v1108 = vld [vmem:[%s921 + $0x308] sm:$0xff]
        %v1109 = vld [vmem:[%s921 + $0x310] sm:$0xff]
        %v1110 = vld [vmem:[%s921 + $0x318] sm:$0xff]
        %v1111 = vld [vmem:[%s921 + $0x320] sm:$0xff]
        %v1112 = vld [vmem:[%s921 + $0x328] sm:$0xff]
        %v1113 = vld [vmem:[%s921 + $0x330] sm:$0xff]
        %v1114 = vld [vmem:[%s921 + $0x338] sm:$0xff]
        %v1115 = vld [vmem:[%s921 + $0x340] sm:$0xff]
        %v1116 = vld [vmem:[%s921 + $0x348] sm:$0xff]
        %v1117 = vld [vmem:[%s921 + $0x350] sm:$0xff]
        %v1118 = vld [vmem:[%s921 + $0x358] sm:$0xff]
        %v1119 = vld [vmem:[%s921 + $0x360] sm:$0xff]
        %v1120 = vld [vmem:[%s921 + $0x368] sm:$0xff]
        %v1121 = vld [vmem:[%s921 + $0x370] sm:$0xff]
        %v1122 = vld [vmem:[%s921 + $0x378] sm:$0xff]
        %v1123 = vld [vmem:[%s921 + $0x380] sm:$0xff]
        %v1124 = vld [vmem:[%s921 + $0x388] sm:$0xff]
        %v1125 = vld [vmem:[%s921 + $0x390] sm:$0xff]
        %v1126 = vld [vmem:[%s921 + $0x398] sm:$0xff]
        %v1127 = vld [vmem:[%s921 + $0x3a0] sm:$0xff]
        %v1128 = vld [vmem:[%s921 + $0x3a8] sm:$0xff]
        %v1129 = vld [vmem:[%s921 + $0x3b0] sm:$0xff]
        %v1130 = vld [vmem:[%s921 + $0x3b8] sm:$0xff]
        %v1131 = vld [vmem:[%s921 + $0x3c0] sm:$0xff]
        %v1132 = vld [vmem:[%s921 + $0x3c8] sm:$0xff]
        %v1133 = vld [vmem:[%s921 + $0x3d0] sm:$0xff]
        %v1134 = vld [vmem:[%s921 + $0x3d8] sm:$0xff]
        %v1135 = vld [vmem:[%s921 + $0x3e0] sm:$0xff]
        %v1136 = vld [vmem:[%s921 + $0x3e8] sm:$0xff]
        %v1137 = vld [vmem:[%s921 + $0x3f0] sm:$0xff]
        %v1138 = vld [vmem:[%s921 + $0x3f8] sm:$0xff]
        %v1139 = vld [vmem:[%s921 + $0x400] sm:$0xff]
        %v1140 = vld [vmem:[%s921 + $0x408] sm:$0xff]
        %v1141 = vld [vmem:[%s921 + $0x410] sm:$0xff]
        %v1142 = vld [vmem:[%s921 + $0x418] sm:$0xff]
        %v1143 = vld [vmem:[%s921 + $0x420] sm:$0xff]
        %v1144 = vld [vmem:[%s921 + $0x428] sm:$0xff]
        %v1145 = vld [vmem:[%s921 + $0x430] sm:$0xff]
        %v1146 = vld [vmem:[%s921 + $0x438] sm:$0xff]
        %v1147 = vld [vmem:[%s921 + $0x440] sm:$0xff]
        %v1148 = vld [vmem:[%s921 + $0x448] sm:$0xff]
        %v1149 = vld [vmem:[%s921 + $0x450] sm:$0xff]
        %v1150 = vld [vmem:[%s921 + $0x458] sm:$0xff]
        %v1151 = vld [vmem:[%s921 + $0x460] sm:$0xff]
        %v1152 = vld [vmem:[%s921 + $0x468] sm:$0xff]
        %v1153 = vld [vmem:[%s921 + $0x470] sm:$0xff]
        %v1154 = vld [vmem:[%s921 + $0x478] sm:$0xff]
        %v1155 = vld [vmem:[%s921 + $0x480] sm:$0xff]
        %v1156 = vld [vmem:[%s921 + $0x488] sm:$0xff]
        %v1157 = vld [vmem:[%s921 + $0x490] sm:$0xff]
        %v1158 = vld [vmem:[%s921 + $0x498] sm:$0xff]
        %v1159 = vld [vmem:[%s921 + $0x4a0] sm:$0xff]
        %v1160 = vld [vmem:[%s921 + $0x4a8] sm:$0xff]
        %v1161 = vld [vmem:[%s921 + $0x4b0] sm:$0xff]
        %v1162 = vld [vmem:[%s921 + $0x4b8] sm:$0xff]
        %v1163 = vld [vmem:[%s921 + $0x4c0] sm:$0xff]
        %v1164 = vld [vmem:[%s921 + $0x4c8] sm:$0xff]
        %v1165 = vld [vmem:[%s921 + $0x4d0] sm:$0xff]
        %v1166 = vld [vmem:[%s921 + $0x4d8] sm:$0xff]
        %v1167 = vld [vmem:[%s921 + $0x4e0] sm:$0xff]
        %v1168 = vld [vmem:[%s921 + $0x4e8] sm:$0xff]
        %v1169 = vld [vmem:[%s921 + $0x4f0] sm:$0xff]
        %v1170 = vld [vmem:[%s921 + $0x4f8] sm:$0xff]
        %v1171 = vld [vmem:[%s921 + $0x500] sm:$0xff]
        %v1172 = vld [vmem:[%s921 + $0x508] sm:$0xff]
        %v1173 = vld [vmem:[%s921 + $0x510] sm:$0xff]
        %v1174 = vld [vmem:[%s921 + $0x518] sm:$0xff]
        %v1175 = vld [vmem:[%s921 + $0x520] sm:$0xff]
        %v1176 = vld [vmem:[%s921 + $0x528] sm:$0xff]
        %v1177 = vld [vmem:[%s921 + $0x530] sm:$0xff]
        %v1178 = vld [vmem:[%s921 + $0x538] sm:$0xff]
        %v1179 = vld [vmem:[%s921 + $0x540] sm:$0xff]
        %v1180 = vld [vmem:[%s921 + $0x548] sm:$0xff]
        %v1181 = vld [vmem:[%s921 + $0x550] sm:$0xff]
        %v1182 = vld [vmem:[%s921 + $0x558] sm:$0xff]
        %v1183 = vld [vmem:[%s921 + $0x560] sm:$0xff]
        %v1184 = vld [vmem:[%s921 + $0x568] sm:$0xff]
        %v1185 = vld [vmem:[%s921 + $0x570] sm:$0xff]
        %v1186 = vld [vmem:[%s921 + $0x578] sm:$0xff]
        %v1187 = vld [vmem:[%s921 + $0x580] sm:$0xff]
        %v1188 = vld [vmem:[%s921 + $0x588] sm:$0xff]
        %v1189 = vld [vmem:[%s921 + $0x590] sm:$0xff]
        %v1190 = vld [vmem:[%s921 + $0x598] sm:$0xff]
        %v1191 = vld [vmem:[%s921 + $0x5a0] sm:$0xff]
        %v1192 = vld [vmem:[%s921 + $0x5a8] sm:$0xff]
        %v1193 = vld [vmem:[%s921 + $0x5b0] sm:$0xff]
        %v1194 = vld [vmem:[%s921 + $0x5b8] sm:$0xff]
        %v1195 = vld [vmem:[%s921 + $0x5c0] sm:$0xff]
        %v1196 = vld [vmem:[%s921 + $0x5c8] sm:$0xff]
        %v1197 = vld [vmem:[%s921 + $0x5d0] sm:$0xff]
        %v1198 = vld [vmem:[%s921 + $0x5d8] sm:$0xff]
        %v1199 = vld [vmem:[%s921 + $0x5e0] sm:$0xff]
        %v1200 = vld [vmem:[%s921 + $0x5e8] sm:$0xff]
        %v1201 = vld [vmem:[%s921 + $0x5f0] sm:$0xff]
        %v1202 = vld [vmem:[%s921 + $0x5f8] sm:$0xff]
        %v1203 = vld [vmem:[%s921 + $0x600] sm:$0xff]
        %v1204 = vld [vmem:[%s921 + $0x608] sm:$0xff]
        %v1205 = vld [vmem:[%s921 + $0x610] sm:$0xff]
        %v1206 = vld [vmem:[%s921 + $0x618] sm:$0xff]
        %v1207 = vld [vmem:[%s921 + $0x620] sm:$0xff]
        %v1208 = vld [vmem:[%s921 + $0x628] sm:$0xff]
        %v1209 = vld [vmem:[%s921 + $0x630] sm:$0xff]
        %v1210 = vld [vmem:[%s921 + $0x638] sm:$0xff]
        %v1211 = vld [vmem:[%s921 + $0x640] sm:$0xff]
        %v1212 = vld [vmem:[%s921 + $0x648] sm:$0xff]
        %v1213 = vld [vmem:[%s921 + $0x650] sm:$0xff]
        %v1214 = vld [vmem:[%s921 + $0x658] sm:$0xff]
        %v1215 = vld [vmem:[%s921 + $0x660] sm:$0xff]
        %v1216 = vld [vmem:[%s921 + $0x668] sm:$0xff]
        %v1217 = vld [vmem:[%s921 + $0x670] sm:$0xff]
        %v1218 = vld [vmem:[%s921 + $0x678] sm:$0xff]
        %v1219 = vld [vmem:[%s921 + $0x680] sm:$0xff]
        %v1220 = vld [vmem:[%s921 + $0x688] sm:$0xff]
        %v1221 = vld [vmem:[%s921 + $0x690] sm:$0xff]
        %v1222 = vld [vmem:[%s921 + $0x698] sm:$0xff]
        %v1223 = vld [vmem:[%s921 + $0x6a0] sm:$0xff]
        %v1224 = vld [vmem:[%s921 + $0x6a8] sm:$0xff]
        %v1225 = vld [vmem:[%s921 + $0x6b0] sm:$0xff]
        %v1226 = vld [vmem:[%s921 + $0x6b8] sm:$0xff]
        %v1227 = vld [vmem:[%s921 + $0x6c0] sm:$0xff]
        %v1228 = vld [vmem:[%s921 + $0x6c8] sm:$0xff]
        %v1229 = vld [vmem:[%s921 + $0x6d0] sm:$0xff]
        %v1230 = vld [vmem:[%s921 + $0x6d8] sm:$0xff]
        %v1231 = vld [vmem:[%s921 + $0x6e0] sm:$0xff]
        %v1232 = vld [vmem:[%s921 + $0x6e8] sm:$0xff]
        %v1233 = vld [vmem:[%s921 + $0x6f0] sm:$0xff]
        %v1234 = vld [vmem:[%s921 + $0x6f8] sm:$0xff]
        %v1235 = vld [vmem:[%s921 + $0x700] sm:$0xff]
        %v1236 = vld [vmem:[%s921 + $0x708] sm:$0xff]
        %v1237 = vld [vmem:[%s921 + $0x710] sm:$0xff]
        %v1238 = vld [vmem:[%s921 + $0x718] sm:$0xff]
        %v1239 = vld [vmem:[%s921 + $0x720] sm:$0xff]
        %v1240 = vld [vmem:[%s921 + $0x728] sm:$0xff]
        %v1241 = vld [vmem:[%s921 + $0x730] sm:$0xff]
        %v1242 = vld [vmem:[%s921 + $0x738] sm:$0xff]
        %v1243 = vld [vmem:[%s921 + $0x740] sm:$0xff]
        %v1244 = vld [vmem:[%s921 + $0x748] sm:$0xff]
        %v1245 = vld [vmem:[%s921 + $0x750] sm:$0xff]
        %v1246 = vld [vmem:[%s921 + $0x758] sm:$0xff]
        %v1247 = vld [vmem:[%s921 + $0x760] sm:$0xff]
        %v1248 = vld [vmem:[%s921 + $0x768] sm:$0xff]
        %v1249 = vld [vmem:[%s921 + $0x770] sm:$0xff]
        %v1250 = vld [vmem:[%s921 + $0x778] sm:$0xff]
        %v1251 = vld [vmem:[%s921 + $0x780] sm:$0xff]
        %v1252 = vld [vmem:[%s921 + $0x788] sm:$0xff]
        %v1253 = vld [vmem:[%s921 + $0x790] sm:$0xff]
        %v1254 = vld [vmem:[%s921 + $0x798] sm:$0xff]
        %v1255 = vld [vmem:[%s921 + $0x7a0] sm:$0xff]
        %v1256 = vld [vmem:[%s921 + $0x7a8] sm:$0xff]
        %v1257 = vld [vmem:[%s921 + $0x7b0] sm:$0xff]
        %v1258 = vld [vmem:[%s921 + $0x7b8] sm:$0xff]
        %v1259 = vld [vmem:[%s921 + $0x7c0] sm:$0xff]
        %v1260 = vld [vmem:[%s921 + $0x7c8] sm:$0xff]
        %v1261 = vld [vmem:[%s921 + $0x7d0] sm:$0xff]
        %v1262 = vld [vmem:[%s921 + $0x7d8] sm:$0xff]
        %v1263 = vld [vmem:[%s921 + $0x7e0] sm:$0xff]
        %v1264 = vld [vmem:[%s921 + $0x7e8] sm:$0xff]
        %v1265 = vld [vmem:[%s921 + $0x7f0] sm:$0xff]
        %v1266 = vld [vmem:[%s921 + $0x7f8] sm:$0xff]
        %v1281 = vunpack.c.l.b16 %v997
        %v1282 = vunpack.c.h.b16 %v997
        %v1283 = vunpack.c.l.b16 %v998
        %v1284 = vunpack.c.h.b16 %v998
        %v1285 = vunpack.c.l.b16 %v999
        %v1286 = vunpack.c.h.b16 %v999
        %v1287 = vunpack.c.l.b16 %v1000
        %v1288 = vunpack.c.h.b16 %v1000
        %v1289 = vunpack.c.l.b16 %v1001
        %v1290 = vunpack.c.h.b16 %v1001
        %v1291 = vunpack.c.l.b16 %v1002
        %v1292 = vunpack.c.h.b16 %v1002
        %v1293 = vunpack.c.l.b16 %v1003
        %v1294 = vunpack.c.h.b16 %v1003
        %v1295 = vunpack.c.l.b16 %v1004
        %v1296 = vunpack.c.h.b16 %v1004
        %v1297 = vunpack.c.l.b16 %v1005
        %v1298 = vunpack.c.h.b16 %v1005
        %v1299 = vunpack.c.l.b16 %v1006
        %v1300 = vunpack.c.h.b16 %v1006
        %v1301 = vunpack.c.l.b16 %v1007
        %v1302 = vunpack.c.h.b16 %v1007
        %v1303 = vunpack.c.l.b16 %v1008
        %v1304 = vunpack.c.h.b16 %v1008
        %v1305 = vunpack.c.l.b16 %v1009
        %v1306 = vunpack.c.h.b16 %v1009
        %v1307 = vunpack.c.l.b16 %v1010
        %v1308 = vunpack.c.h.b16 %v1010
        %v1309 = vpack.c.b16 %v1285, %v1281
        %v1310 = vpack.c.b16 %v1286, %v1282
        %v1311 = vpack.c.b16 %v1287, %v1283
        %v1312 = vpack.c.b16 %v1288, %v1284
        %v1313 = vpack.c.b16 %v1293, %v1289
        %v1314 = vpack.c.b16 %v1294, %v1290
        %v1315 = vpack.c.b16 %v1295, %v1291
        %v1316 = vpack.c.b16 %v1296, %v1292
        %v1317 = vpack.c.b16 %v1301, %v1297
        %v1318 = vpack.c.b16 %v1302, %v1298
        %v1319 = vpack.c.b16 %v1303, %v1299
        %v1320 = vpack.c.b16 %v1304, %v1300
        %v1321 = vpack.c.b16 %v1305, %v1305
        %v1322 = vpack.c.b16 %v1306, %v1306
        %v1323 = vpack.c.b16 %v1307, %v1307
        %v1324 = vpack.c.b16 %v1308, %v1308
        %v1597 = vunpack.c.l.b16 %v1011
        %v1598 = vunpack.c.h.b16 %v1011
        %v1599 = vunpack.c.l.b16 %v1012
        %v1600 = vunpack.c.h.b16 %v1012
        %v1601 = vunpack.c.l.b16 %v1013
        %v1602 = vunpack.c.h.b16 %v1013
        %v1603 = vunpack.c.l.b16 %v1014
        %v1604 = vunpack.c.h.b16 %v1014
        %v1605 = vunpack.c.l.b16 %v1015
        %v1606 = vunpack.c.h.b16 %v1015
        %v1607 = vunpack.c.l.b16 %v1016
        %v1608 = vunpack.c.h.b16 %v1016
        %v1609 = vunpack.c.l.b16 %v1017
        %v1610 = vunpack.c.h.b16 %v1017
        %v1611 = vunpack.c.l.b16 %v1018
        %v1612 = vunpack.c.h.b16 %v1018
        %v1613 = vunpack.c.l.b16 %v1019
        %v1614 = vunpack.c.h.b16 %v1019
        %v1615 = vunpack.c.l.b16 %v1020
        %v1616 = vunpack.c.h.b16 %v1020
        %v1617 = vunpack.c.l.b16 %v1021
        %v1618 = vunpack.c.h.b16 %v1021
        %v1619 = vunpack.c.l.b16 %v1022
        %v1620 = vunpack.c.h.b16 %v1022
        %v1621 = vunpack.c.l.b16 %v1023
        %v1622 = vunpack.c.h.b16 %v1023
        %v1623 = vunpack.c.l.b16 %v1024
        %v1624 = vunpack.c.h.b16 %v1024
        %v1625 = vunpack.c.l.b16 %v1025
        %v1626 = vunpack.c.h.b16 %v1025
        %v1627 = vunpack.c.l.b16 %v1026
        %v1628 = vunpack.c.h.b16 %v1026
        %v1629 = vunpack.c.l.b16 %v1027
        %v1630 = vunpack.c.h.b16 %v1027
        %v1631 = vunpack.c.l.b16 %v1028
        %v1632 = vunpack.c.h.b16 %v1028
        %v1633 = vunpack.c.l.b16 %v1029
        %v1634 = vunpack.c.h.b16 %v1029
        %v1635 = vunpack.c.l.b16 %v1030
        %v1636 = vunpack.c.h.b16 %v1030
        %v1637 = vunpack.c.l.b16 %v1031
        %v1638 = vunpack.c.h.b16 %v1031
        %v1639 = vunpack.c.l.b16 %v1032
        %v1640 = vunpack.c.h.b16 %v1032
        %v1641 = vunpack.c.l.b16 %v1033
        %v1642 = vunpack.c.h.b16 %v1033
        %v1643 = vunpack.c.l.b16 %v1034
        %v1644 = vunpack.c.h.b16 %v1034
        %v1645 = vunpack.c.l.b16 %v1035
        %v1646 = vunpack.c.h.b16 %v1035
        %v1647 = vunpack.c.l.b16 %v1036
        %v1648 = vunpack.c.h.b16 %v1036
        %v1649 = vunpack.c.l.b16 %v1037
        %v1650 = vunpack.c.h.b16 %v1037
        %v1651 = vunpack.c.l.b16 %v1038
        %v1652 = vunpack.c.h.b16 %v1038
        %v1653 = vunpack.c.l.b16 %v1039
        %v1654 = vunpack.c.h.b16 %v1039
        %v1655 = vunpack.c.l.b16 %v1040
        %v1656 = vunpack.c.h.b16 %v1040
        %v1657 = vunpack.c.l.b16 %v1041
        %v1658 = vunpack.c.h.b16 %v1041
        %v1659 = vunpack.c.l.b16 %v1042
        %v1660 = vunpack.c.h.b16 %v1042
        %v1661 = vunpack.c.l.b16 %v1043
        %v1662 = vunpack.c.h.b16 %v1043
        %v1663 = vunpack.c.l.b16 %v1044
        %v1664 = vunpack.c.h.b16 %v1044
        %v1665 = vunpack.c.l.b16 %v1045
        %v1666 = vunpack.c.h.b16 %v1045
        %v1667 = vunpack.c.l.b16 %v1046
        %v1668 = vunpack.c.h.b16 %v1046
        %v1669 = vunpack.c.l.b16 %v1047
        %v1670 = vunpack.c.h.b16 %v1047
        %v1671 = vunpack.c.l.b16 %v1048
        %v1672 = vunpack.c.h.b16 %v1048
        %v1673 = vunpack.c.l.b16 %v1049
        %v1674 = vunpack.c.h.b16 %v1049
        %v1675 = vunpack.c.l.b16 %v1050
        %v1676 = vunpack.c.h.b16 %v1050
        %v1677 = vunpack.c.l.b16 %v1051
        %v1678 = vunpack.c.h.b16 %v1051
        %v1679 = vunpack.c.l.b16 %v1052
        %v1680 = vunpack.c.h.b16 %v1052
        %v1681 = vunpack.c.l.b16 %v1053
        %v1682 = vunpack.c.h.b16 %v1053
        %v1683 = vunpack.c.l.b16 %v1054
        %v1684 = vunpack.c.h.b16 %v1054
        %v1685 = vunpack.c.l.b16 %v1055
        %v1686 = vunpack.c.h.b16 %v1055
        %v1687 = vunpack.c.l.b16 %v1056
        %v1688 = vunpack.c.h.b16 %v1056
        %v1689 = vunpack.c.l.b16 %v1057
        %v1690 = vunpack.c.h.b16 %v1057
        %v1691 = vunpack.c.l.b16 %v1058
        %v1692 = vunpack.c.h.b16 %v1058
        %v1693 = vunpack.c.l.b16 %v1059
        %v1694 = vunpack.c.h.b16 %v1059
        %v1695 = vunpack.c.l.b16 %v1060
        %v1696 = vunpack.c.h.b16 %v1060
        %v1697 = vunpack.c.l.b16 %v1061
        %v1698 = vunpack.c.h.b16 %v1061
        %v1699 = vunpack.c.l.b16 %v1062
        %v1700 = vunpack.c.h.b16 %v1062
        %v1701 = vunpack.c.l.b16 %v1063
        %v1702 = vunpack.c.h.b16 %v1063
        %v1703 = vunpack.c.l.b16 %v1064
        %v1704 = vunpack.c.h.b16 %v1064
        %v1705 = vunpack.c.l.b16 %v1065
        %v1706 = vunpack.c.h.b16 %v1065
        %v1707 = vunpack.c.l.b16 %v1066
        %v1708 = vunpack.c.h.b16 %v1066
        %v1709 = vunpack.c.l.b16 %v1067
        %v1710 = vunpack.c.h.b16 %v1067
        %v1711 = vunpack.c.l.b16 %v1068
        %v1712 = vunpack.c.h.b16 %v1068
        %v1713 = vunpack.c.l.b16 %v1069
        %v1714 = vunpack.c.h.b16 %v1069
        %v1715 = vunpack.c.l.b16 %v1070
        %v1716 = vunpack.c.h.b16 %v1070
        %v1717 = vunpack.c.l.b16 %v1071
        %v1718 = vunpack.c.h.b16 %v1071
        %v1719 = vunpack.c.l.b16 %v1072
        %v1720 = vunpack.c.h.b16 %v1072
        %v1721 = vunpack.c.l.b16 %v1073
        %v1722 = vunpack.c.h.b16 %v1073
        %v1723 = vunpack.c.l.b16 %v1074
        %v1724 = vunpack.c.h.b16 %v1074
        %v1725 = vunpack.c.l.b16 %v1075
        %v1726 = vunpack.c.h.b16 %v1075
        %v1727 = vunpack.c.l.b16 %v1076
        %v1728 = vunpack.c.h.b16 %v1076
        %v1729 = vunpack.c.l.b16 %v1077
        %v1730 = vunpack.c.h.b16 %v1077
        %v1731 = vunpack.c.l.b16 %v1078
        %v1732 = vunpack.c.h.b16 %v1078
        %v1733 = vunpack.c.l.b16 %v1079
        %v1734 = vunpack.c.h.b16 %v1079
        %v1735 = vunpack.c.l.b16 %v1080
        %v1736 = vunpack.c.h.b16 %v1080
        %v1737 = vunpack.c.l.b16 %v1081
        %v1738 = vunpack.c.h.b16 %v1081
        %v1739 = vunpack.c.l.b16 %v1082
        %v1740 = vunpack.c.h.b16 %v1082
        %v1741 = vunpack.c.l.b16 %v1083
        %v1742 = vunpack.c.h.b16 %v1083
        %v1743 = vunpack.c.l.b16 %v1084
        %v1744 = vunpack.c.h.b16 %v1084
        %v1745 = vunpack.c.l.b16 %v1085
        %v1746 = vunpack.c.h.b16 %v1085
        %v1747 = vunpack.c.l.b16 %v1086
        %v1748 = vunpack.c.h.b16 %v1086
        %v1749 = vunpack.c.l.b16 %v1087
        %v1750 = vunpack.c.h.b16 %v1087
        %v1751 = vunpack.c.l.b16 %v1088
        %v1752 = vunpack.c.h.b16 %v1088
        %v1753 = vunpack.c.l.b16 %v1089
        %v1754 = vunpack.c.h.b16 %v1089
        %v1755 = vunpack.c.l.b16 %v1090
        %v1756 = vunpack.c.h.b16 %v1090
        %v1757 = vunpack.c.l.b16 %v1091
        %v1758 = vunpack.c.h.b16 %v1091
        %v1759 = vunpack.c.l.b16 %v1092
        %v1760 = vunpack.c.h.b16 %v1092
        %v1761 = vunpack.c.l.b16 %v1093
        %v1762 = vunpack.c.h.b16 %v1093
        %v1763 = vunpack.c.l.b16 %v1094
        %v1764 = vunpack.c.h.b16 %v1094
        %v1765 = vunpack.c.l.b16 %v1095
        %v1766 = vunpack.c.h.b16 %v1095
        %v1767 = vunpack.c.l.b16 %v1096
        %v1768 = vunpack.c.h.b16 %v1096
        %v1769 = vunpack.c.l.b16 %v1097
        %v1770 = vunpack.c.h.b16 %v1097
        %v1771 = vunpack.c.l.b16 %v1098
        %v1772 = vunpack.c.h.b16 %v1098
        %v1773 = vunpack.c.l.b16 %v1099
        %v1774 = vunpack.c.h.b16 %v1099
        %v1775 = vunpack.c.l.b16 %v1100
        %v1776 = vunpack.c.h.b16 %v1100
        %v1777 = vunpack.c.l.b16 %v1101
        %v1778 = vunpack.c.h.b16 %v1101
        %v1779 = vunpack.c.l.b16 %v1102
        %v1780 = vunpack.c.h.b16 %v1102
        %v1781 = vunpack.c.l.b16 %v1103
        %v1782 = vunpack.c.h.b16 %v1103
        %v1783 = vunpack.c.l.b16 %v1104
        %v1784 = vunpack.c.h.b16 %v1104
        %v1785 = vunpack.c.l.b16 %v1105
        %v1786 = vunpack.c.h.b16 %v1105
        %v1787 = vunpack.c.l.b16 %v1106
        %v1788 = vunpack.c.h.b16 %v1106
        %v1789 = vunpack.c.l.b16 %v1107
        %v1790 = vunpack.c.h.b16 %v1107
        %v1791 = vunpack.c.l.b16 %v1108
        %v1792 = vunpack.c.h.b16 %v1108
        %v1793 = vunpack.c.l.b16 %v1109
        %v1794 = vunpack.c.h.b16 %v1109
        %v1795 = vunpack.c.l.b16 %v1110
        %v1796 = vunpack.c.h.b16 %v1110
        %v1797 = vunpack.c.l.b16 %v1111
        %v1798 = vunpack.c.h.b16 %v1111
        %v1799 = vunpack.c.l.b16 %v1112
        %v1800 = vunpack.c.h.b16 %v1112
        %v1801 = vunpack.c.l.b16 %v1113
        %v1802 = vunpack.c.h.b16 %v1113
        %v1803 = vunpack.c.l.b16 %v1114
        %v1804 = vunpack.c.h.b16 %v1114
        %v1805 = vunpack.c.l.b16 %v1115
        %v1806 = vunpack.c.h.b16 %v1115
        %v1807 = vunpack.c.l.b16 %v1116
        %v1808 = vunpack.c.h.b16 %v1116
        %v1809 = vunpack.c.l.b16 %v1117
        %v1810 = vunpack.c.h.b16 %v1117
        %v1811 = vunpack.c.l.b16 %v1118
        %v1812 = vunpack.c.h.b16 %v1118
        %v1813 = vunpack.c.l.b16 %v1119
        %v1814 = vunpack.c.h.b16 %v1119
        %v1815 = vunpack.c.l.b16 %v1120
        %v1816 = vunpack.c.h.b16 %v1120
        %v1817 = vunpack.c.l.b16 %v1121
        %v1818 = vunpack.c.h.b16 %v1121
        %v1819 = vunpack.c.l.b16 %v1122
        %v1820 = vunpack.c.h.b16 %v1122
        %v1821 = vunpack.c.l.b16 %v1123
        %v1822 = vunpack.c.h.b16 %v1123
        %v1823 = vunpack.c.l.b16 %v1124
        %v1824 = vunpack.c.h.b16 %v1124
        %v1825 = vunpack.c.l.b16 %v1125
        %v1826 = vunpack.c.h.b16 %v1125
        %v1827 = vunpack.c.l.b16 %v1126
        %v1828 = vunpack.c.h.b16 %v1126
        %v1829 = vunpack.c.l.b16 %v1127
        %v1830 = vunpack.c.h.b16 %v1127
        %v1831 = vunpack.c.l.b16 %v1128
        %v1832 = vunpack.c.h.b16 %v1128
        %v1833 = vunpack.c.l.b16 %v1129
        %v1834 = vunpack.c.h.b16 %v1129
        %v1835 = vunpack.c.l.b16 %v1130
        %v1836 = vunpack.c.h.b16 %v1130
        %v1837 = vunpack.c.l.b16 %v1131
        %v1838 = vunpack.c.h.b16 %v1131
        %v1839 = vunpack.c.l.b16 %v1132
        %v1840 = vunpack.c.h.b16 %v1132
        %v1841 = vunpack.c.l.b16 %v1133
        %v1842 = vunpack.c.h.b16 %v1133
        %v1843 = vunpack.c.l.b16 %v1134
        %v1844 = vunpack.c.h.b16 %v1134
        %v1845 = vunpack.c.l.b16 %v1135
        %v1846 = vunpack.c.h.b16 %v1135
        %v1847 = vunpack.c.l.b16 %v1136
        %v1848 = vunpack.c.h.b16 %v1136
        %v1849 = vunpack.c.l.b16 %v1137
        %v1850 = vunpack.c.h.b16 %v1137
        %v1851 = vunpack.c.l.b16 %v1138
        %v1852 = vunpack.c.h.b16 %v1138
        %v1853 = vunpack.c.l.b16 %v1139
        %v1854 = vunpack.c.h.b16 %v1139
        %v1855 = vunpack.c.l.b16 %v1140
        %v1856 = vunpack.c.h.b16 %v1140
        %v1857 = vunpack.c.l.b16 %v1141
        %v1858 = vunpack.c.h.b16 %v1141
        %v1859 = vunpack.c.l.b16 %v1142
        %v1860 = vunpack.c.h.b16 %v1142
        %v1861 = vunpack.c.l.b16 %v1143
        %v1862 = vunpack.c.h.b16 %v1143
        %v1863 = vunpack.c.l.b16 %v1144
        %v1864 = vunpack.c.h.b16 %v1144
        %v1865 = vunpack.c.l.b16 %v1145
        %v1866 = vunpack.c.h.b16 %v1145
        %v1867 = vunpack.c.l.b16 %v1146
        %v1868 = vunpack.c.h.b16 %v1146
        %v1869 = vunpack.c.l.b16 %v1147
        %v1870 = vunpack.c.h.b16 %v1147
        %v1871 = vunpack.c.l.b16 %v1148
        %v1872 = vunpack.c.h.b16 %v1148
        %v1873 = vunpack.c.l.b16 %v1149
        %v1874 = vunpack.c.h.b16 %v1149
        %v1875 = vunpack.c.l.b16 %v1150
        %v1876 = vunpack.c.h.b16 %v1150
        %v1877 = vunpack.c.l.b16 %v1151
        %v1878 = vunpack.c.h.b16 %v1151
        %v1879 = vunpack.c.l.b16 %v1152
        %v1880 = vunpack.c.h.b16 %v1152
        %v1881 = vunpack.c.l.b16 %v1153
        %v1882 = vunpack.c.h.b16 %v1153
        %v1883 = vunpack.c.l.b16 %v1154
        %v1884 = vunpack.c.h.b16 %v1154
        %v1885 = vunpack.c.l.b16 %v1155
        %v1886 = vunpack.c.h.b16 %v1155
        %v1887 = vunpack.c.l.b16 %v1156
        %v1888 = vunpack.c.h.b16 %v1156
        %v1889 = vunpack.c.l.b16 %v1157
        %v1890 = vunpack.c.h.b16 %v1157
        %v1891 = vunpack.c.l.b16 %v1158
        %v1892 = vunpack.c.h.b16 %v1158
        %v1893 = vunpack.c.l.b16 %v1159
        %v1894 = vunpack.c.h.b16 %v1159
        %v1895 = vunpack.c.l.b16 %v1160
        %v1896 = vunpack.c.h.b16 %v1160
        %v1897 = vunpack.c.l.b16 %v1161
        %v1898 = vunpack.c.h.b16 %v1161
        %v1899 = vunpack.c.l.b16 %v1162
        %v1900 = vunpack.c.h.b16 %v1162
        %v1901 = vunpack.c.l.b16 %v1163
        %v1902 = vunpack.c.h.b16 %v1163
        %v1903 = vunpack.c.l.b16 %v1164
        %v1904 = vunpack.c.h.b16 %v1164
        %v1905 = vunpack.c.l.b16 %v1165
        %v1906 = vunpack.c.h.b16 %v1165
        %v1907 = vunpack.c.l.b16 %v1166
        %v1908 = vunpack.c.h.b16 %v1166
        %v1909 = vunpack.c.l.b16 %v1167
        %v1910 = vunpack.c.h.b16 %v1167
        %v1911 = vunpack.c.l.b16 %v1168
        %v1912 = vunpack.c.h.b16 %v1168
        %v1913 = vunpack.c.l.b16 %v1169
        %v1914 = vunpack.c.h.b16 %v1169
        %v1915 = vunpack.c.l.b16 %v1170
        %v1916 = vunpack.c.h.b16 %v1170
        %v1917 = vunpack.c.l.b16 %v1171
        %v1918 = vunpack.c.h.b16 %v1171
        %v1919 = vunpack.c.l.b16 %v1172
        %v1920 = vunpack.c.h.b16 %v1172
        %v1921 = vunpack.c.l.b16 %v1173
        %v1922 = vunpack.c.h.b16 %v1173
        %v1923 = vunpack.c.l.b16 %v1174
        %v1924 = vunpack.c.h.b16 %v1174
        %v1925 = vunpack.c.l.b16 %v1175
        %v1926 = vunpack.c.h.b16 %v1175
        %v1927 = vunpack.c.l.b16 %v1176
        %v1928 = vunpack.c.h.b16 %v1176
        %v1929 = vunpack.c.l.b16 %v1177
        %v1930 = vunpack.c.h.b16 %v1177
        %v1931 = vunpack.c.l.b16 %v1178
        %v1932 = vunpack.c.h.b16 %v1178
        %v1933 = vunpack.c.l.b16 %v1179
        %v1934 = vunpack.c.h.b16 %v1179
        %v1935 = vunpack.c.l.b16 %v1180
        %v1936 = vunpack.c.h.b16 %v1180
        %v1937 = vunpack.c.l.b16 %v1181
        %v1938 = vunpack.c.h.b16 %v1181
        %v1939 = vunpack.c.l.b16 %v1182
        %v1940 = vunpack.c.h.b16 %v1182
        %v1941 = vunpack.c.l.b16 %v1183
        %v1942 = vunpack.c.h.b16 %v1183
        %v1943 = vunpack.c.l.b16 %v1184
        %v1944 = vunpack.c.h.b16 %v1184
        %v1945 = vunpack.c.l.b16 %v1185
        %v1946 = vunpack.c.h.b16 %v1185
        %v1947 = vunpack.c.l.b16 %v1186
        %v1948 = vunpack.c.h.b16 %v1186
        %v1949 = vunpack.c.l.b16 %v1187
        %v1950 = vunpack.c.h.b16 %v1187
        %v1951 = vunpack.c.l.b16 %v1188
        %v1952 = vunpack.c.h.b16 %v1188
        %v1953 = vunpack.c.l.b16 %v1189
        %v1954 = vunpack.c.h.b16 %v1189
        %v1955 = vunpack.c.l.b16 %v1190
        %v1956 = vunpack.c.h.b16 %v1190
        %v1957 = vunpack.c.l.b16 %v1191
        %v1958 = vunpack.c.h.b16 %v1191
        %v1959 = vunpack.c.l.b16 %v1192
        %v1960 = vunpack.c.h.b16 %v1192
        %v1961 = vunpack.c.l.b16 %v1193
        %v1962 = vunpack.c.h.b16 %v1193
        %v1963 = vunpack.c.l.b16 %v1194
        %v1964 = vunpack.c.h.b16 %v1194
        %v1965 = vunpack.c.l.b16 %v1195
        %v1966 = vunpack.c.h.b16 %v1195
        %v1967 = vunpack.c.l.b16 %v1196
        %v1968 = vunpack.c.h.b16 %v1196
        %v1969 = vunpack.c.l.b16 %v1197
        %v1970 = vunpack.c.h.b16 %v1197
        %v1971 = vunpack.c.l.b16 %v1198
        %v1972 = vunpack.c.h.b16 %v1198
        %v1973 = vunpack.c.l.b16 %v1199
        %v1974 = vunpack.c.h.b16 %v1199
        %v1975 = vunpack.c.l.b16 %v1200
        %v1976 = vunpack.c.h.b16 %v1200
        %v1977 = vunpack.c.l.b16 %v1201
        %v1978 = vunpack.c.h.b16 %v1201
        %v1979 = vunpack.c.l.b16 %v1202
        %v1980 = vunpack.c.h.b16 %v1202
        %v1981 = vunpack.c.l.b16 %v1203
        %v1982 = vunpack.c.h.b16 %v1203
        %v1983 = vunpack.c.l.b16 %v1204
        %v1984 = vunpack.c.h.b16 %v1204
        %v1985 = vunpack.c.l.b16 %v1205
        %v1986 = vunpack.c.h.b16 %v1205
        %v1987 = vunpack.c.l.b16 %v1206
        %v1988 = vunpack.c.h.b16 %v1206
        %v1989 = vunpack.c.l.b16 %v1207
        %v1990 = vunpack.c.h.b16 %v1207
        %v1991 = vunpack.c.l.b16 %v1208
        %v1992 = vunpack.c.h.b16 %v1208
        %v1993 = vunpack.c.l.b16 %v1209
        %v1994 = vunpack.c.h.b16 %v1209
        %v1995 = vunpack.c.l.b16 %v1210
        %v1996 = vunpack.c.h.b16 %v1210
        %v1997 = vunpack.c.l.b16 %v1211
        %v1998 = vunpack.c.h.b16 %v1211
        %v1999 = vunpack.c.l.b16 %v1212
        %v2000 = vunpack.c.h.b16 %v1212
        %v2001 = vunpack.c.l.b16 %v1213
        %v2002 = vunpack.c.h.b16 %v1213
        %v2003 = vunpack.c.l.b16 %v1214
        %v2004 = vunpack.c.h.b16 %v1214
        %v2005 = vunpack.c.l.b16 %v1215
        %v2006 = vunpack.c.h.b16 %v1215
        %v2007 = vunpack.c.l.b16 %v1216
        %v2008 = vunpack.c.h.b16 %v1216
        %v2009 = vunpack.c.l.b16 %v1217
        %v2010 = vunpack.c.h.b16 %v1217
        %v2011 = vunpack.c.l.b16 %v1218
        %v2012 = vunpack.c.h.b16 %v1218
        %v2013 = vunpack.c.l.b16 %v1219
        %v2014 = vunpack.c.h.b16 %v1219
        %v2015 = vunpack.c.l.b16 %v1220
        %v2016 = vunpack.c.h.b16 %v1220
        %v2017 = vunpack.c.l.b16 %v1221
        %v2018 = vunpack.c.h.b16 %v1221
        %v2019 = vunpack.c.l.b16 %v1222
        %v2020 = vunpack.c.h.b16 %v1222
        %v2021 = vunpack.c.l.b16 %v1223
        %v2022 = vunpack.c.h.b16 %v1223
        %v2023 = vunpack.c.l.b16 %v1224
        %v2024 = vunpack.c.h.b16 %v1224
        %v2025 = vunpack.c.l.b16 %v1225
        %v2026 = vunpack.c.h.b16 %v1225
        %v2027 = vunpack.c.l.b16 %v1226
        %v2028 = vunpack.c.h.b16 %v1226
        %v2029 = vunpack.c.l.b16 %v1227
        %v2030 = vunpack.c.h.b16 %v1227
        %v2031 = vunpack.c.l.b16 %v1228
        %v2032 = vunpack.c.h.b16 %v1228
        %v2033 = vunpack.c.l.b16 %v1229
        %v2034 = vunpack.c.h.b16 %v1229
        %v2035 = vunpack.c.l.b16 %v1230
        %v2036 = vunpack.c.h.b16 %v1230
        %v2037 = vunpack.c.l.b16 %v1231
        %v2038 = vunpack.c.h.b16 %v1231
        %v2039 = vunpack.c.l.b16 %v1232
        %v2040 = vunpack.c.h.b16 %v1232
        %v2041 = vunpack.c.l.b16 %v1233
        %v2042 = vunpack.c.h.b16 %v1233
        %v2043 = vunpack.c.l.b16 %v1234
        %v2044 = vunpack.c.h.b16 %v1234
        %v2045 = vunpack.c.l.b16 %v1235
        %v2046 = vunpack.c.h.b16 %v1235
        %v2047 = vunpack.c.l.b16 %v1236
        %v2048 = vunpack.c.h.b16 %v1236
        %v2049 = vunpack.c.l.b16 %v1237
        %v2050 = vunpack.c.h.b16 %v1237
        %v2051 = vunpack.c.l.b16 %v1238
        %v2052 = vunpack.c.h.b16 %v1238
        %v2053 = vunpack.c.l.b16 %v1239
        %v2054 = vunpack.c.h.b16 %v1239
        %v2055 = vunpack.c.l.b16 %v1240
        %v2056 = vunpack.c.h.b16 %v1240
        %v2057 = vunpack.c.l.b16 %v1241
        %v2058 = vunpack.c.h.b16 %v1241
        %v2059 = vunpack.c.l.b16 %v1242
        %v2060 = vunpack.c.h.b16 %v1242
        %v2061 = vunpack.c.l.b16 %v1243
        %v2062 = vunpack.c.h.b16 %v1243
        %v2063 = vunpack.c.l.b16 %v1244
        %v2064 = vunpack.c.h.b16 %v1244
        %v2065 = vunpack.c.l.b16 %v1245
        %v2066 = vunpack.c.h.b16 %v1245
        %v2067 = vunpack.c.l.b16 %v1246
        %v2068 = vunpack.c.h.b16 %v1246
        %v2069 = vunpack.c.l.b16 %v1247
        %v2070 = vunpack.c.h.b16 %v1247
        %v2071 = vunpack.c.l.b16 %v1248
        %v2072 = vunpack.c.h.b16 %v1248
        %v2073 = vunpack.c.l.b16 %v1249
        %v2074 = vunpack.c.h.b16 %v1249
        %v2075 = vunpack.c.l.b16 %v1250
        %v2076 = vunpack.c.h.b16 %v1250
        %v2077 = vunpack.c.l.b16 %v1251
        %v2078 = vunpack.c.h.b16 %v1251
        %v2079 = vunpack.c.l.b16 %v1252
        %v2080 = vunpack.c.h.b16 %v1252
        %v2081 = vunpack.c.l.b16 %v1253
        %v2082 = vunpack.c.h.b16 %v1253
        %v2083 = vunpack.c.l.b16 %v1254
        %v2084 = vunpack.c.h.b16 %v1254
        %v2085 = vunpack.c.l.b16 %v1255
        %v2086 = vunpack.c.h.b16 %v1255
        %v2087 = vunpack.c.l.b16 %v1256
        %v2088 = vunpack.c.h.b16 %v1256
        %v2089 = vunpack.c.l.b16 %v1257
        %v2090 = vunpack.c.h.b16 %v1257
        %v2091 = vunpack.c.l.b16 %v1258
        %v2092 = vunpack.c.h.b16 %v1258
        %v2093 = vunpack.c.l.b16 %v1259
        %v2094 = vunpack.c.h.b16 %v1259
        %v2095 = vunpack.c.l.b16 %v1260
        %v2096 = vunpack.c.h.b16 %v1260
        %v2097 = vunpack.c.l.b16 %v1261
        %v2098 = vunpack.c.h.b16 %v1261
        %v2099 = vunpack.c.l.b16 %v1262
        %v2100 = vunpack.c.h.b16 %v1262
        %v2101 = vunpack.c.l.b16 %v1263
        %v2102 = vunpack.c.h.b16 %v1263
        %v2103 = vunpack.c.l.b16 %v1264
        %v2104 = vunpack.c.h.b16 %v1264
        %v2105 = vunpack.c.l.b16 %v1265
        %v2106 = vunpack.c.h.b16 %v1265
        %v2107 = vunpack.c.l.b16 %v1266
        %v2108 = vunpack.c.h.b16 %v1266
        %v2109 = vpack.c.b16 %v1605, %v1597
        %v2110 = vpack.c.b16 %v1606, %v1598
        %v2111 = vpack.c.b16 %v1607, %v1599
        %v2112 = vpack.c.b16 %v1608, %v1600
        %v2113 = vpack.c.b16 %v1609, %v1601
        %v2114 = vpack.c.b16 %v1610, %v1602
        %v2115 = vpack.c.b16 %v1611, %v1603
        %v2116 = vpack.c.b16 %v1612, %v1604
        %v2117 = vpack.c.b16 %v1621, %v1613
        %v2118 = vpack.c.b16 %v1622, %v1614
        %v2119 = vpack.c.b16 %v1623, %v1615
        %v2120 = vpack.c.b16 %v1624, %v1616
        %v2121 = vpack.c.b16 %v1625, %v1617
        %v2122 = vpack.c.b16 %v1626, %v1618
        %v2123 = vpack.c.b16 %v1627, %v1619
        %v2124 = vpack.c.b16 %v1628, %v1620
        %v2125 = vpack.c.b16 %v1637, %v1629
        %v2126 = vpack.c.b16 %v1638, %v1630
        %v2127 = vpack.c.b16 %v1639, %v1631
        %v2128 = vpack.c.b16 %v1640, %v1632
        %v2129 = vpack.c.b16 %v1641, %v1633
        %v2130 = vpack.c.b16 %v1642, %v1634
        %v2131 = vpack.c.b16 %v1643, %v1635
        %v2132 = vpack.c.b16 %v1644, %v1636
        %v2133 = vpack.c.b16 %v1653, %v1645
        %v2134 = vpack.c.b16 %v1654, %v1646
        %v2135 = vpack.c.b16 %v1655, %v1647
        %v2136 = vpack.c.b16 %v1656, %v1648
        %v2137 = vpack.c.b16 %v1657, %v1649
        %v2138 = vpack.c.b16 %v1658, %v1650
        %v2139 = vpack.c.b16 %v1659, %v1651
        %v2140 = vpack.c.b16 %v1660, %v1652
        %v2141 = vpack.c.b16 %v1669, %v1661
        %v2142 = vpack.c.b16 %v1670, %v1662
        %v2143 = vpack.c.b16 %v1671, %v1663
        %v2144 = vpack.c.b16 %v1672, %v1664
        %v2145 = vpack.c.b16 %v1673, %v1665
        %v2146 = vpack.c.b16 %v1674, %v1666
        %v2147 = vpack.c.b16 %v1675, %v1667
        %v2148 = vpack.c.b16 %v1676, %v1668
        %v2149 = vpack.c.b16 %v1685, %v1677
        %v2150 = vpack.c.b16 %v1686, %v1678
        %v2151 = vpack.c.b16 %v1687, %v1679
        %v2152 = vpack.c.b16 %v1688, %v1680
        %v2153 = vpack.c.b16 %v1689, %v1681
        %v2154 = vpack.c.b16 %v1690, %v1682
        %v2155 = vpack.c.b16 %v1691, %v1683
        %v2156 = vpack.c.b16 %v1692, %v1684
        %v2157 = vpack.c.b16 %v1701, %v1693
        %v2158 = vpack.c.b16 %v1702, %v1694
        %v2159 = vpack.c.b16 %v1703, %v1695
        %v2160 = vpack.c.b16 %v1704, %v1696
        %v2161 = vpack.c.b16 %v1705, %v1697
        %v2162 = vpack.c.b16 %v1706, %v1698
        %v2163 = vpack.c.b16 %v1707, %v1699
        %v2164 = vpack.c.b16 %v1708, %v1700
        %v2165 = vpack.c.b16 %v1717, %v1709
        %v2166 = vpack.c.b16 %v1718, %v1710
        %v2167 = vpack.c.b16 %v1719, %v1711
        %v2168 = vpack.c.b16 %v1720, %v1712
        %v2169 = vpack.c.b16 %v1721, %v1713
        %v2170 = vpack.c.b16 %v1722, %v1714
        %v2171 = vpack.c.b16 %v1723, %v1715
        %v2172 = vpack.c.b16 %v1724, %v1716
        %v2173 = vpack.c.b16 %v1733, %v1725
        %v2174 = vpack.c.b16 %v1734, %v1726
        %v2175 = vpack.c.b16 %v1735, %v1727
        %v2176 = vpack.c.b16 %v1736, %v1728
        %v2177 = vpack.c.b16 %v1737, %v1729
        %v2178 = vpack.c.b16 %v1738, %v1730
        %v2179 = vpack.c.b16 %v1739, %v1731
        %v2180 = vpack.c.b16 %v1740, %v1732
        %v2181 = vpack.c.b16 %v1749, %v1741
        %v2182 = vpack.c.b16 %v1750, %v1742
        %v2183 = vpack.c.b16 %v1751, %v1743
        %v2184 = vpack.c.b16 %v1752, %v1744
        %v2185 = vpack.c.b16 %v1753, %v1745
        %v2186 = vpack.c.b16 %v1754, %v1746
        %v2187 = vpack.c.b16 %v1755, %v1747
        %v2188 = vpack.c.b16 %v1756, %v1748
        %v2189 = vpack.c.b16 %v1765, %v1757
        %v2190 = vpack.c.b16 %v1766, %v1758
        %v2191 = vpack.c.b16 %v1767, %v1759
        %v2192 = vpack.c.b16 %v1768, %v1760
        %v2193 = vpack.c.b16 %v1769, %v1761
        %v2194 = vpack.c.b16 %v1770, %v1762
        %v2195 = vpack.c.b16 %v1771, %v1763
        %v2196 = vpack.c.b16 %v1772, %v1764
        %v2197 = vpack.c.b16 %v1781, %v1773
        %v2198 = vpack.c.b16 %v1782, %v1774
        %v2199 = vpack.c.b16 %v1783, %v1775
        %v2200 = vpack.c.b16 %v1784, %v1776
        %v2201 = vpack.c.b16 %v1785, %v1777
        %v2202 = vpack.c.b16 %v1786, %v1778
        %v2203 = vpack.c.b16 %v1787, %v1779
        %v2204 = vpack.c.b16 %v1788, %v1780
        %v2205 = vpack.c.b16 %v1797, %v1789
        %v2206 = vpack.c.b16 %v1798, %v1790
        %v2207 = vpack.c.b16 %v1799, %v1791
        %v2208 = vpack.c.b16 %v1800, %v1792
        %v2209 = vpack.c.b16 %v1801, %v1793
        %v2210 = vpack.c.b16 %v1802, %v1794
        %v2211 = vpack.c.b16 %v1803, %v1795
        %v2212 = vpack.c.b16 %v1804, %v1796
        %v2213 = vpack.c.b16 %v1813, %v1805
        %v2214 = vpack.c.b16 %v1814, %v1806
        %v2215 = vpack.c.b16 %v1815, %v1807
        %v2216 = vpack.c.b16 %v1816, %v1808
        %v2217 = vpack.c.b16 %v1817, %v1809
        %v2218 = vpack.c.b16 %v1818, %v1810
        %v2219 = vpack.c.b16 %v1819, %v1811
        %v2220 = vpack.c.b16 %v1820, %v1812
        %v2221 = vpack.c.b16 %v1829, %v1821
        %v2222 = vpack.c.b16 %v1830, %v1822
        %v2223 = vpack.c.b16 %v1831, %v1823
        %v2224 = vpack.c.b16 %v1832, %v1824
        %v2225 = vpack.c.b16 %v1833, %v1825
        %v2226 = vpack.c.b16 %v1834, %v1826
        %v2227 = vpack.c.b16 %v1835, %v1827
        %v2228 = vpack.c.b16 %v1836, %v1828
        %v2229 = vpack.c.b16 %v1845, %v1837
        %v2230 = vpack.c.b16 %v1846, %v1838
        %v2231 = vpack.c.b16 %v1847, %v1839
        %v2232 = vpack.c.b16 %v1848, %v1840
        %v2233 = vpack.c.b16 %v1849, %v1841
        %v2234 = vpack.c.b16 %v1850, %v1842
        %v2235 = vpack.c.b16 %v1851, %v1843
        %v2236 = vpack.c.b16 %v1852, %v1844
        %v2237 = vpack.c.b16 %v1861, %v1853
        %v2238 = vpack.c.b16 %v1862, %v1854
        %v2239 = vpack.c.b16 %v1863, %v1855
        %v2240 = vpack.c.b16 %v1864, %v1856
        %v2241 = vpack.c.b16 %v1865, %v1857
        %v2242 = vpack.c.b16 %v1866, %v1858
        %v2243 = vpack.c.b16 %v1867, %v1859
        %v2244 = vpack.c.b16 %v1868, %v1860
        %v2245 = vpack.c.b16 %v1877, %v1869
        %v2246 = vpack.c.b16 %v1878, %v1870
        %v2247 = vpack.c.b16 %v1879, %v1871
        %v2248 = vpack.c.b16 %v1880, %v1872
        %v2249 = vpack.c.b16 %v1881, %v1873
        %v2250 = vpack.c.b16 %v1882, %v1874
        %v2251 = vpack.c.b16 %v1883, %v1875
        %v2252 = vpack.c.b16 %v1884, %v1876
        %v2253 = vpack.c.b16 %v1893, %v1885
        %v2254 = vpack.c.b16 %v1894, %v1886
        %v2255 = vpack.c.b16 %v1895, %v1887
        %v2256 = vpack.c.b16 %v1896, %v1888
        %v2257 = vpack.c.b16 %v1897, %v1889
        %v2258 = vpack.c.b16 %v1898, %v1890
        %v2259 = vpack.c.b16 %v1899, %v1891
        %v2260 = vpack.c.b16 %v1900, %v1892
        %v2261 = vpack.c.b16 %v1909, %v1901
        %v2262 = vpack.c.b16 %v1910, %v1902
        %v2263 = vpack.c.b16 %v1911, %v1903
        %v2264 = vpack.c.b16 %v1912, %v1904
        %v2265 = vpack.c.b16 %v1913, %v1905
        %v2266 = vpack.c.b16 %v1914, %v1906
        %v2267 = vpack.c.b16 %v1915, %v1907
        %v2268 = vpack.c.b16 %v1916, %v1908
        %v2269 = vpack.c.b16 %v1925, %v1917
        %v2270 = vpack.c.b16 %v1926, %v1918
        %v2271 = vpack.c.b16 %v1927, %v1919
        %v2272 = vpack.c.b16 %v1928, %v1920
        %v2273 = vpack.c.b16 %v1929, %v1921
        %v2274 = vpack.c.b16 %v1930, %v1922
        %v2275 = vpack.c.b16 %v1931, %v1923
        %v2276 = vpack.c.b16 %v1932, %v1924
        %v2277 = vpack.c.b16 %v1941, %v1933
        %v2278 = vpack.c.b16 %v1942, %v1934
        %v2279 = vpack.c.b16 %v1943, %v1935
        %v2280 = vpack.c.b16 %v1944, %v1936
        %v2281 = vpack.c.b16 %v1945, %v1937
        %v2282 = vpack.c.b16 %v1946, %v1938
        %v2283 = vpack.c.b16 %v1947, %v1939
        %v2284 = vpack.c.b16 %v1948, %v1940
        %v2285 = vpack.c.b16 %v1957, %v1949
        %v2286 = vpack.c.b16 %v1958, %v1950
        %v2287 = vpack.c.b16 %v1959, %v1951
        %v2288 = vpack.c.b16 %v1960, %v1952
        %v2289 = vpack.c.b16 %v1961, %v1953
        %v2290 = vpack.c.b16 %v1962, %v1954
        %v2291 = vpack.c.b16 %v1963, %v1955
        %v2292 = vpack.c.b16 %v1964, %v1956
        %v2293 = vpack.c.b16 %v1973, %v1965
        %v2294 = vpack.c.b16 %v1974, %v1966
        %v2295 = vpack.c.b16 %v1975, %v1967
        %v2296 = vpack.c.b16 %v1976, %v1968
        %v2297 = vpack.c.b16 %v1977, %v1969
        %v2298 = vpack.c.b16 %v1978, %v1970
        %v2299 = vpack.c.b16 %v1979, %v1971
        %v2300 = vpack.c.b16 %v1980, %v1972
        %v2301 = vpack.c.b16 %v1989, %v1981
        %v2302 = vpack.c.b16 %v1990, %v1982
        %v2303 = vpack.c.b16 %v1991, %v1983
        %v2304 = vpack.c.b16 %v1992, %v1984
        %v2305 = vpack.c.b16 %v1993, %v1985
        %v2306 = vpack.c.b16 %v1994, %v1986
        %v2307 = vpack.c.b16 %v1995, %v1987
        %v2308 = vpack.c.b16 %v1996, %v1988
        %v2309 = vpack.c.b16 %v2005, %v1997
        %v2310 = vpack.c.b16 %v2006, %v1998
        %v2311 = vpack.c.b16 %v2007, %v1999
        %v2312 = vpack.c.b16 %v2008, %v2000
        %v2313 = vpack.c.b16 %v2009, %v2001
        %v2314 = vpack.c.b16 %v2010, %v2002
        %v2315 = vpack.c.b16 %v2011, %v2003
        %v2316 = vpack.c.b16 %v2012, %v2004
        %v2317 = vpack.c.b16 %v2021, %v2013
        %v2318 = vpack.c.b16 %v2022, %v2014
        %v2319 = vpack.c.b16 %v2023, %v2015
        %v2320 = vpack.c.b16 %v2024, %v2016
        %v2321 = vpack.c.b16 %v2025, %v2017
        %v2322 = vpack.c.b16 %v2026, %v2018
        %v2323 = vpack.c.b16 %v2027, %v2019
        %v2324 = vpack.c.b16 %v2028, %v2020
        %v2325 = vpack.c.b16 %v2037, %v2029
        %v2326 = vpack.c.b16 %v2038, %v2030
        %v2327 = vpack.c.b16 %v2039, %v2031
        %v2328 = vpack.c.b16 %v2040, %v2032
        %v2329 = vpack.c.b16 %v2041, %v2033
        %v2330 = vpack.c.b16 %v2042, %v2034
        %v2331 = vpack.c.b16 %v2043, %v2035
        %v2332 = vpack.c.b16 %v2044, %v2036
        %v2333 = vpack.c.b16 %v2053, %v2045
        %v2334 = vpack.c.b16 %v2054, %v2046
        %v2335 = vpack.c.b16 %v2055, %v2047
        %v2336 = vpack.c.b16 %v2056, %v2048
        %v2337 = vpack.c.b16 %v2057, %v2049
        %v2338 = vpack.c.b16 %v2058, %v2050
        %v2339 = vpack.c.b16 %v2059, %v2051
        %v2340 = vpack.c.b16 %v2060, %v2052
        %v2341 = vpack.c.b16 %v2069, %v2061
        %v2342 = vpack.c.b16 %v2070, %v2062
        %v2343 = vpack.c.b16 %v2071, %v2063
        %v2344 = vpack.c.b16 %v2072, %v2064
        %v2345 = vpack.c.b16 %v2073, %v2065
        %v2346 = vpack.c.b16 %v2074, %v2066
        %v2347 = vpack.c.b16 %v2075, %v2067
        %v2348 = vpack.c.b16 %v2076, %v2068
        %v2349 = vpack.c.b16 %v2085, %v2077
        %v2350 = vpack.c.b16 %v2086, %v2078
        %v2351 = vpack.c.b16 %v2087, %v2079
        %v2352 = vpack.c.b16 %v2088, %v2080
        %v2353 = vpack.c.b16 %v2089, %v2081
        %v2354 = vpack.c.b16 %v2090, %v2082
        %v2355 = vpack.c.b16 %v2091, %v2083
        %v2356 = vpack.c.b16 %v2092, %v2084
        %v2357 = vpack.c.b16 %v2101, %v2093
        %v2358 = vpack.c.b16 %v2102, %v2094
        %v2359 = vpack.c.b16 %v2103, %v2095
        %v2360 = vpack.c.b16 %v2104, %v2096
        %v2361 = vpack.c.b16 %v2105, %v2097
        %v2362 = vpack.c.b16 %v2106, %v2098
        %v2363 = vpack.c.b16 %v2107, %v2099
        %v2364 = vpack.c.b16 %v2108, %v2100
        %2621 = vmatprep.subr.bf16.mxu0 %v2110
        %2622 = vmatpush1.bf16.msra.mxu0 %v2109
        %2623 = vmatprep.subr.bf16.mxu0 %v2118
        %2624 = vmatpush1.bf16.msra.mxu0 %v2117
        %2625 = vmatprep.subr.bf16.mxu0 %v2126
        %2626 = vmatpush1.bf16.msra.mxu0 %v2125
        %2627 = vmatprep.subr.bf16.mxu0 %v2134
        %2628 = vmatpush1.bf16.msra.mxu0 %v2133
        %2629 = vmatprep.subr.bf16.mxu0 %v2142
        %2630 = vmatpush1.bf16.msra.mxu0 %v2141
        %2631 = vmatprep.subr.bf16.mxu0 %v2150
        %2632 = vmatpush1.bf16.msra.mxu0 %v2149
        %2633 = vmatprep.subr.bf16.mxu0 %v2158
        %2634 = vmatpush1.bf16.msra.mxu0 %v2157
        %2635 = vmatprep.subr.bf16.mxu0 %v2166
        %2636 = vmatpush1.bf16.msra.mxu0 %v2165
        %2637 = vmatprep.subr.bf16.mxu0 %v2174
        %2638 = vmatpush1.bf16.msra.mxu0 %v2173
        %2639 = vmatprep.subr.bf16.mxu0 %v2182
        %2640 = vmatpush1.bf16.msra.mxu0 %v2181
        %2641 = vmatprep.subr.bf16.mxu0 %v2190
        %2642 = vmatpush1.bf16.msra.mxu0 %v2189
        %2643 = vmatprep.subr.bf16.mxu0 %v2198
        %2644 = vmatpush1.bf16.msra.mxu0 %v2197
        %2645 = vmatprep.subr.bf16.mxu0 %v2206
        %2646 = vmatpush1.bf16.msra.mxu0 %v2205
        %2647 = vmatprep.subr.bf16.mxu0 %v2214
        %2648 = vmatpush1.bf16.msra.mxu0 %v2213
        %2649 = vmatprep.subr.bf16.mxu0 %v2222
        %2650 = vmatpush1.bf16.msra.mxu0 %v2221
        %2651 = vmatprep.subr.bf16.mxu0 %v2230
        %2652 = vmatpush1.bf16.msra.mxu0 %v2229
        %2653 = vmatprep.mubr.bf16.mxu0 %v1310
        %2654 = vmatmul.mubr.bf16.gmra.mrb[0].mxu0 %v1309
        %v2655 = vpop.f32.mrb[0].mxu0
        %v2656 = vadd.f32 0.0, %v2655
        %v2657 = vpop.f32.mrb[0].mxu0
        %v2658 = vadd.f32 0.0, %v2657
        %v2659 = vpop.f32.mrb[0].mxu0
        %v2660 = vadd.f32 0.0, %v2659
        %v2661 = vpop.f32.mrb[0].mxu0
        %v2662 = vadd.f32 0.0, %v2661
        %2663 = vmatprep.mubr.bf16.mxu0 %v1314
        %2664 = vmatmul.mubr.bf16.gmra.mrb[0].mxu0 %v1313
        %v2665 = vpop.f32.mrb[0].mxu0
        %v2666 = vadd.f32 0.0, %v2665
        %v2667 = vpop.f32.mrb[0].mxu0
        %v2668 = vadd.f32 0.0, %v2667
        %v2669 = vpop.f32.mrb[0].mxu0
        %v2670 = vadd.f32 0.0, %v2669
        %v2671 = vpop.f32.mrb[0].mxu0
        %v2672 = vadd.f32 0.0, %v2671
        %2673 = vmatprep.mubr.bf16.mxu0 %v1318
        %2674 = vmatmul.mubr.bf16.gmra.mrb[0].mxu0 %v1317
        %v2675 = vpop.f32.mrb[0].mxu0
        %v2676 = vadd.f32 0.0, %v2675
        %v2677 = vpop.f32.mrb[0].mxu0
        %v2678 = vadd.f32 0.0, %v2677
        %v2679 = vpop.f32.mrb[0].mxu0
        %v2680 = vadd.f32 0.0, %v2679
        %v2681 = vpop.f32.mrb[0].mxu0
        %v2682 = vadd.f32 0.0, %v2681
        %2683 = vmatprep.mubr.bf16.mxu0 %v1322
        %2684 = vmatmul.mubr.bf16.gmra.mrb[0].mxu0 %v1321
        %v2685 = vpop.f32.mrb[0].mxu0
        %v2686 = vadd.f32 0.0, %v2685
        %v2687 = vpop.f32.mrb[0].mxu0
        %v2688 = vadd.f32 0.0, %v2687
        %v2689 = vpop.f32.mrb[0].mxu0
        %v2690 = vpop.f32.mrb[0].mxu0
        %2691 = vdwg.mxu0
        %2692 = vmatprep.subr.bf16.mxu0 %v2238
        %2693 = vmatpush1.bf16.msra.mxu0 %v2237
        %2694 = vmatprep.subr.bf16.mxu0 %v2246
        %2695 = vmatpush1.bf16.msra.mxu0 %v2245
        %2696 = vmatprep.subr.bf16.mxu0 %v2254
        %2697 = vmatpush1.bf16.msra.mxu0 %v2253
        %2698 = vmatprep.subr.bf16.mxu0 %v2262
        %2699 = vmatpush1.bf16.msra.mxu0 %v2261
        %2700 = vmatprep.subr.bf16.mxu0 %v2270
        %2701 = vmatpush1.bf16.msra.mxu0 %v2269
        %2702 = vmatprep.subr.bf16.mxu0 %v2278
        %2703 = vmatpush1.bf16.msra.mxu0 %v2277
        %2704 = vmatprep.subr.bf16.mxu0 %v2286
        %2705 = vmatpush1.bf16.msra.mxu0 %v2285
        %2706 = vmatprep.subr.bf16.mxu0 %v2294
        %2707 = vmatpush1.bf16.msra.mxu0 %v2293
        %2708 = vmatprep.subr.bf16.mxu0 %v2302
        %2709 = vmatpush1.bf16.msra.mxu0 %v2301
        %2710 = vmatprep.subr.bf16.mxu0 %v2310
        %2711 = vmatpush1.bf16.msra.mxu0 %v2309
        %2712 = vmatprep.subr.bf16.mxu0 %v2318
        %2713 = vmatpush1.bf16.msra.mxu0 %v2317
        %2714 = vmatprep.subr.bf16.mxu0 %v2326
        %2715 = vmatpush1.bf16.msra.mxu0 %v2325
        %2716 = vmatprep.subr.bf16.mxu0 %v2334
        %2717 = vmatpush1.bf16.msra.mxu0 %v2333
        %2718 = vmatprep.subr.bf16.mxu0 %v2342
        %2719 = vmatpush1.bf16.msra.mxu0 %v2341
        %2720 = vmatprep.subr.bf16.mxu0 %v2350
        %2721 = vmatpush1.bf16.msra.mxu0 %v2349
        %2722 = vmatprep.subr.bf16.mxu0 %v2358
        %2723 = vmatpush1.bf16.msra.mxu0 %v2357
        %2724 = vmatprep.mubr.bf16.mxu0 %v1312
        %2725 = vmatmul.mubr.bf16.gmra.mrb[0].mxu0 %v1311
        %v2726 = vpop.f32.mrb[0].mxu0
        %v2727 = vadd.f32 %v2656, %v2726
        %v2728 = vpop.f32.mrb[0].mxu0
        %v2729 = vadd.f32 %v2658, %v2728
        %v2730 = vpop.f32.mrb[0].mxu0
        %v2731 = vadd.f32 %v2660, %v2730
        %v2732 = vpop.f32.mrb[0].mxu0
        %v2733 = vadd.f32 %v2662, %v2732
        %2734 = vmatprep.mubr.bf16.mxu0 %v1316
        %2735 = vmatmul.mubr.bf16.gmra.mrb[0].mxu0 %v1315
        %v2736 = vpop.f32.mrb[0].mxu0
        %v2737 = vadd.f32 %v2666, %v2736
        %v2738 = vpop.f32.mrb[0].mxu0
        %v2739 = vadd.f32 %v2668, %v2738
        %v2740 = vpop.f32.mrb[0].mxu0
        %v2741 = vadd.f32 %v2670, %v2740
        %v2742 = vpop.f32.mrb[0].mxu0
        %v2743 = vadd.f32 %v2672, %v2742
        %2744 = vmatprep.mubr.bf16.mxu0 %v1320
        %2745 = vmatmul.mubr.bf16.gmra.mrb[0].mxu0 %v1319
        %v2746 = vpop.f32.mrb[0].mxu0
        %v2747 = vadd.f32 %v2676, %v2746
        %v2748 = vpop.f32.mrb[0].mxu0
        %v2749 = vadd.f32 %v2678, %v2748
        %v2750 = vpop.f32.mrb[0].mxu0
        %v2751 = vadd.f32 %v2680, %v2750
        %v2752 = vpop.f32.mrb[0].mxu0
        %v2753 = vadd.f32 %v2682, %v2752
        %2754 = vmatprep.mubr.bf16.mxu0 %v1324
        %2755 = vmatmul.mubr.bf16.gmra.mrb[0].mxu0 %v1323
        %v2756 = vpop.f32.mrb[0].mxu0
        %v2757 = vadd.f32 %v2686, %v2756
        %v2758 = vpop.f32.mrb[0].mxu0
        %v2759 = vadd.f32 %v2688, %v2758
        %v2760 = vpop.f32.mrb[0].mxu0
        %v2761 = vpop.f32.mrb[0].mxu0
        %2762 = vdwg.mxu0
        %2763 = vmatprep.subr.bf16.mxu0 %v2112
        %2764 = vmatpush1.bf16.msra.mxu0 %v2111
        %2765 = vmatprep.subr.bf16.mxu0 %v2120
        %2766 = vmatpush1.bf16.msra.mxu0 %v2119
        %2767 = vmatprep.subr.bf16.mxu0 %v2128
        %2768 = vmatpush1.bf16.msra.mxu0 %v2127
        %2769 = vmatprep.subr.bf16.mxu0 %v2136
        %2770 = vmatpush1.bf16.msra.mxu0 %v2135
        %2771 = vmatprep.subr.bf16.mxu0 %v2144
        %2772 = vmatpush1.bf16.msra.mxu0 %v2143
        %2773 = vmatprep.subr.bf16.mxu0 %v2152
        %2774 = vmatpush1.bf16.msra.mxu0 %v2151
        %2775 = vmatprep.subr.bf16.mxu0 %v2160
        %2776 = vmatpush1.bf16.msra.mxu0 %v2159
        %2777 = vmatprep.subr.bf16.mxu0 %v2168
        %2778 = vmatpush1.bf16.msra.mxu0 %v2167
        %2779 = vmatprep.subr.bf16.mxu0 %v2176
        %2780 = vmatpush1.bf16.msra.mxu0 %v2175
        %2781 = vmatprep.subr.bf16.mxu0 %v2184
        %2782 = vmatpush1.bf16.msra.mxu0 %v2183
        %2783 = vmatprep.subr.bf16.mxu0 %v2192
        %2784 = vmatpush1.bf16.msra.mxu0 %v2191
        %2785 = vmatprep.subr.bf16.mxu0 %v2200
        %2786 = vmatpush1.bf16.msra.mxu0 %v2199
        %2787 = vmatprep.subr.bf16.mxu0 %v2208
        %2788 = vmatpush1.bf16.msra.mxu0 %v2207
        %2789 = vmatprep.subr.bf16.mxu0 %v2216
        %2790 = vmatpush1.bf16.msra.mxu0 %v2215
        %2791 = vmatprep.subr.bf16.mxu0 %v2224
        %2792 = vmatpush1.bf16.msra.mxu0 %v2223
        %2793 = vmatprep.subr.bf16.mxu0 %v2232
        %2794 = vmatpush1.bf16.msra.mxu0 %v2231
        %2795 = vmatprep.mubr.bf16.mxu0 %v1310
        %2796 = vmatmul.mubr.bf16.gmra.mrb[0].mxu0 %v1309
        %v2797 = vpop.f32.mrb[0].mxu0
        %v2798 = vadd.f32 0.0, %v2797
        %v2799 = vpop.f32.mrb[0].mxu0
        %v2800 = vadd.f32 0.0, %v2799
        %v2801 = vpop.f32.mrb[0].mxu0
        %v2802 = vadd.f32 0.0, %v2801
        %v2803 = vpop.f32.mrb[0].mxu0
        %v2804 = vadd.f32 0.0, %v2803
        %2805 = vmatprep.mubr.bf16.mxu0 %v1314
        %2806 = vmatmul.mubr.bf16.gmra.mrb[0].mxu0 %v1313
        %v2807 = vpop.f32.mrb[0].mxu0
        %v2808 = vadd.f32 0.0, %v2807
        %v2809 = vpop.f32.mrb[0].mxu0
        %v2810 = vadd.f32 0.0, %v2809
        %v2811 = vpop.f32.mrb[0].mxu0
        %v2812 = vadd.f32 0.0, %v2811
        %v2813 = vpop.f32.mrb[0].mxu0
        %v2814 = vadd.f32 0.0, %v2813
        %2815 = vmatprep.mubr.bf16.mxu0 %v1318
        %2816 = vmatmul.mubr.bf16.gmra.mrb[0].mxu0 %v1317
        %v2817 = vpop.f32.mrb[0].mxu0
        %v2818 = vadd.f32 0.0, %v2817
        %v2819 = vpop.f32.mrb[0].mxu0
        %v2820 = vadd.f32 0.0, %v2819
        %v2821 = vpop.f32.mrb[0].mxu0
        %v2822 = vadd.f32 0.0, %v2821
        %v2823 = vpop.f32.mrb[0].mxu0
        %v2824 = vadd.f32 0.0, %v2823
        %2825 = vmatprep.mubr.bf16.mxu0 %v1322
        %2826 = vmatmul.mubr.bf16.gmra.mrb[0].mxu0 %v1321
        %v2827 = vpop.f32.mrb[0].mxu0
        %v2828 = vadd.f32 0.0, %v2827
        %v2829 = vpop.f32.mrb[0].mxu0
        %v2830 = vadd.f32 0.0, %v2829
        %v2831 = vpop.f32.mrb[0].mxu0
        %v2832 = vpop.f32.mrb[0].mxu0
        %2833 = vdwg.mxu0
        %2834 = vmatprep.subr.bf16.mxu0 %v2240
        %2835 = vmatpush1.bf16.msra.mxu0 %v2239
        %2836 = vmatprep.subr.bf16.mxu0 %v2248
        %2837 = vmatpush1.bf16.msra.mxu0 %v2247
        %2838 = vmatprep.subr.bf16.mxu0 %v2256
        %2839 = vmatpush1.bf16.msra.mxu0 %v2255
        %2840 = vmatprep.subr.bf16.mxu0 %v2264
        %2841 = vmatpush1.bf16.msra.mxu0 %v2263
        %2842 = vmatprep.subr.bf16.mxu0 %v2272
        %2843 = vmatpush1.bf16.msra.mxu0 %v2271
        %2844 = vmatprep.subr.bf16.mxu0 %v2280
        %2845 = vmatpush1.bf16.msra.mxu0 %v2279
        %2846 = vmatprep.subr.bf16.mxu0 %v2288
        %2847 = vmatpush1.bf16.msra.mxu0 %v2287
        %2848 = vmatprep.subr.bf16.mxu0 %v2296
        %2849 = vmatpush1.bf16.msra.mxu0 %v2295
        %2850 = vmatprep.subr.bf16.mxu0 %v2304
        %2851 = vmatpush1.bf16.msra.mxu0 %v2303
        %2852 = vmatprep.subr.bf16.mxu0 %v2312
        %2853 = vmatpush1.bf16.msra.mxu0 %v2311
        %2854 = vmatprep.subr.bf16.mxu0 %v2320
        %2855 = vmatpush1.bf16.msra.mxu0 %v2319
        %2856 = vmatprep.subr.bf16.mxu0 %v2328
        %2857 = vmatpush1.bf16.msra.mxu0 %v2327
        %2858 = vmatprep.subr.bf16.mxu0 %v2336
        %2859 = vmatpush1.bf16.msra.mxu0 %v2335
        %2860 = vmatprep.subr.bf16.mxu0 %v2344
        %2861 = vmatpush1.bf16.msra.mxu0 %v2343
        %2862 = vmatprep.subr.bf16.mxu0 %v2352
        %2863 = vmatpush1.bf16.msra.mxu0 %v2351
        %2864 = vmatprep.subr.bf16.mxu0 %v2360
        %2865 = vmatpush1.bf16.msra.mxu0 %v2359
        %2866 = vmatprep.mubr.bf16.mxu0 %v1312
        %2867 = vmatmul.mubr.bf16.gmra.mrb[0].mxu0 %v1311
        %v2868 = vpop.f32.mrb[0].mxu0
        %v2869 = vadd.f32 %v2798, %v2868
        %v2870 = vpop.f32.mrb[0].mxu0
        %v2871 = vadd.f32 %v2800, %v2870
        %v2872 = vpop.f32.mrb[0].mxu0
        %v2873 = vadd.f32 %v2802, %v2872
        %v2874 = vpop.f32.mrb[0].mxu0
        %v2875 = vadd.f32 %v2804, %v2874
        %2876 = vmatprep.mubr.bf16.mxu0 %v1316
        %2877 = vmatmul.mubr.bf16.gmra.mrb[0].mxu0 %v1315
        %v2878 = vpop.f32.mrb[0].mxu0
        %v2879 = vadd.f32 %v2808, %v2878
        %v2880 = vpop.f32.mrb[0].mxu0
        %v2881 = vadd.f32 %v2810, %v2880
        %v2882 = vpop.f32.mrb[0].mxu0
        %v2883 = vadd.f32 %v2812, %v2882
        %v2884 = vpop.f32.mrb[0].mxu0
        %v2885 = vadd.f32 %v2814, %v2884
        %2886 = vmatprep.mubr.bf16.mxu0 %v1320
        %2887 = vmatmul.mubr.bf16.gmra.mrb[0].mxu0 %v1319
        %v2888 = vpop.f32.mrb[0].mxu0
        %v2889 = vadd.f32 %v2818, %v2888
        %v2890 = vpop.f32.mrb[0].mxu0
        %v2891 = vadd.f32 %v2820, %v2890
        %v2892 = vpop.f32.mrb[0].mxu0
        %v2893 = vadd.f32 %v2822, %v2892
        %v2894 = vpop.f32.mrb[0].mxu0
        %v2895 = vadd.f32 %v2824, %v2894
        %2896 = vmatprep.mubr.bf16.mxu0 %v1324
        %2897 = vmatmul.mubr.bf16.gmra.mrb[0].mxu0 %v1323
        %v2898 = vpop.f32.mrb[0].mxu0
        %v2899 = vadd.f32 %v2828, %v2898
        %v2900 = vpop.f32.mrb[0].mxu0
        %v2901 = vadd.f32 %v2830, %v2900
        %v2902 = vpop.f32.mrb[0].mxu0
        %v2903 = vpop.f32.mrb[0].mxu0
        %2904 = vdwg.mxu0
        %2905 = vmatprep.subr.bf16.mxu0 %v2114
        %2906 = vmatpush1.bf16.msra.mxu0 %v2113
        %2907 = vmatprep.subr.bf16.mxu0 %v2122
        %2908 = vmatpush1.bf16.msra.mxu0 %v2121
        %2909 = vmatprep.subr.bf16.mxu0 %v2130
        %2910 = vmatpush1.bf16.msra.mxu0 %v2129
        %2911 = vmatprep.subr.bf16.mxu0 %v2138
        %2912 = vmatpush1.bf16.msra.mxu0 %v2137
        %2913 = vmatprep.subr.bf16.mxu0 %v2146
        %2914 = vmatpush1.bf16.msra.mxu0 %v2145
        %2915 = vmatprep.subr.bf16.mxu0 %v2154
        %2916 = vmatpush1.bf16.msra.mxu0 %v2153
        %2917 = vmatprep.subr.bf16.mxu0 %v2162
        %2918 = vmatpush1.bf16.msra.mxu0 %v2161
        %2919 = vmatprep.subr.bf16.mxu0 %v2170
        %2920 = vmatpush1.bf16.msra.mxu0 %v2169
        %2921 = vmatprep.subr.bf16.mxu0 %v2178
        %2922 = vmatpush1.bf16.msra.mxu0 %v2177
        %2923 = vmatprep.subr.bf16.mxu0 %v2186
        %2924 = vmatpush1.bf16.msra.mxu0 %v2185
        %2925 = vmatprep.subr.bf16.mxu0 %v2194
        %2926 = vmatpush1.bf16.msra.mxu0 %v2193
        %2927 = vmatprep.subr.bf16.mxu0 %v2202
        %2928 = vmatpush1.bf16.msra.mxu0 %v2201
        %2929 = vmatprep.subr.bf16.mxu0 %v2210
        %2930 = vmatpush1.bf16.msra.mxu0 %v2209
        %2931 = vmatprep.subr.bf16.mxu0 %v2218
        %2932 = vmatpush1.bf16.msra.mxu0 %v2217
        %2933 = vmatprep.subr.bf16.mxu0 %v2226
        %2934 = vmatpush1.bf16.msra.mxu0 %v2225
        %2935 = vmatprep.subr.bf16.mxu0 %v2234
        %2936 = vmatpush1.bf16.msra.mxu0 %v2233
        %2937 = vmatprep.mubr.bf16.mxu0 %v1310
        %2938 = vmatmul.mubr.bf16.gmra.mrb[0].mxu0 %v1309
        %v2939 = vpop.f32.mrb[0].mxu0
        %v2940 = vadd.f32 0.0, %v2939
        %v2941 = vpop.f32.mrb[0].mxu0
        %v2942 = vadd.f32 0.0, %v2941
        %v2943 = vpop.f32.mrb[0].mxu0
        %v2944 = vadd.f32 0.0, %v2943
        %v2945 = vpop.f32.mrb[0].mxu0
        %v2946 = vadd.f32 0.0, %v2945
        %2947 = vmatprep.mubr.bf16.mxu0 %v1314
        %2948 = vmatmul.mubr.bf16.gmra.mrb[0].mxu0 %v1313
        %v2949 = vpop.f32.mrb[0].mxu0
        %v2950 = vadd.f32 0.0, %v2949
        %v2951 = vpop.f32.mrb[0].mxu0
        %v2952 = vadd.f32 0.0, %v2951
        %v2953 = vpop.f32.mrb[0].mxu0
        %v2954 = vadd.f32 0.0, %v2953
        %v2955 = vpop.f32.mrb[0].mxu0
        %v2956 = vadd.f32 0.0, %v2955
        %2957 = vmatprep.mubr.bf16.mxu0 %v1318
        %2958 = vmatmul.mubr.bf16.gmra.mrb[0].mxu0 %v1317
        %v2959 = vpop.f32.mrb[0].mxu0
        %v2960 = vadd.f32 0.0, %v2959
        %v2961 = vpop.f32.mrb[0].mxu0
        %v2962 = vadd.f32 0.0, %v2961
        %v2963 = vpop.f32.mrb[0].mxu0
        %v2964 = vadd.f32 0.0, %v2963
        %v2965 = vpop.f32.mrb[0].mxu0
        %v2966 = vadd.f32 0.0, %v2965
        %2967 = vmatprep.mubr.bf16.mxu0 %v1322
        %2968 = vmatmul.mubr.bf16.gmra.mrb[0].mxu0 %v1321
        %v2969 = vpop.f32.mrb[0].mxu0
        %v2970 = vadd.f32 0.0, %v2969
        %v2971 = vpop.f32.mrb[0].mxu0
        %v2972 = vadd.f32 0.0, %v2971
        %v2973 = vpop.f32.mrb[0].mxu0
        %v2974 = vpop.f32.mrb[0].mxu0
        %2975 = vdwg.mxu0
        %2976 = vmatprep.subr.bf16.mxu0 %v2242
        %2977 = vmatpush1.bf16.msra.mxu0 %v2241
        %2978 = vmatprep.subr.bf16.mxu0 %v2250
        %2979 = vmatpush1.bf16.msra.mxu0 %v2249
        %2980 = vmatprep.subr.bf16.mxu0 %v2258
        %2981 = vmatpush1.bf16.msra.mxu0 %v2257
        %2982 = vmatprep.subr.bf16.mxu0 %v2266
        %2983 = vmatpush1.bf16.msra.mxu0 %v2265
        %2984 = vmatprep.subr.bf16.mxu0 %v2274
        %2985 = vmatpush1.bf16.msra.mxu0 %v2273
        %2986 = vmatprep.subr.bf16.mxu0 %v2282
        %2987 = vmatpush1.bf16.msra.mxu0 %v2281
        %2988 = vmatprep.subr.bf16.mxu0 %v2290
        %2989 = vmatpush1.bf16.msra.mxu0 %v2289
        %2990 = vmatprep.subr.bf16.mxu0 %v2298
        %2991 = vmatpush1.bf16.msra.mxu0 %v2297
        %2992 = vmatprep.subr.bf16.mxu0 %v2306
        %2993 = vmatpush1.bf16.msra.mxu0 %v2305
        %2994 = vmatprep.subr.bf16.mxu0 %v2314
        %2995 = vmatpush1.bf16.msra.mxu0 %v2313
        %2996 = vmatprep.subr.bf16.mxu0 %v2322
        %2997 = vmatpush1.bf16.msra.mxu0 %v2321
        %2998 = vmatprep.subr.bf16.mxu0 %v2330
        %2999 = vmatpush1.bf16.msra.mxu0 %v2329
        %3000 = vmatprep.subr.bf16.mxu0 %v2338
        %3001 = vmatpush1.bf16.msra.mxu0 %v2337
        %3002 = vmatprep.subr.bf16.mxu0 %v2346
        %3003 = vmatpush1.bf16.msra.mxu0 %v2345
        %3004 = vmatprep.subr.bf16.mxu0 %v2354
        %3005 = vmatpush1.bf16.msra.mxu0 %v2353
        %3006 = vmatprep.subr.bf16.mxu0 %v2362
        %3007 = vmatpush1.bf16.msra.mxu0 %v2361
        %3008 = vmatprep.mubr.bf16.mxu0 %v1312
        %3009 = vmatmul.mubr.bf16.gmra.mrb[0].mxu0 %v1311
        %v3010 = vpop.f32.mrb[0].mxu0
        %v3011 = vadd.f32 %v2940, %v3010
        %v3012 = vpop.f32.mrb[0].mxu0
        %v3013 = vadd.f32 %v2942, %v3012
        %v3014 = vpop.f32.mrb[0].mxu0
        %v3015 = vadd.f32 %v2944, %v3014
        %v3016 = vpop.f32.mrb[0].mxu0
        %v3017 = vadd.f32 %v2946, %v3016
        %3018 = vmatprep.mubr.bf16.mxu0 %v1316
        %3019 = vmatmul.mubr.bf16.gmra.mrb[0].mxu0 %v1315
        %v3020 = vpop.f32.mrb[0].mxu0
        %v3021 = vadd.f32 %v2950, %v3020
        %v3022 = vpop.f32.mrb[0].mxu0
        %v3023 = vadd.f32 %v2952, %v3022
        %v3024 = vpop.f32.mrb[0].mxu0
        %v3025 = vadd.f32 %v2954, %v3024
        %v3026 = vpop.f32.mrb[0].mxu0
        %v3027 = vadd.f32 %v2956, %v3026
        %3028 = vmatprep.mubr.bf16.mxu0 %v1320
        %3029 = vmatmul.mubr.bf16.gmra.mrb[0].mxu0 %v1319
        %v3030 = vpop.f32.mrb[0].mxu0
        %v3031 = vadd.f32 %v2960, %v3030
        %v3032 = vpop.f32.mrb[0].mxu0
        %v3033 = vadd.f32 %v2962, %v3032
        %v3034 = vpop.f32.mrb[0].mxu0
        %v3035 = vadd.f32 %v2964, %v3034
        %v3036 = vpop.f32.mrb[0].mxu0
        %v3037 = vadd.f32 %v2966, %v3036
        %3038 = vmatprep.mubr.bf16.mxu0 %v1324
        %3039 = vmatmul.mubr.bf16.gmra.mrb[0].mxu0 %v1323
        %v3040 = vpop.f32.mrb[0].mxu0
        %v3041 = vadd.f32 %v2970, %v3040
        %v3042 = vpop.f32.mrb[0].mxu0
        %v3043 = vadd.f32 %v2972, %v3042
        %v3044 = vpop.f32.mrb[0].mxu0
        %v3045 = vpop.f32.mrb[0].mxu0
        %3046 = vdwg.mxu0
        %3047 = vmatprep.subr.bf16.mxu0 %v2116
        %3048 = vmatpush1.bf16.msra.mxu0 %v2115
        %3049 = vmatprep.subr.bf16.mxu0 %v2124
        %3050 = vmatpush1.bf16.msra.mxu0 %v2123
        %3051 = vmatprep.subr.bf16.mxu0 %v2132
        %3052 = vmatpush1.bf16.msra.mxu0 %v2131
        %3053 = vmatprep.subr.bf16.mxu0 %v2140
        %3054 = vmatpush1.bf16.msra.mxu0 %v2139
        %3055 = vmatprep.subr.bf16.mxu0 %v2148
        %3056 = vmatpush1.bf16.msra.mxu0 %v2147
        %3057 = vmatprep.subr.bf16.mxu0 %v2156
        %3058 = vmatpush1.bf16.msra.mxu0 %v2155
        %3059 = vmatprep.subr.bf16.mxu0 %v2164
        %3060 = vmatpush1.bf16.msra.mxu0 %v2163
        %3061 = vmatprep.subr.bf16.mxu0 %v2172
        %3062 = vmatpush1.bf16.msra.mxu0 %v2171
        %3063 = vmatprep.subr.bf16.mxu0 %v2180
        %3064 = vmatpush1.bf16.msra.mxu0 %v2179
        %3065 = vmatprep.subr.bf16.mxu0 %v2188
        %3066 = vmatpush1.bf16.msra.mxu0 %v2187
        %3067 = vmatprep.subr.bf16.mxu0 %v2196
        %3068 = vmatpush1.bf16.msra.mxu0 %v2195
        %3069 = vmatprep.subr.bf16.mxu0 %v2204
        %3070 = vmatpush1.bf16.msra.mxu0 %v2203
        %3071 = vmatprep.subr.bf16.mxu0 %v2212
        %3072 = vmatpush1.bf16.msra.mxu0 %v2211
        %3073 = vmatprep.subr.bf16.mxu0 %v2220
        %3074 = vmatpush1.bf16.msra.mxu0 %v2219
        %3075 = vmatprep.subr.bf16.mxu0 %v2228
        %3076 = vmatpush1.bf16.msra.mxu0 %v2227
        %3077 = vmatprep.subr.bf16.mxu0 %v2236
        %3078 = vmatpush1.bf16.msra.mxu0 %v2235
        %3079 = vmatprep.mubr.bf16.mxu0 %v1310
        %3080 = vmatmul.mubr.bf16.gmra.mrb[0].mxu0 %v1309
        %v3081 = vpop.f32.mrb[0].mxu0
        %v3082 = vadd.f32 0.0, %v3081
        %v3083 = vpop.f32.mrb[0].mxu0
        %v3084 = vadd.f32 0.0, %v3083
        %v3085 = vpop.f32.mrb[0].mxu0
        %v3086 = vadd.f32 0.0, %v3085
        %v3087 = vpop.f32.mrb[0].mxu0
        %v3088 = vadd.f32 0.0, %v3087
        %3089 = vmatprep.mubr.bf16.mxu0 %v1314
        %3090 = vmatmul.mubr.bf16.gmra.mrb[0].mxu0 %v1313
        %v3091 = vpop.f32.mrb[0].mxu0
        %v3092 = vadd.f32 0.0, %v3091
        %v3093 = vpop.f32.mrb[0].mxu0
        %v3094 = vadd.f32 0.0, %v3093
        %v3095 = vpop.f32.mrb[0].mxu0
        %v3096 = vadd.f32 0.0, %v3095
        %v3097 = vpop.f32.mrb[0].mxu0
        %v3098 = vadd.f32 0.0, %v3097
        %3099 = vmatprep.mubr.bf16.mxu0 %v1318
        %3100 = vmatmul.mubr.bf16.gmra.mrb[0].mxu0 %v1317
        %v3101 = vpop.f32.mrb[0].mxu0
        %v3102 = vadd.f32 0.0, %v3101
        %v3103 = vpop.f32.mrb[0].mxu0
        %v3104 = vadd.f32 0.0, %v3103
        %v3105 = vpop.f32.mrb[0].mxu0
        %v3106 = vadd.f32 0.0, %v3105
        %v3107 = vpop.f32.mrb[0].mxu0
        %v3108 = vadd.f32 0.0, %v3107
        %3109 = vmatprep.mubr.bf16.mxu0 %v1322
        %3110 = vmatmul.mubr.bf16.gmra.mrb[0].mxu0 %v1321
        %v3111 = vpop.f32.mrb[0].mxu0
        %v3112 = vadd.f32 0.0, %v3111
        %v3113 = vpop.f32.mrb[0].mxu0
        %v3114 = vadd.f32 0.0, %v3113
        %v3115 = vpop.f32.mrb[0].mxu0
        %v3116 = vpop.f32.mrb[0].mxu0
        %3117 = vdwg.mxu0
        %3118 = vmatprep.subr.bf16.mxu0 %v2244
        %3119 = vmatpush1.bf16.msra.mxu0 %v2243
        %3120 = vmatprep.subr.bf16.mxu0 %v2252
        %3121 = vmatpush1.bf16.msra.mxu0 %v2251
        %3122 = vmatprep.subr.bf16.mxu0 %v2260
        %3123 = vmatpush1.bf16.msra.mxu0 %v2259
        %3124 = vmatprep.subr.bf16.mxu0 %v2268
        %3125 = vmatpush1.bf16.msra.mxu0 %v2267
        %3126 = vmatprep.subr.bf16.mxu0 %v2276
        %3127 = vmatpush1.bf16.msra.mxu0 %v2275
        %3128 = vmatprep.subr.bf16.mxu0 %v2284
        %3129 = vmatpush1.bf16.msra.mxu0 %v2283
        %3130 = vmatprep.subr.bf16.mxu0 %v2292
        %3131 = vmatpush1.bf16.msra.mxu0 %v2291
        %3132 = vmatprep.subr.bf16.mxu0 %v2300
        %3133 = vmatpush1.bf16.msra.mxu0 %v2299
        %3134 = vmatprep.subr.bf16.mxu0 %v2308
        %3135 = vmatpush1.bf16.msra.mxu0 %v2307
        %3136 = vmatprep.subr.bf16.mxu0 %v2316
        %3137 = vmatpush1.bf16.msra.mxu0 %v2315
        %3138 = vmatprep.subr.bf16.mxu0 %v2324
        %3139 = vmatpush1.bf16.msra.mxu0 %v2323
        %3140 = vmatprep.subr.bf16.mxu0 %v2332
        %3141 = vmatpush1.bf16.msra.mxu0 %v2331
        %3142 = vmatprep.subr.bf16.mxu0 %v2340
        %3143 = vmatpush1.bf16.msra.mxu0 %v2339
        %3144 = vmatprep.subr.bf16.mxu0 %v2348
        %3145 = vmatpush1.bf16.msra.mxu0 %v2347
        %3146 = vmatprep.subr.bf16.mxu0 %v2356
        %3147 = vmatpush1.bf16.msra.mxu0 %v2355
        %3148 = vmatprep.subr.bf16.mxu0 %v2364
        %3149 = vmatpush1.bf16.msra.mxu0 %v2363
        %3150 = vmatprep.mubr.bf16.mxu0 %v1312
        %3151 = vmatmul.mubr.bf16.gmra.mrb[0].mxu0 %v1311
        %v3152 = vpop.f32.mrb[0].mxu0
        %v3153 = vadd.f32 %v3082, %v3152
        %v3154 = vpop.f32.mrb[0].mxu0
        %v3155 = vadd.f32 %v3084, %v3154
        %v3156 = vpop.f32.mrb[0].mxu0
        %v3157 = vadd.f32 %v3086, %v3156
        %v3158 = vpop.f32.mrb[0].mxu0
        %v3159 = vadd.f32 %v3088, %v3158
        %3160 = vmatprep.mubr.bf16.mxu0 %v1316
        %3161 = vmatmul.mubr.bf16.gmra.mrb[0].mxu0 %v1315
        %v3162 = vpop.f32.mrb[0].mxu0
        %v3163 = vadd.f32 %v3092, %v3162
        %v3164 = vpop.f32.mrb[0].mxu0
        %v3165 = vadd.f32 %v3094, %v3164
        %v3166 = vpop.f32.mrb[0].mxu0
        %v3167 = vadd.f32 %v3096, %v3166
        %v3168 = vpop.f32.mrb[0].mxu0
        %v3169 = vadd.f32 %v3098, %v3168
        %3170 = vmatprep.mubr.bf16.mxu0 %v1320
        %3171 = vmatmul.mubr.bf16.gmra.mrb[0].mxu0 %v1319
        %v3172 = vpop.f32.mrb[0].mxu0
        %v3173 = vadd.f32 %v3102, %v3172
        %v3174 = vpop.f32.mrb[0].mxu0
        %v3175 = vadd.f32 %v3104, %v3174
        %v3176 = vpop.f32.mrb[0].mxu0
        %v3177 = vadd.f32 %v3106, %v3176
        %v3178 = vpop.f32.mrb[0].mxu0
        %v3179 = vadd.f32 %v3108, %v3178
        %3180 = vmatprep.mubr.bf16.mxu0 %v1324
        %3181 = vmatmul.mubr.bf16.gmra.mrb[0].mxu0 %v1323
        %v3182 = vpop.f32.mrb[0].mxu0
        %v3183 = vadd.f32 %v3112, %v3182
        %v3184 = vpop.f32.mrb[0].mxu0
        %v3185 = vadd.f32 %v3114, %v3184
        %v3186 = vpop.f32.mrb[0].mxu0
        %v3187 = vpop.f32.mrb[0].mxu0
        %3188 = vdwg.mxu0
        %v3189 = vadd.f32 %v2727, %v2731
        %v3190 = vadd.f32 %v3189, %v2737
        %v3191 = vadd.f32 %v3190, %v2741
        %v3192 = vadd.f32 %v3191, %v2747
        %v3193 = vadd.f32 %v3192, %v2751
        %vm3194 = vcmask 1040384
        %v3195 = vsel %vm3194, %v2757, 0.0
        %v3196 = vadd.f32 %v3193, %v3195
        %v3197 = vrot.slane %v3196, 4
        %v3198 = vadd.f32 %v3196, %v3197
        %v3199 = vrot.slane %v3198, 2
        %v3200 = vadd.f32 %v3198, %v3199
        %v3201 = vrot.slane %v3200, 1
        %v3202 = vadd.f32 %v3200, %v3201
        %v3203 = vadd.f32 %v2729, %v2733
        %v3204 = vadd.f32 %v3203, %v2739
        %v3205 = vadd.f32 %v3204, %v2743
        %v3206 = vadd.f32 %v3205, %v2749
        %v3207 = vadd.f32 %v3206, %v2753
        %v3208 = vsel %vm3194, %v2759, 0.0
        %v3209 = vadd.f32 %v3207, %v3208
        %v3210 = vrot.slane %v3209, 4
        %v3211 = vadd.f32 %v3209, %v3210
        %v3212 = vrot.slane %v3211, 2
        %v3213 = vadd.f32 %v3211, %v3212
        %v3214 = vrot.slane %v3213, 1
        %v3215 = vadd.f32 %v3213, %v3214
        %v3216 = vadd.f32 %v2869, %v2873
        %v3217 = vadd.f32 %v3216, %v2879
        %v3218 = vadd.f32 %v3217, %v2883
        %v3219 = vadd.f32 %v3218, %v2889
        %v3220 = vadd.f32 %v3219, %v2893
        %v3221 = vsel %vm3194, %v2899, 0.0
        %v3222 = vadd.f32 %v3220, %v3221
        %v3223 = vrot.slane %v3222, 4
        %v3224 = vadd.f32 %v3222, %v3223
        %v3225 = vrot.slane %v3224, 2
        %v3226 = vadd.f32 %v3224, %v3225
        %v3227 = vrot.slane %v3226, 1
        %v3228 = vadd.f32 %v3226, %v3227
        %v3229 = vadd.f32 %v2871, %v2875
        %v3230 = vadd.f32 %v3229, %v2881
        %v3231 = vadd.f32 %v3230, %v2885
        %v3232 = vadd.f32 %v3231, %v2891
        %v3233 = vadd.f32 %v3232, %v2895
        %v3234 = vsel %vm3194, %v2901, 0.0
        %v3235 = vadd.f32 %v3233, %v3234
        %v3236 = vrot.slane %v3235, 4
        %v3237 = vadd.f32 %v3235, %v3236
        %v3238 = vrot.slane %v3237, 2
        %v3239 = vadd.f32 %v3237, %v3238
        %v3240 = vrot.slane %v3239, 1
        %v3241 = vadd.f32 %v3239, %v3240
        %v3242 = vadd.f32 %v3011, %v3015
        %v3243 = vadd.f32 %v3242, %v3021
        %v3244 = vadd.f32 %v3243, %v3025
        %v3245 = vadd.f32 %v3244, %v3031
        %v3246 = vadd.f32 %v3245, %v3035
        %v3247 = vsel %vm3194, %v3041, 0.0
        %v3248 = vadd.f32 %v3246, %v3247
        %v3249 = vrot.slane %v3248, 4
        %v3250 = vadd.f32 %v3248, %v3249
        %v3251 = vrot.slane %v3250, 2
        %v3252 = vadd.f32 %v3250, %v3251
        %v3253 = vrot.slane %v3252, 1
        %v3254 = vadd.f32 %v3252, %v3253
        %v3255 = vadd.f32 %v3013, %v3017
        %v3256 = vadd.f32 %v3255, %v3023
        %v3257 = vadd.f32 %v3256, %v3027
        %v3258 = vadd.f32 %v3257, %v3033
        %v3259 = vadd.f32 %v3258, %v3037
        %v3260 = vsel %vm3194, %v3043, 0.0
        %v3261 = vadd.f32 %v3259, %v3260
        %v3262 = vrot.slane %v3261, 4
        %v3263 = vadd.f32 %v3261, %v3262
        %v3264 = vrot.slane %v3263, 2
        %v3265 = vadd.f32 %v3263, %v3264
        %v3266 = vrot.slane %v3265, 1
        %v3267 = vadd.f32 %v3265, %v3266
        %v3268 = vadd.f32 %v3153, %v3157
        %v3269 = vadd.f32 %v3268, %v3163
        %v3270 = vadd.f32 %v3269, %v3167
        %v3271 = vadd.f32 %v3270, %v3173
        %v3272 = vadd.f32 %v3271, %v3177
        %v3273 = vsel %vm3194, %v3183, 0.0
        %v3274 = vadd.f32 %v3272, %v3273
        %v3275 = vrot.slane %v3274, 4
        %v3276 = vadd.f32 %v3274, %v3275
        %v3277 = vrot.slane %v3276, 2
        %v3278 = vadd.f32 %v3276, %v3277
        %v3279 = vrot.slane %v3278, 1
        %v3280 = vadd.f32 %v3278, %v3279
        %v3281 = vadd.f32 %v3155, %v3159
        %v3282 = vadd.f32 %v3281, %v3165
        %v3283 = vadd.f32 %v3282, %v3169
        %v3284 = vadd.f32 %v3283, %v3175
        %v3285 = vadd.f32 %v3284, %v3179
        %v3286 = vsel %vm3194, %v3185, 0.0
        %v3287 = vadd.f32 %v3285, %v3286
        %v3288 = vrot.slane %v3287, 4
        %v3289 = vadd.f32 %v3287, %v3288
        %v3290 = vrot.slane %v3289, 2
        %v3291 = vadd.f32 %v3289, %v3290
        %v3292 = vrot.slane %v3291, 1
        %v3293 = vadd.f32 %v3291, %v3292
        %v3294 = vmul.f32 %v3202, 0.020408163
        %v3295 = vmul.f32 %v3215, 0.020408163
        %v3296 = vmul.f32 %v3228, 0.020408163
        %v3297 = vmul.f32 %v3241, 0.020408163
        %v3298 = vmul.f32 %v3254, 0.020408163
        %v3299 = vmul.f32 %v3267, 0.020408163
        %v3300 = vmul.f32 %v3280, 0.020408163
        %v3301 = vmul.f32 %v3293, 0.020408163
        %v3302 = vmul.f32 %v2727, %v2727
        %v3303 = vmul.f32 %v2729, %v2729
        %v3304 = vmul.f32 %v2869, %v2869
        %v3305 = vmul.f32 %v2871, %v2871
        %v3306 = vmul.f32 %v3011, %v3011
        %v3307 = vmul.f32 %v3013, %v3013
        %v3308 = vmul.f32 %v3153, %v3153
        %v3309 = vmul.f32 %v3155, %v3155
        %v3310 = vmul.f32 %v2731, %v2731
        %v3311 = vmul.f32 %v2733, %v2733
        %v3312 = vmul.f32 %v2873, %v2873
        %v3313 = vmul.f32 %v2875, %v2875
        %v3314 = vmul.f32 %v3015, %v3015
        %v3315 = vmul.f32 %v3017, %v3017
        %v3316 = vmul.f32 %v3157, %v3157
        %v3317 = vmul.f32 %v3159, %v3159
        %v3318 = vmul.f32 %v2737, %v2737
        %v3319 = vmul.f32 %v2739, %v2739
        %v3320 = vmul.f32 %v2879, %v2879
        %v3321 = vmul.f32 %v2881, %v2881
        %v3322 = vmul.f32 %v3021, %v3021
        %v3323 = vmul.f32 %v3023, %v3023
        %v3324 = vmul.f32 %v3163, %v3163
        %v3325 = vmul.f32 %v3165, %v3165
        %v3326 = vmul.f32 %v2741, %v2741
        %v3327 = vmul.f32 %v2743, %v2743
        %v3328 = vmul.f32 %v2883, %v2883
        %v3329 = vmul.f32 %v2885, %v2885
        %v3330 = vmul.f32 %v3025, %v3025
        %v3331 = vmul.f32 %v3027, %v3027
        %v3332 = vmul.f32 %v3167, %v3167
        %v3333 = vmul.f32 %v3169, %v3169
        %v3334 = vmul.f32 %v2747, %v2747
        %v3335 = vmul.f32 %v2749, %v2749
        %v3336 = vmul.f32 %v2889, %v2889
        %v3337 = vmul.f32 %v2891, %v2891
        %v3338 = vmul.f32 %v3031, %v3031
        %v3339 = vmul.f32 %v3033, %v3033
        %v3340 = vmul.f32 %v3173, %v3173
        %v3341 = vmul.f32 %v3175, %v3175
        %v3342 = vmul.f32 %v2751, %v2751
        %v3343 = vmul.f32 %v2753, %v2753
        %v3344 = vmul.f32 %v2893, %v2893
        %v3345 = vmul.f32 %v2895, %v2895
        %v3346 = vmul.f32 %v3035, %v3035
        %v3347 = vmul.f32 %v3037, %v3037
        %v3348 = vmul.f32 %v3177, %v3177
        %v3349 = vmul.f32 %v3179, %v3179
        %v3350 = vmul.f32 %v2757, %v2757
        %v3351 = vmul.f32 %v2759, %v2759
        %v3352 = vmul.f32 %v2899, %v2899
        %v3353 = vmul.f32 %v2901, %v2901
        %v3354 = vmul.f32 %v3041, %v3041
        %v3355 = vmul.f32 %v3043, %v3043
        %v3356 = vmul.f32 %v3183, %v3183
        %v3357 = vmul.f32 %v3185, %v3185
        %v3358 = vadd.f32 %v3302, %v3310
        %v3359 = vadd.f32 %v3358, %v3318
        %v3360 = vadd.f32 %v3359, %v3326
        %v3361 = vadd.f32 %v3360, %v3334
        %v3362 = vadd.f32 %v3361, %v3342
        %v3363 = vsel %vm3194, %v3350, 0.0
        %v3364 = vadd.f32 %v3362, %v3363
        %v3365 = vrot.slane %v3364, 4
        %v3366 = vadd.f32 %v3364, %v3365
        %v3367 = vrot.slane %v3366, 2
        %v3368 = vadd.f32 %v3366, %v3367
        %v3369 = vrot.slane %v3368, 1
        %v3370 = vadd.f32 %v3368, %v3369
        %v3371 = vadd.f32 %v3303, %v3311
        %v3372 = vadd.f32 %v3371, %v3319
        %v3373 = vadd.f32 %v3372, %v3327
        %v3374 = vadd.f32 %v3373, %v3335
        %v3375 = vadd.f32 %v3374, %v3343
        %v3376 = vsel %vm3194, %v3351, 0.0
        %v3377 = vadd.f32 %v3375, %v3376
        %v3378 = vrot.slane %v3377, 4
        %v3379 = vadd.f32 %v3377, %v3378
        %v3380 = vrot.slane %v3379, 2
        %v3381 = vadd.f32 %v3379, %v3380
        %v3382 = vrot.slane %v3381, 1
        %v3383 = vadd.f32 %v3381, %v3382
        %v3384 = vadd.f32 %v3304, %v3312
        %v3385 = vadd.f32 %v3384, %v3320
        %v3386 = vadd.f32 %v3385, %v3328
        %v3387 = vadd.f32 %v3386, %v3336
        %v3388 = vadd.f32 %v3387, %v3344
        %v3389 = vsel %vm3194, %v3352, 0.0
        %v3390 = vadd.f32 %v3388, %v3389
        %v3391 = vrot.slane %v3390, 4
        %v3392 = vadd.f32 %v3390, %v3391
        %v3393 = vrot.slane %v3392, 2
        %v3394 = vadd.f32 %v3392, %v3393
        %v3395 = vrot.slane %v3394, 1
        %v3396 = vadd.f32 %v3394, %v3395
        %v3397 = vadd.f32 %v3305, %v3313
        %v3398 = vadd.f32 %v3397, %v3321
        %v3399 = vadd.f32 %v3398, %v3329
        %v3400 = vadd.f32 %v3399, %v3337
        %v3401 = vadd.f32 %v3400, %v3345
        %v3402 = vsel %vm3194, %v3353, 0.0
        %v3403 = vadd.f32 %v3401, %v3402
        %v3404 = vrot.slane %v3403, 4
        %v3405 = vadd.f32 %v3403, %v3404
        %v3406 = vrot.slane %v3405, 2
        %v3407 = vadd.f32 %v3405, %v3406
        %v3408 = vrot.slane %v3407, 1
        %v3409 = vadd.f32 %v3407, %v3408
        %v3410 = vadd.f32 %v3306, %v3314
        %v3411 = vadd.f32 %v3410, %v3322
        %v3412 = vadd.f32 %v3411, %v3330
        %v3413 = vadd.f32 %v3412, %v3338
        %v3414 = vadd.f32 %v3413, %v3346
        %v3415 = vsel %vm3194, %v3354, 0.0
        %v3416 = vadd.f32 %v3414, %v3415
        %v3417 = vrot.slane %v3416, 4
        %v3418 = vadd.f32 %v3416, %v3417
        %v3419 = vrot.slane %v3418, 2
        %v3420 = vadd.f32 %v3418, %v3419
        %v3421 = vrot.slane %v3420, 1
        %v3422 = vadd.f32 %v3420, %v3421
        %v3423 = vadd.f32 %v3307, %v3315
        %v3424 = vadd.f32 %v3423, %v3323
        %v3425 = vadd.f32 %v3424, %v3331
        %v3426 = vadd.f32 %v3425, %v3339
        %v3427 = vadd.f32 %v3426, %v3347
        %v3428 = vsel %vm3194, %v3355, 0.0
        %v3429 = vadd.f32 %v3427, %v3428
        %v3430 = vrot.slane %v3429, 4
        %v3431 = vadd.f32 %v3429, %v3430
        %v3432 = vrot.slane %v3431, 2
        %v3433 = vadd.f32 %v3431, %v3432
        %v3434 = vrot.slane %v3433, 1
        %v3435 = vadd.f32 %v3433, %v3434
        %v3436 = vadd.f32 %v3308, %v3316
        %v3437 = vadd.f32 %v3436, %v3324
        %v3438 = vadd.f32 %v3437, %v3332
        %v3439 = vadd.f32 %v3438, %v3340
        %v3440 = vadd.f32 %v3439, %v3348
        %v3441 = vsel %vm3194, %v3356, 0.0
        %v3442 = vadd.f32 %v3440, %v3441
        %v3443 = vrot.slane %v3442, 4
        %v3444 = vadd.f32 %v3442, %v3443
        %v3445 = vrot.slane %v3444, 2
        %v3446 = vadd.f32 %v3444, %v3445
        %v3447 = vrot.slane %v3446, 1
        %v3448 = vadd.f32 %v3446, %v3447
        %v3449 = vadd.f32 %v3309, %v3317
        %v3450 = vadd.f32 %v3449, %v3325
        %v3451 = vadd.f32 %v3450, %v3333
        %v3452 = vadd.f32 %v3451, %v3341
        %v3453 = vadd.f32 %v3452, %v3349
        %v3454 = vsel %vm3194, %v3357, 0.0
        %v3455 = vadd.f32 %v3453, %v3454
        %v3456 = vrot.slane %v3455, 4
        %v3457 = vadd.f32 %v3455, %v3456
        %v3458 = vrot.slane %v3457, 2
        %v3459 = vadd.f32 %v3457, %v3458
        %v3460 = vrot.slane %v3459, 1
        %v3461 = vadd.f32 %v3459, %v3460
        %v3462 = vmul.f32 %v3370, 0.020408163
        %v3463 = vmul.f32 %v3383, 0.020408163
        %v3464 = vmul.f32 %v3396, 0.020408163
        %v3465 = vmul.f32 %v3409, 0.020408163
        %v3466 = vmul.f32 %v3422, 0.020408163
        %v3467 = vmul.f32 %v3435, 0.020408163
        %v3468 = vmul.f32 %v3448, 0.020408163
        %v3469 = vmul.f32 %v3461, 0.020408163
        %v3470 = vmul.f32 %v3294, %v3294
        %v3471 = vmul.f32 %v3295, %v3295
        %v3472 = vmul.f32 %v3296, %v3296
        %v3473 = vmul.f32 %v3297, %v3297
        %v3474 = vmul.f32 %v3298, %v3298
        %v3475 = vmul.f32 %v3299, %v3299
        %v3476 = vmul.f32 %v3300, %v3300
        %v3477 = vmul.f32 %v3301, %v3301
        %v3478 = vsub.f32 %v3462, %v3470
        %v3479 = vsub.f32 %v3463, %v3471
        %v3480 = vsub.f32 %v3464, %v3472
        %v3481 = vsub.f32 %v3465, %v3473
        %v3482 = vsub.f32 %v3466, %v3474
        %v3483 = vsub.f32 %v3467, %v3475
        %v3484 = vsub.f32 %v3468, %v3476
        %v3485 = vsub.f32 %v3469, %v3477
        %v3486 = vmax.f32 %v3478, 0.0
        %v3487 = vmax.f32 %v3479, 0.0
        %v3488 = vmax.f32 %v3480, 0.0
        %v3489 = vmax.f32 %v3481, 0.0
        %v3490 = vmax.f32 %v3482, 0.0
        %v3491 = vmax.f32 %v3483, 0.0
        %v3492 = vmax.f32 %v3484, 0.0
        %v3493 = vmax.f32 %v3485, 0.0
        %v3494 = vadd.f32 %v3486, 1e-05
        %v3495 = vadd.f32 %v3487, 1e-05
        %v3496 = vadd.f32 %v3488, 1e-05
        %v3497 = vadd.f32 %v3489, 1e-05
        %v3498 = vadd.f32 %v3490, 1e-05
        %v3499 = vadd.f32 %v3491, 1e-05
        %v3500 = vadd.f32 %v3492, 1e-05
        %v3501 = vadd.f32 %v3493, 1e-05
        %v3502 = vrsqrt.pop %v3494
        %v3503 = vrsqrt.pop %v3495
        %v3504 = vrsqrt.pop %v3496
        %v3505 = vrsqrt.pop %v3497
        %v3506 = vrsqrt.pop %v3498
        %v3507 = vrsqrt.pop %v3499
        %v3508 = vrsqrt.pop %v3500
        %v3509 = vrsqrt.pop %v3501
        %v3510 = vld [vmem:[%s977] sm:$0xff]
        %v3519 = vcombine.low %v3502, %v3503
        %v3520 = vcombine.low %v3504, %v3505
        %v3521 = vcombine.low %v3506, %v3507
        %v3522 = vcombine.low %v3508, %v3509
        %v3524 = vunpack.c.l.s4 1966171168
        %v3525 = vunpack.c.0.s8 %v3524
        %v3526 = vlaneseq
        %v3527 = vshrl.u32 %v3526, 7
        %v3528 = vsub.s32 %v3525, %v3527
        %v3529 = vrot.slane %v3519, %v3528
        %v3531 = vunpack.c.l.s4 1966171168
        %v3532 = vunpack.c.0.s8 %v3531
        %v3533 = vlaneseq
        %v3534 = vshrl.u32 %v3533, 7
        %v3535 = vsub.s32 %v3532, %v3534
        %v3536 = vrot.slane %v3520, %v3535
        %v3538 = vunpack.c.l.s4 1966171168
        %v3539 = vunpack.c.0.s8 %v3538
        %v3540 = vlaneseq
        %v3541 = vshrl.u32 %v3540, 7
        %v3542 = vsub.s32 %v3539, %v3541
        %v3543 = vrot.slane %v3521, %v3542
        %v3545 = vunpack.c.l.s4 1966171168
        %v3546 = vunpack.c.0.s8 %v3545
        %v3547 = vlaneseq
        %v3548 = vshrl.u32 %v3547, 7
        %v3549 = vsub.s32 %v3546, %v3548
        %v3550 = vrot.slane %v3522, %v3549
        %v3551 = vcombine.low %v3529, %v3536
        %v3552 = vcombine.low %v3543, %v3550
        %v3554 = vunpack.c.l.s4 1966171168
        %v3555 = vunpack.c.0.s8 %v3554
        %v3556 = vlaneseq
        %v3557 = vshrl.u32 %v3556, 7
        %v3558 = vsub.s32 %v3555, %v3557
        %v3559 = vrot.slane %v3551, %v3558
        %v3561 = vunpack.c.l.s4 1966171168
        %v3562 = vunpack.c.0.s8 %v3561
        %v3563 = vlaneseq
        %v3564 = vshrl.u32 %v3563, 7
        %v3565 = vsub.s32 %v3562, %v3564
        %v3566 = vrot.slane %v3552, %v3565
        %v3567 = vcombine.low %v3559, %v3566
        %v3569 = vmul.f32 %v3510, %v3567
        %v3570 = vld [vmem:[%s982] sm:$0xff]
        %v3572 = vlaneseq
        %v3573 = vshrl.u32 %v3572, 7
        %v3574 = vsub.s32 0, %v3573
        %v3575 = vrot.slane %v3569, %v3574
        %v3576 = vlaneseq
        %v3577 = vshrl.u32 %v3576, 7
        %v3578 = vsub.s32 1, %v3577
        %v3579 = vrot.slane %v3569, %v3578
        %v3580 = vlaneseq
        %v3581 = vshrl.u32 %v3580, 7
        %v3582 = vsub.s32 2, %v3581
        %v3583 = vrot.slane %v3569, %v3582
        %v3584 = vlaneseq
        %v3585 = vshrl.u32 %v3584, 7
        %v3586 = vsub.s32 3, %v3585
        %v3587 = vrot.slane %v3569, %v3586
        %v3588 = vlaneseq
        %v3589 = vshrl.u32 %v3588, 7
        %v3590 = vsub.s32 4, %v3589
        %v3591 = vrot.slane %v3569, %v3590
        %v3592 = vlaneseq
        %v3593 = vshrl.u32 %v3592, 7
        %v3594 = vsub.s32 5, %v3593
        %v3595 = vrot.slane %v3569, %v3594
        %v3596 = vlaneseq
        %v3597 = vshrl.u32 %v3596, 7
        %v3598 = vsub.s32 6, %v3597
        %v3599 = vrot.slane %v3569, %v3598
        %v3600 = vlaneseq
        %v3601 = vshrl.u32 %v3600, 7
        %v3602 = vsub.s32 7, %v3601
        %v3603 = vrot.slane %v3569, %v3602
        %v3612 = vmul.f32 %v3294, %v3575
        %v3613 = vmul.f32 %v3295, %v3579
        %v3614 = vmul.f32 %v3296, %v3583
        %v3615 = vmul.f32 %v3297, %v3587
        %v3616 = vmul.f32 %v3298, %v3591
        %v3617 = vmul.f32 %v3299, %v3595
        %v3618 = vmul.f32 %v3300, %v3599
        %v3619 = vmul.f32 %v3301, %v3603
        %v3628 = vcombine.low %v3612, %v3613
        %v3629 = vcombine.low %v3614, %v3615
        %v3630 = vcombine.low %v3616, %v3617
        %v3631 = vcombine.low %v3618, %v3619
        %v3633 = vunpack.c.l.s4 1966171168
        %v3634 = vunpack.c.0.s8 %v3633
        %v3635 = vlaneseq
        %v3636 = vshrl.u32 %v3635, 7
        %v3637 = vsub.s32 %v3634, %v3636
        %v3638 = vrot.slane %v3628, %v3637
        %v3640 = vunpack.c.l.s4 1966171168
        %v3641 = vunpack.c.0.s8 %v3640
        %v3642 = vlaneseq
        %v3643 = vshrl.u32 %v3642, 7
        %v3644 = vsub.s32 %v3641, %v3643
        %v3645 = vrot.slane %v3629, %v3644
        %v3647 = vunpack.c.l.s4 1966171168
        %v3648 = vunpack.c.0.s8 %v3647
        %v3649 = vlaneseq
        %v3650 = vshrl.u32 %v3649, 7
        %v3651 = vsub.s32 %v3648, %v3650
        %v3652 = vrot.slane %v3630, %v3651
        %v3654 = vunpack.c.l.s4 1966171168
        %v3655 = vunpack.c.0.s8 %v3654
        %v3656 = vlaneseq
        %v3657 = vshrl.u32 %v3656, 7
        %v3658 = vsub.s32 %v3655, %v3657
        %v3659 = vrot.slane %v3631, %v3658
        %v3660 = vcombine.low %v3638, %v3645
        %v3661 = vcombine.low %v3652, %v3659
        %v3663 = vunpack.c.l.s4 1966171168
        %v3664 = vunpack.c.0.s8 %v3663
        %v3665 = vlaneseq
        %v3666 = vshrl.u32 %v3665, 7
        %v3667 = vsub.s32 %v3664, %v3666
        %v3668 = vrot.slane %v3660, %v3667
        %v3670 = vunpack.c.l.s4 1966171168
        %v3671 = vunpack.c.0.s8 %v3670
        %v3672 = vlaneseq
        %v3673 = vshrl.u32 %v3672, 7
        %v3674 = vsub.s32 %v3671, %v3673
        %v3675 = vrot.slane %v3661, %v3674
        %v3676 = vcombine.low %v3668, %v3675
        %v3678 = vsub.f32 %v3570, %v3676
        %v3679 = vmul.f32 %v2727, %v3575
        %v3680 = vmul.f32 %v2729, %v3579
        %v3681 = vmul.f32 %v2869, %v3583
        %v3682 = vmul.f32 %v2871, %v3587
        %v3683 = vmul.f32 %v3011, %v3591
        %v3684 = vmul.f32 %v3013, %v3595
        %v3685 = vmul.f32 %v3153, %v3599
        %v3686 = vmul.f32 %v3155, %v3603
        %v3687 = vmul.f32 %v2731, %v3575
        %v3688 = vmul.f32 %v2733, %v3579
        %v3689 = vmul.f32 %v2873, %v3583
        %v3690 = vmul.f32 %v2875, %v3587
        %v3691 = vmul.f32 %v3015, %v3591
        %v3692 = vmul.f32 %v3017, %v3595
        %v3693 = vmul.f32 %v3157, %v3599
        %v3694 = vmul.f32 %v3159, %v3603
        %v3695 = vmul.f32 %v2737, %v3575
        %v3696 = vmul.f32 %v2739, %v3579
        %v3697 = vmul.f32 %v2879, %v3583
        %v3698 = vmul.f32 %v2881, %v3587
        %v3699 = vmul.f32 %v3021, %v3591
        %v3700 = vmul.f32 %v3023, %v3595
        %v3701 = vmul.f32 %v3163, %v3599
        %v3702 = vmul.f32 %v3165, %v3603
        %v3703 = vmul.f32 %v2741, %v3575
        %v3704 = vmul.f32 %v2743, %v3579
        %v3705 = vmul.f32 %v2883, %v3583
        %v3706 = vmul.f32 %v2885, %v3587
        %v3707 = vmul.f32 %v3025, %v3591
        %v3708 = vmul.f32 %v3027, %v3595
        %v3709 = vmul.f32 %v3167, %v3599
        %v3710 = vmul.f32 %v3169, %v3603
        %v3711 = vmul.f32 %v2747, %v3575
        %v3712 = vmul.f32 %v2749, %v3579
        %v3713 = vmul.f32 %v2889, %v3583
        %v3714 = vmul.f32 %v2891, %v3587
        %v3715 = vmul.f32 %v3031, %v3591
        %v3716 = vmul.f32 %v3033, %v3595
        %v3717 = vmul.f32 %v3173, %v3599
        %v3718 = vmul.f32 %v3175, %v3603
        %v3719 = vmul.f32 %v2751, %v3575
        %v3720 = vmul.f32 %v2753, %v3579
        %v3721 = vmul.f32 %v2893, %v3583
        %v3722 = vmul.f32 %v2895, %v3587
        %v3723 = vmul.f32 %v3035, %v3591
        %v3724 = vmul.f32 %v3037, %v3595
        %v3725 = vmul.f32 %v3177, %v3599
        %v3726 = vmul.f32 %v3179, %v3603
        %v3727 = vmul.f32 %v2757, %v3575
        %v3728 = vmul.f32 %v2759, %v3579
        %v3729 = vmul.f32 %v2899, %v3583
        %v3730 = vmul.f32 %v2901, %v3587
        %v3731 = vmul.f32 %v3041, %v3591
        %v3732 = vmul.f32 %v3043, %v3595
        %v3733 = vmul.f32 %v3183, %v3599
        %v3734 = vmul.f32 %v3185, %v3603
        %v3735 = vld [vmem:[%s928] sm:$0xff]
        %v3736 = vld [vmem:[%s928 + $0x8] sm:$0xff]
        %v3737 = vld [vmem:[%s928 + $0x10] sm:$0xff]
        %v3738 = vld [vmem:[%s928 + $0x18] sm:$0xff]
        %v3739 = vld [vmem:[%s928 + $0x20] sm:$0xff]
        %v3740 = vld [vmem:[%s928 + $0x28] sm:$0xff]
        %v3741 = vld [vmem:[%s928 + $0x30] sm:$0xff]
        %v3742 = vld [vmem:[%s928 + $0x38] sm:$0xff]
        %v3743 = vld [vmem:[%s928 + $0x40] sm:$0xff]
        %v3744 = vld [vmem:[%s928 + $0x48] sm:$0xff]
        %v3745 = vld [vmem:[%s928 + $0x50] sm:$0xff]
        %v3746 = vld [vmem:[%s928 + $0x58] sm:$0xff]
        %v3747 = vld [vmem:[%s928 + $0x60] sm:$0xff]
        %v3748 = vld [vmem:[%s928 + $0x68] sm:$0xff]
        %v3749 = vld [vmem:[%s928 + $0x70] sm:$0xff]
        %v3750 = vld [vmem:[%s928 + $0x78] sm:$0xff]
        %v3751 = vld [vmem:[%s928 + $0x80] sm:$0xff]
        %v3752 = vld [vmem:[%s928 + $0x88] sm:$0xff]
        %v3753 = vld [vmem:[%s928 + $0x90] sm:$0xff]
        %v3754 = vld [vmem:[%s928 + $0x98] sm:$0xff]
        %v3755 = vld [vmem:[%s928 + $0xa0] sm:$0xff]
        %v3756 = vld [vmem:[%s928 + $0xa8] sm:$0xff]
        %v3757 = vld [vmem:[%s928 + $0xb0] sm:$0xff]
        %v3758 = vld [vmem:[%s928 + $0xb8] sm:$0xff]
        %v3759 = vld [vmem:[%s928 + $0xc0] sm:$0xff]
        %v3760 = vld [vmem:[%s928 + $0xc8] sm:$0xff]
        %v3761 = vld [vmem:[%s928 + $0xd0] sm:$0xff]
        %v3762 = vld [vmem:[%s928 + $0xd8] sm:$0xff]
        %v3763 = vld [vmem:[%s928 + $0xe0] sm:$0xff]
        %v3764 = vld [vmem:[%s928 + $0xe8] sm:$0xff]
        %v3765 = vld [vmem:[%s928 + $0xf0] sm:$0xff]
        %v3766 = vld [vmem:[%s928 + $0xf8] sm:$0xff]
        %v3767 = vld [vmem:[%s928 + $0x100] sm:$0xff]
        %v3768 = vld [vmem:[%s928 + $0x108] sm:$0xff]
        %v3769 = vld [vmem:[%s928 + $0x110] sm:$0xff]
        %v3770 = vld [vmem:[%s928 + $0x118] sm:$0xff]
        %v3771 = vld [vmem:[%s928 + $0x120] sm:$0xff]
        %v3772 = vld [vmem:[%s928 + $0x128] sm:$0xff]
        %v3773 = vld [vmem:[%s928 + $0x130] sm:$0xff]
        %v3774 = vld [vmem:[%s928 + $0x138] sm:$0xff]
        %v3775 = vld [vmem:[%s928 + $0x140] sm:$0xff]
        %v3776 = vld [vmem:[%s928 + $0x148] sm:$0xff]
        %v3777 = vld [vmem:[%s928 + $0x150] sm:$0xff]
        %v3778 = vld [vmem:[%s928 + $0x158] sm:$0xff]
        %v3779 = vld [vmem:[%s928 + $0x160] sm:$0xff]
        %v3780 = vld [vmem:[%s928 + $0x168] sm:$0xff]
        %v3781 = vld [vmem:[%s928 + $0x170] sm:$0xff]
        %v3782 = vld [vmem:[%s928 + $0x178] sm:$0xff]
        %v3783 = vld [vmem:[%s928 + $0x180] sm:$0x1]
        %v3784 = vld [vmem:[%s928 + $0x188] sm:$0x1]
        %v3785 = vld [vmem:[%s928 + $0x190] sm:$0x1]
        %v3786 = vld [vmem:[%s928 + $0x198] sm:$0x1]
        %v3787 = vld [vmem:[%s928 + $0x1a0] sm:$0x1]
        %v3788 = vld [vmem:[%s928 + $0x1a8] sm:$0x1]
        %v3789 = vld [vmem:[%s928 + $0x1b0] sm:$0x1]
        %v3790 = vld [vmem:[%s928 + $0x1b8] sm:$0x1]
        %v3792 = vlaneseq
        %v3793 = vshrl.u32 %v3792, 7
        %v3794 = vsub.s32 0, %v3793
        %v3795 = vrot.slane %v3678, %v3794
        %v3796 = vlaneseq
        %v3797 = vshrl.u32 %v3796, 7
        %v3798 = vsub.s32 1, %v3797
        %v3799 = vrot.slane %v3678, %v3798
        %v3800 = vlaneseq
        %v3801 = vshrl.u32 %v3800, 7
        %v3802 = vsub.s32 2, %v3801
        %v3803 = vrot.slane %v3678, %v3802
        %v3804 = vlaneseq
        %v3805 = vshrl.u32 %v3804, 7
        %v3806 = vsub.s32 3, %v3805
        %v3807 = vrot.slane %v3678, %v3806
        %v3808 = vlaneseq
        %v3809 = vshrl.u32 %v3808, 7
        %v3810 = vsub.s32 4, %v3809
        %v3811 = vrot.slane %v3678, %v3810
        %v3812 = vlaneseq
        %v3813 = vshrl.u32 %v3812, 7
        %v3814 = vsub.s32 5, %v3813
        %v3815 = vrot.slane %v3678, %v3814
        %v3816 = vlaneseq
        %v3817 = vshrl.u32 %v3816, 7
        %v3818 = vsub.s32 6, %v3817
        %v3819 = vrot.slane %v3678, %v3818
        %v3820 = vlaneseq
        %v3821 = vshrl.u32 %v3820, 7
        %v3822 = vsub.s32 7, %v3821
        %v3823 = vrot.slane %v3678, %v3822
        %v3832 = vadd.f32 %v3795, %v3735
        %v3833 = vadd.f32 %v3799, %v3736
        %v3834 = vadd.f32 %v3803, %v3737
        %v3835 = vadd.f32 %v3807, %v3738
        %v3836 = vadd.f32 %v3811, %v3739
        %v3837 = vadd.f32 %v3815, %v3740
        %v3838 = vadd.f32 %v3819, %v3741
        %v3839 = vadd.f32 %v3823, %v3742
        %v3840 = vadd.f32 %v3795, %v3743
        %v3841 = vadd.f32 %v3799, %v3744
        %v3842 = vadd.f32 %v3803, %v3745
        %v3843 = vadd.f32 %v3807, %v3746
        %v3844 = vadd.f32 %v3811, %v3747
        %v3845 = vadd.f32 %v3815, %v3748
        %v3846 = vadd.f32 %v3819, %v3749
        %v3847 = vadd.f32 %v3823, %v3750
        %v3848 = vadd.f32 %v3795, %v3751
        %v3849 = vadd.f32 %v3799, %v3752
        %v3850 = vadd.f32 %v3803, %v3753
        %v3851 = vadd.f32 %v3807, %v3754
        %v3852 = vadd.f32 %v3811, %v3755
        %v3853 = vadd.f32 %v3815, %v3756
        %v3854 = vadd.f32 %v3819, %v3757
        %v3855 = vadd.f32 %v3823, %v3758
        %v3856 = vadd.f32 %v3795, %v3759
        %v3857 = vadd.f32 %v3799, %v3760
        %v3858 = vadd.f32 %v3803, %v3761
        %v3859 = vadd.f32 %v3807, %v3762
        %v3860 = vadd.f32 %v3811, %v3763
        %v3861 = vadd.f32 %v3815, %v3764
        %v3862 = vadd.f32 %v3819, %v3765
        %v3863 = vadd.f32 %v3823, %v3766
        %v3864 = vadd.f32 %v3795, %v3767
        %v3865 = vadd.f32 %v3799, %v3768
        %v3866 = vadd.f32 %v3803, %v3769
        %v3867 = vadd.f32 %v3807, %v3770
        %v3868 = vadd.f32 %v3811, %v3771
        %v3869 = vadd.f32 %v3815, %v3772
        %v3870 = vadd.f32 %v3819, %v3773
        %v3871 = vadd.f32 %v3823, %v3774
        %v3872 = vadd.f32 %v3795, %v3775
        %v3873 = vadd.f32 %v3799, %v3776
        %v3874 = vadd.f32 %v3803, %v3777
        %v3875 = vadd.f32 %v3807, %v3778
        %v3876 = vadd.f32 %v3811, %v3779
        %v3877 = vadd.f32 %v3815, %v3780
        %v3878 = vadd.f32 %v3819, %v3781
        %v3879 = vadd.f32 %v3823, %v3782
        %v3880 = vadd.f32 %v3795, %v3783
        %v3881 = vadd.f32 %v3799, %v3784
        %v3882 = vadd.f32 %v3803, %v3785
        %v3883 = vadd.f32 %v3807, %v3786
        %v3884 = vadd.f32 %v3811, %v3787
        %v3885 = vadd.f32 %v3815, %v3788
        %v3886 = vadd.f32 %v3819, %v3789
        %v3887 = vadd.f32 %v3823, %v3790
        %v3888 = vadd.f32 %v3679, %v3832
        %v3889 = vadd.f32 %v3680, %v3833
        %v3890 = vadd.f32 %v3681, %v3834
        %v3891 = vadd.f32 %v3682, %v3835
        %v3892 = vadd.f32 %v3683, %v3836
        %v3893 = vadd.f32 %v3684, %v3837
        %v3894 = vadd.f32 %v3685, %v3838
        %v3895 = vadd.f32 %v3686, %v3839
        %v3896 = vadd.f32 %v3687, %v3840
        %v3897 = vadd.f32 %v3688, %v3841
        %v3898 = vadd.f32 %v3689, %v3842
        %v3899 = vadd.f32 %v3690, %v3843
        %v3900 = vadd.f32 %v3691, %v3844
        %v3901 = vadd.f32 %v3692, %v3845
        %v3902 = vadd.f32 %v3693, %v3846
        %v3903 = vadd.f32 %v3694, %v3847
        %v3904 = vadd.f32 %v3695, %v3848
        %v3905 = vadd.f32 %v3696, %v3849
        %v3906 = vadd.f32 %v3697, %v3850
        %v3907 = vadd.f32 %v3698, %v3851
        %v3908 = vadd.f32 %v3699, %v3852
        %v3909 = vadd.f32 %v3700, %v3853
        %v3910 = vadd.f32 %v3701, %v3854
        %v3911 = vadd.f32 %v3702, %v3855
        %v3912 = vadd.f32 %v3703, %v3856
        %v3913 = vadd.f32 %v3704, %v3857
        %v3914 = vadd.f32 %v3705, %v3858
        %v3915 = vadd.f32 %v3706, %v3859
        %v3916 = vadd.f32 %v3707, %v3860
        %v3917 = vadd.f32 %v3708, %v3861
        %v3918 = vadd.f32 %v3709, %v3862
        %v3919 = vadd.f32 %v3710, %v3863
        %v3920 = vadd.f32 %v3711, %v3864
        %v3921 = vadd.f32 %v3712, %v3865
        %v3922 = vadd.f32 %v3713, %v3866
        %v3923 = vadd.f32 %v3714, %v3867
        %v3924 = vadd.f32 %v3715, %v3868
        %v3925 = vadd.f32 %v3716, %v3869
        %v3926 = vadd.f32 %v3717, %v3870
        %v3927 = vadd.f32 %v3718, %v3871
        %v3928 = vadd.f32 %v3719, %v3872
        %v3929 = vadd.f32 %v3720, %v3873
        %v3930 = vadd.f32 %v3721, %v3874
        %v3931 = vadd.f32 %v3722, %v3875
        %v3932 = vadd.f32 %v3723, %v3876
        %v3933 = vadd.f32 %v3724, %v3877
        %v3934 = vadd.f32 %v3725, %v3878
        %v3935 = vadd.f32 %v3726, %v3879
        %v3936 = vadd.f32 %v3727, %v3880
        %v3937 = vadd.f32 %v3728, %v3881
        %v3938 = vadd.f32 %v3729, %v3882
        %v3939 = vadd.f32 %v3730, %v3883
        %v3940 = vadd.f32 %v3731, %v3884
        %v3941 = vadd.f32 %v3732, %v3885
        %v3942 = vadd.f32 %v3733, %v3886
        %v3943 = vadd.f32 %v3734, %v3887
        %v3944 = vmax.f32 %v3888, 0.0
        %v3945 = vmax.f32 %v3889, 0.0
        %v3946 = vmax.f32 %v3890, 0.0
        %v3947 = vmax.f32 %v3891, 0.0
        %v3948 = vmax.f32 %v3892, 0.0
        %v3949 = vmax.f32 %v3893, 0.0
        %v3950 = vmax.f32 %v3894, 0.0
        %v3951 = vmax.f32 %v3895, 0.0
        %v3952 = vmax.f32 %v3896, 0.0
        %v3953 = vmax.f32 %v3897, 0.0
        %v3954 = vmax.f32 %v3898, 0.0
        %v3955 = vmax.f32 %v3899, 0.0
        %v3956 = vmax.f32 %v3900, 0.0
        %v3957 = vmax.f32 %v3901, 0.0
        %v3958 = vmax.f32 %v3902, 0.0
        %v3959 = vmax.f32 %v3903, 0.0
        %v3960 = vmax.f32 %v3904, 0.0
        %v3961 = vmax.f32 %v3905, 0.0
        %v3962 = vmax.f32 %v3906, 0.0
        %v3963 = vmax.f32 %v3907, 0.0
        %v3964 = vmax.f32 %v3908, 0.0
        %v3965 = vmax.f32 %v3909, 0.0
        %v3966 = vmax.f32 %v3910, 0.0
        %v3967 = vmax.f32 %v3911, 0.0
        %v3968 = vmax.f32 %v3912, 0.0
        %v3969 = vmax.f32 %v3913, 0.0
        %v3970 = vmax.f32 %v3914, 0.0
        %v3971 = vmax.f32 %v3915, 0.0
        %v3972 = vmax.f32 %v3916, 0.0
        %v3973 = vmax.f32 %v3917, 0.0
        %v3974 = vmax.f32 %v3918, 0.0
        %v3975 = vmax.f32 %v3919, 0.0
        %v3976 = vmax.f32 %v3920, 0.0
        %v3977 = vmax.f32 %v3921, 0.0
        %v3978 = vmax.f32 %v3922, 0.0
        %v3979 = vmax.f32 %v3923, 0.0
        %v3980 = vmax.f32 %v3924, 0.0
        %v3981 = vmax.f32 %v3925, 0.0
        %v3982 = vmax.f32 %v3926, 0.0
        %v3983 = vmax.f32 %v3927, 0.0
        %v3984 = vmax.f32 %v3928, 0.0
        %v3985 = vmax.f32 %v3929, 0.0
        %v3986 = vmax.f32 %v3930, 0.0
        %v3987 = vmax.f32 %v3931, 0.0
        %v3988 = vmax.f32 %v3932, 0.0
        %v3989 = vmax.f32 %v3933, 0.0
        %v3990 = vmax.f32 %v3934, 0.0
        %v3991 = vmax.f32 %v3935, 0.0
        %v3992 = vmax.f32 %v3936, 0.0
        %v3993 = vmax.f32 %v3937, 0.0
        %v3994 = vmax.f32 %v3938, 0.0
        %v3995 = vmax.f32 %v3939, 0.0
        %v3996 = vmax.f32 %v3940, 0.0
        %v3997 = vmax.f32 %v3941, 0.0
        %v3998 = vmax.f32 %v3942, 0.0
        %v3999 = vmax.f32 %v3943, 0.0
        %v4000 = vpack.c.bf16 %v3952, %v3944
        %v4001 = vpack.c.bf16 %v3953, %v3945
        %v4002 = vpack.c.bf16 %v3954, %v3946
        %v4003 = vpack.c.bf16 %v3955, %v3947
        %v4004 = vpack.c.bf16 %v3956, %v3948
        %v4005 = vpack.c.bf16 %v3957, %v3949
        %v4006 = vpack.c.bf16 %v3958, %v3950
        %v4007 = vpack.c.bf16 %v3959, %v3951
        %v4008 = vpack.c.bf16 %v3968, %v3960
        %v4009 = vpack.c.bf16 %v3969, %v3961
        %v4010 = vpack.c.bf16 %v3970, %v3962
        %v4011 = vpack.c.bf16 %v3971, %v3963
        %v4012 = vpack.c.bf16 %v3972, %v3964
        %v4013 = vpack.c.bf16 %v3973, %v3965
        %v4014 = vpack.c.bf16 %v3974, %v3966
        %v4015 = vpack.c.bf16 %v3975, %v3967
        %v4016 = vpack.c.bf16 %v3984, %v3976
        %v4017 = vpack.c.bf16 %v3985, %v3977
        %v4018 = vpack.c.bf16 %v3986, %v3978
        %v4019 = vpack.c.bf16 %v3987, %v3979
        %v4020 = vpack.c.bf16 %v3988, %v3980
        %v4021 = vpack.c.bf16 %v3989, %v3981
        %v4022 = vpack.c.bf16 %v3990, %v3982
        %v4023 = vpack.c.bf16 %v3991, %v3983
        %v4024 = vpack.c.bf16 %v3992, %v3992
        %v4025 = vpack.c.bf16 %v3993, %v3993
        %v4026 = vpack.c.bf16 %v3994, %v3994
        %v4027 = vpack.c.bf16 %v3995, %v3995
        %v4028 = vpack.c.bf16 %v3996, %v3996
        %v4029 = vpack.c.bf16 %v3997, %v3997
        %v4030 = vpack.c.bf16 %v3998, %v3998
        %v4031 = vpack.c.bf16 %v3999, %v3999
        %v4032 = vld [vmem:[%s990] sm:$0xff]
        %v4033 = vld [vmem:[%s990 + $0x8] sm:$0xff]
        %v4034 = vld [vmem:[%s990 + $0x10] sm:$0xff]
        %v4035 = vld [vmem:[%s990 + $0x18] sm:$0xff]
        %v4036 = vld [vmem:[%s990 + $0x20] sm:$0xff]
        %v4037 = vld [vmem:[%s990 + $0x28] sm:$0xff]
        %v4038 = vld [vmem:[%s990 + $0x30] sm:$0xff]
        %v4039 = vld [vmem:[%s990 + $0x38] sm:$0xff]
        %v4040 = vld [vmem:[%s990 + $0x40] sm:$0xff]
        %v4041 = vld [vmem:[%s990 + $0x48] sm:$0xff]
        %v4042 = vld [vmem:[%s990 + $0x50] sm:$0xff]
        %v4043 = vld [vmem:[%s990 + $0x58] sm:$0xff]
        %v4044 = vld [vmem:[%s990 + $0x60] sm:$0xff]
        %v4045 = vld [vmem:[%s990 + $0x68] sm:$0xff]
        %v4046 = vld [vmem:[%s990 + $0x70] sm:$0xff]
        %v4047 = vld [vmem:[%s990 + $0x78] sm:$0xff]
        %v4048 = vld [vmem:[%s990 + $0x80] sm:$0xff]
        %v4049 = vld [vmem:[%s990 + $0x88] sm:$0xff]
        %v4050 = vld [vmem:[%s990 + $0x90] sm:$0xff]
        %v4051 = vld [vmem:[%s990 + $0x98] sm:$0xff]
        %v4052 = vld [vmem:[%s990 + $0xa0] sm:$0xff]
        %v4053 = vld [vmem:[%s990 + $0xa8] sm:$0xff]
        %v4054 = vld [vmem:[%s990 + $0xb0] sm:$0xff]
        %v4055 = vld [vmem:[%s990 + $0xb8] sm:$0xff]
        %v4056 = vld [vmem:[%s990 + $0xc0] sm:$0xff]
        %v4057 = vld [vmem:[%s990 + $0xc8] sm:$0xff]
        %v4058 = vld [vmem:[%s990 + $0xd0] sm:$0xff]
        %v4059 = vld [vmem:[%s990 + $0xd8] sm:$0xff]
        %v4060 = vld [vmem:[%s990 + $0xe0] sm:$0xff]
        %v4061 = vld [vmem:[%s990 + $0xe8] sm:$0xff]
        %v4062 = vld [vmem:[%s990 + $0xf0] sm:$0xff]
        %v4063 = vld [vmem:[%s990 + $0xf8] sm:$0xff]
        %v4064 = vld [vmem:[%s990 + $0x100] sm:$0xff]
        %v4065 = vld [vmem:[%s990 + $0x108] sm:$0xff]
        %v4066 = vld [vmem:[%s990 + $0x110] sm:$0xff]
        %v4067 = vld [vmem:[%s990 + $0x118] sm:$0xff]
        %v4068 = vld [vmem:[%s990 + $0x120] sm:$0xff]
        %v4069 = vld [vmem:[%s990 + $0x128] sm:$0xff]
        %v4070 = vld [vmem:[%s990 + $0x130] sm:$0xff]
        %v4071 = vld [vmem:[%s990 + $0x138] sm:$0xff]
        %v4072 = vld [vmem:[%s990 + $0x140] sm:$0xff]
        %v4073 = vld [vmem:[%s990 + $0x148] sm:$0xff]
        %v4074 = vld [vmem:[%s990 + $0x150] sm:$0xff]
        %v4075 = vld [vmem:[%s990 + $0x158] sm:$0xff]
        %v4076 = vld [vmem:[%s990 + $0x160] sm:$0xff]
        %v4077 = vld [vmem:[%s990 + $0x168] sm:$0xff]
        %v4078 = vld [vmem:[%s990 + $0x170] sm:$0xff]
        %v4079 = vld [vmem:[%s990 + $0x178] sm:$0xff]
        %v4080 = vld [vmem:[%s990 + $0x180] sm:$0xff]
        %v4081 = vld [vmem:[%s990 + $0x188] sm:$0xff]
        %v4082 = vld [vmem:[%s990 + $0x190] sm:$0xff]
        %v4083 = vld [vmem:[%s990 + $0x198] sm:$0xff]
        %v4084 = vld [vmem:[%s990 + $0x1a0] sm:$0xff]
        %v4085 = vld [vmem:[%s990 + $0x1a8] sm:$0xff]
        %v4086 = vld [vmem:[%s990 + $0x1b0] sm:$0xff]
        %v4087 = vld [vmem:[%s990 + $0x1b8] sm:$0xff]
        %v4088 = vld [vmem:[%s990 + $0x1c0] sm:$0xff]
        %v4089 = vld [vmem:[%s990 + $0x1c8] sm:$0xff]
        %v4090 = vld [vmem:[%s990 + $0x1d0] sm:$0xff]
        %v4091 = vld [vmem:[%s990 + $0x1d8] sm:$0xff]
        %v4092 = vld [vmem:[%s990 + $0x1e0] sm:$0xff]
        %v4093 = vld [vmem:[%s990 + $0x1e8] sm:$0xff]
        %v4094 = vld [vmem:[%s990 + $0x1f0] sm:$0xff]
        %v4095 = vld [vmem:[%s990 + $0x1f8] sm:$0xff]
        %v4096 = vld [vmem:[%s990 + $0x200] sm:$0xff]
        %v4097 = vld [vmem:[%s990 + $0x208] sm:$0xff]
        %v4098 = vld [vmem:[%s990 + $0x210] sm:$0xff]
        %v4099 = vld [vmem:[%s990 + $0x218] sm:$0xff]
        %v4100 = vld [vmem:[%s990 + $0x220] sm:$0xff]
        %v4101 = vld [vmem:[%s990 + $0x228] sm:$0xff]
        %v4102 = vld [vmem:[%s990 + $0x230] sm:$0xff]
        %v4103 = vld [vmem:[%s990 + $0x238] sm:$0xff]
        %v4104 = vld [vmem:[%s990 + $0x240] sm:$0xff]
        %v4105 = vld [vmem:[%s990 + $0x248] sm:$0xff]
        %v4106 = vld [vmem:[%s990 + $0x250] sm:$0xff]
        %v4107 = vld [vmem:[%s990 + $0x258] sm:$0xff]
        %v4108 = vld [vmem:[%s990 + $0x260] sm:$0xff]
        %v4109 = vld [vmem:[%s990 + $0x268] sm:$0xff]
        %v4110 = vld [vmem:[%s990 + $0x270] sm:$0xff]
        %v4111 = vld [vmem:[%s990 + $0x278] sm:$0xff]
        %v4112 = vld [vmem:[%s990 + $0x280] sm:$0xff]
        %v4113 = vld [vmem:[%s990 + $0x288] sm:$0xff]
        %v4114 = vld [vmem:[%s990 + $0x290] sm:$0xff]
        %v4115 = vld [vmem:[%s990 + $0x298] sm:$0xff]
        %v4116 = vld [vmem:[%s990 + $0x2a0] sm:$0xff]
        %v4117 = vld [vmem:[%s990 + $0x2a8] sm:$0xff]
        %v4118 = vld [vmem:[%s990 + $0x2b0] sm:$0xff]
        %v4119 = vld [vmem:[%s990 + $0x2b8] sm:$0xff]
        %v4120 = vld [vmem:[%s990 + $0x2c0] sm:$0xff]
        %v4121 = vld [vmem:[%s990 + $0x2c8] sm:$0xff]
        %v4122 = vld [vmem:[%s990 + $0x2d0] sm:$0xff]
        %v4123 = vld [vmem:[%s990 + $0x2d8] sm:$0xff]
        %v4124 = vld [vmem:[%s990 + $0x2e0] sm:$0xff]
        %v4125 = vld [vmem:[%s990 + $0x2e8] sm:$0xff]
        %v4126 = vld [vmem:[%s990 + $0x2f0] sm:$0xff]
        %v4127 = vld [vmem:[%s990 + $0x2f8] sm:$0xff]
        %v4128 = vld [vmem:[%s990 + $0x300] sm:$0xff]
        %v4129 = vld [vmem:[%s990 + $0x308] sm:$0xff]
        %v4130 = vld [vmem:[%s990 + $0x310] sm:$0xff]
        %v4131 = vld [vmem:[%s990 + $0x318] sm:$0xff]
        %v4132 = vld [vmem:[%s990 + $0x320] sm:$0xff]
        %v4133 = vld [vmem:[%s990 + $0x328] sm:$0xff]
        %v4134 = vld [vmem:[%s990 + $0x330] sm:$0xff]
        %v4135 = vld [vmem:[%s990 + $0x338] sm:$0xff]
        %v4136 = vld [vmem:[%s990 + $0x340] sm:$0xff]
        %v4137 = vld [vmem:[%s990 + $0x348] sm:$0xff]
        %v4138 = vld [vmem:[%s990 + $0x350] sm:$0xff]
        %v4139 = vld [vmem:[%s990 + $0x358] sm:$0xff]
        %v4140 = vld [vmem:[%s990 + $0x360] sm:$0xff]
        %v4141 = vld [vmem:[%s990 + $0x368] sm:$0xff]
        %v4142 = vld [vmem:[%s990 + $0x370] sm:$0xff]
        %v4143 = vld [vmem:[%s990 + $0x378] sm:$0xff]
        %v4144 = vld [vmem:[%s990 + $0x380] sm:$0xff]
        %v4145 = vld [vmem:[%s990 + $0x388] sm:$0xff]
        %v4146 = vld [vmem:[%s990 + $0x390] sm:$0xff]
        %v4147 = vld [vmem:[%s990 + $0x398] sm:$0xff]
        %v4148 = vld [vmem:[%s990 + $0x3a0] sm:$0xff]
        %v4149 = vld [vmem:[%s990 + $0x3a8] sm:$0xff]
        %v4150 = vld [vmem:[%s990 + $0x3b0] sm:$0xff]
        %v4151 = vld [vmem:[%s990 + $0x3b8] sm:$0xff]
        %v4152 = vld [vmem:[%s990 + $0x3c0] sm:$0xff]
        %v4153 = vld [vmem:[%s990 + $0x3c8] sm:$0xff]
        %v4154 = vld [vmem:[%s990 + $0x3d0] sm:$0xff]
        %v4155 = vld [vmem:[%s990 + $0x3d8] sm:$0xff]
        %v4156 = vld [vmem:[%s990 + $0x3e0] sm:$0xff]
        %v4157 = vld [vmem:[%s990 + $0x3e8] sm:$0xff]
        %v4158 = vld [vmem:[%s990 + $0x3f0] sm:$0xff]
        %v4159 = vld [vmem:[%s990 + $0x3f8] sm:$0xff]
        %v4160 = vld [vmem:[%s990 + $0x400] sm:$0xff]
        %v4161 = vld [vmem:[%s990 + $0x408] sm:$0xff]
        %v4162 = vld [vmem:[%s990 + $0x410] sm:$0xff]
        %v4163 = vld [vmem:[%s990 + $0x418] sm:$0xff]
        %v4164 = vld [vmem:[%s990 + $0x420] sm:$0xff]
        %v4165 = vld [vmem:[%s990 + $0x428] sm:$0xff]
        %v4166 = vld [vmem:[%s990 + $0x430] sm:$0xff]
        %v4167 = vld [vmem:[%s990 + $0x438] sm:$0xff]
        %v4168 = vld [vmem:[%s990 + $0x440] sm:$0xff]
        %v4169 = vld [vmem:[%s990 + $0x448] sm:$0xff]
        %v4170 = vld [vmem:[%s990 + $0x450] sm:$0xff]
        %v4171 = vld [vmem:[%s990 + $0x458] sm:$0xff]
        %v4172 = vld [vmem:[%s990 + $0x460] sm:$0xff]
        %v4173 = vld [vmem:[%s990 + $0x468] sm:$0xff]
        %v4174 = vld [vmem:[%s990 + $0x470] sm:$0xff]
        %v4175 = vld [vmem:[%s990 + $0x478] sm:$0xff]
        %v4176 = vld [vmem:[%s990 + $0x480] sm:$0xff]
        %v4177 = vld [vmem:[%s990 + $0x488] sm:$0xff]
        %v4178 = vld [vmem:[%s990 + $0x490] sm:$0xff]
        %v4179 = vld [vmem:[%s990 + $0x498] sm:$0xff]
        %v4180 = vld [vmem:[%s990 + $0x4a0] sm:$0xff]
        %v4181 = vld [vmem:[%s990 + $0x4a8] sm:$0xff]
        %v4182 = vld [vmem:[%s990 + $0x4b0] sm:$0xff]
        %v4183 = vld [vmem:[%s990 + $0x4b8] sm:$0xff]
        %v4184 = vld [vmem:[%s990 + $0x4c0] sm:$0xff]
        %v4185 = vld [vmem:[%s990 + $0x4c8] sm:$0xff]
        %v4186 = vld [vmem:[%s990 + $0x4d0] sm:$0xff]
        %v4187 = vld [vmem:[%s990 + $0x4d8] sm:$0xff]
        %v4188 = vld [vmem:[%s990 + $0x4e0] sm:$0xff]
        %v4189 = vld [vmem:[%s990 + $0x4e8] sm:$0xff]
        %v4190 = vld [vmem:[%s990 + $0x4f0] sm:$0xff]
        %v4191 = vld [vmem:[%s990 + $0x4f8] sm:$0xff]
        %v4192 = vld [vmem:[%s990 + $0x500] sm:$0xff]
        %v4193 = vld [vmem:[%s990 + $0x508] sm:$0xff]
        %v4194 = vld [vmem:[%s990 + $0x510] sm:$0xff]
        %v4195 = vld [vmem:[%s990 + $0x518] sm:$0xff]
        %v4196 = vld [vmem:[%s990 + $0x520] sm:$0xff]
        %v4197 = vld [vmem:[%s990 + $0x528] sm:$0xff]
        %v4198 = vld [vmem:[%s990 + $0x530] sm:$0xff]
        %v4199 = vld [vmem:[%s990 + $0x538] sm:$0xff]
        %v4200 = vld [vmem:[%s990 + $0x540] sm:$0xff]
        %v4201 = vld [vmem:[%s990 + $0x548] sm:$0xff]
        %v4202 = vld [vmem:[%s990 + $0x550] sm:$0xff]
        %v4203 = vld [vmem:[%s990 + $0x558] sm:$0xff]
        %v4204 = vld [vmem:[%s990 + $0x560] sm:$0xff]
        %v4205 = vld [vmem:[%s990 + $0x568] sm:$0xff]
        %v4206 = vld [vmem:[%s990 + $0x570] sm:$0xff]
        %v4207 = vld [vmem:[%s990 + $0x578] sm:$0xff]
        %v4208 = vld [vmem:[%s990 + $0x580] sm:$0xff]
        %v4209 = vld [vmem:[%s990 + $0x588] sm:$0xff]
        %v4210 = vld [vmem:[%s990 + $0x590] sm:$0xff]
        %v4211 = vld [vmem:[%s990 + $0x598] sm:$0xff]
        %v4212 = vld [vmem:[%s990 + $0x5a0] sm:$0xff]
        %v4213 = vld [vmem:[%s990 + $0x5a8] sm:$0xff]
        %v4214 = vld [vmem:[%s990 + $0x5b0] sm:$0xff]
        %v4215 = vld [vmem:[%s990 + $0x5b8] sm:$0xff]
        %v4216 = vld [vmem:[%s990 + $0x5c0] sm:$0xff]
        %v4217 = vld [vmem:[%s990 + $0x5c8] sm:$0xff]
        %v4218 = vld [vmem:[%s990 + $0x5d0] sm:$0xff]
        %v4219 = vld [vmem:[%s990 + $0x5d8] sm:$0xff]
        %v4220 = vld [vmem:[%s990 + $0x5e0] sm:$0xff]
        %v4221 = vld [vmem:[%s990 + $0x5e8] sm:$0xff]
        %v4222 = vld [vmem:[%s990 + $0x5f0] sm:$0xff]
        %v4223 = vld [vmem:[%s990 + $0x5f8] sm:$0xff]
        %v4224 = vld [vmem:[%s990 + $0x600] sm:$0xff]
        %v4225 = vld [vmem:[%s990 + $0x608] sm:$0xff]
        %v4226 = vld [vmem:[%s990 + $0x610] sm:$0xff]
        %v4227 = vld [vmem:[%s990 + $0x618] sm:$0xff]
        %v4228 = vld [vmem:[%s990 + $0x620] sm:$0xff]
        %v4229 = vld [vmem:[%s990 + $0x628] sm:$0xff]
        %v4230 = vld [vmem:[%s990 + $0x630] sm:$0xff]
        %v4231 = vld [vmem:[%s990 + $0x638] sm:$0xff]
        %v4232 = vld [vmem:[%s990 + $0x640] sm:$0xff]
        %v4233 = vld [vmem:[%s990 + $0x648] sm:$0xff]
        %v4234 = vld [vmem:[%s990 + $0x650] sm:$0xff]
        %v4235 = vld [vmem:[%s990 + $0x658] sm:$0xff]
        %v4236 = vld [vmem:[%s990 + $0x660] sm:$0xff]
        %v4237 = vld [vmem:[%s990 + $0x668] sm:$0xff]
        %v4238 = vld [vmem:[%s990 + $0x670] sm:$0xff]
        %v4239 = vld [vmem:[%s990 + $0x678] sm:$0xff]
        %v4240 = vld [vmem:[%s990 + $0x680] sm:$0xff]
        %v4241 = vld [vmem:[%s990 + $0x688] sm:$0xff]
        %v4242 = vld [vmem:[%s990 + $0x690] sm:$0xff]
        %v4243 = vld [vmem:[%s990 + $0x698] sm:$0xff]
        %v4244 = vld [vmem:[%s990 + $0x6a0] sm:$0xff]
        %v4245 = vld [vmem:[%s990 + $0x6a8] sm:$0xff]
        %v4246 = vld [vmem:[%s990 + $0x6b0] sm:$0xff]
        %v4247 = vld [vmem:[%s990 + $0x6b8] sm:$0xff]
        %v4248 = vld [vmem:[%s990 + $0x6c0] sm:$0xff]
        %v4249 = vld [vmem:[%s990 + $0x6c8] sm:$0xff]
        %v4250 = vld [vmem:[%s990 + $0x6d0] sm:$0xff]
        %v4251 = vld [vmem:[%s990 + $0x6d8] sm:$0xff]
        %v4252 = vld [vmem:[%s990 + $0x6e0] sm:$0xff]
        %v4253 = vld [vmem:[%s990 + $0x6e8] sm:$0xff]
        %v4254 = vld [vmem:[%s990 + $0x6f0] sm:$0xff]
        %v4255 = vld [vmem:[%s990 + $0x6f8] sm:$0xff]
        %v4256 = vld [vmem:[%s990 + $0x700] sm:$0xff]
        %v4257 = vld [vmem:[%s990 + $0x708] sm:$0xff]
        %v4258 = vld [vmem:[%s990 + $0x710] sm:$0xff]
        %v4259 = vld [vmem:[%s990 + $0x718] sm:$0xff]
        %v4260 = vld [vmem:[%s990 + $0x720] sm:$0xff]
        %v4261 = vld [vmem:[%s990 + $0x728] sm:$0xff]
        %v4262 = vld [vmem:[%s990 + $0x730] sm:$0xff]
        %v4263 = vld [vmem:[%s990 + $0x738] sm:$0xff]
        %v4264 = vld [vmem:[%s990 + $0x740] sm:$0xff]
        %v4265 = vld [vmem:[%s990 + $0x748] sm:$0xff]
        %v4266 = vld [vmem:[%s990 + $0x750] sm:$0xff]
        %v4267 = vld [vmem:[%s990 + $0x758] sm:$0xff]
        %v4268 = vld [vmem:[%s990 + $0x760] sm:$0xff]
        %v4269 = vld [vmem:[%s990 + $0x768] sm:$0xff]
        %v4270 = vld [vmem:[%s990 + $0x770] sm:$0xff]
        %v4271 = vld [vmem:[%s990 + $0x778] sm:$0xff]
        %v4272 = vld [vmem:[%s990 + $0x780] sm:$0xff]
        %v4273 = vld [vmem:[%s990 + $0x788] sm:$0xff]
        %v4274 = vld [vmem:[%s990 + $0x790] sm:$0xff]
        %v4275 = vld [vmem:[%s990 + $0x798] sm:$0xff]
        %v4276 = vld [vmem:[%s990 + $0x7a0] sm:$0xff]
        %v4277 = vld [vmem:[%s990 + $0x7a8] sm:$0xff]
        %v4278 = vld [vmem:[%s990 + $0x7b0] sm:$0xff]
        %v4279 = vld [vmem:[%s990 + $0x7b8] sm:$0xff]
        %v4280 = vld [vmem:[%s990 + $0x7c0] sm:$0xff]
        %v4281 = vld [vmem:[%s990 + $0x7c8] sm:$0xff]
        %v4282 = vld [vmem:[%s990 + $0x7d0] sm:$0xff]
        %v4283 = vld [vmem:[%s990 + $0x7d8] sm:$0xff]
        %v4284 = vld [vmem:[%s990 + $0x7e0] sm:$0xff]
        %v4285 = vld [vmem:[%s990 + $0x7e8] sm:$0xff]
        %v4286 = vld [vmem:[%s990 + $0x7f0] sm:$0xff]
        %v4287 = vld [vmem:[%s990 + $0x7f8] sm:$0xff]
        %v4544 = vunpack.c.l.b16 %v4032
        %v4545 = vunpack.c.h.b16 %v4032
        %v4546 = vunpack.c.l.b16 %v4033
        %v4547 = vunpack.c.h.b16 %v4033
        %v4548 = vunpack.c.l.b16 %v4034
        %v4549 = vunpack.c.h.b16 %v4034
        %v4550 = vunpack.c.l.b16 %v4035
        %v4551 = vunpack.c.h.b16 %v4035
        %v4552 = vunpack.c.l.b16 %v4036
        %v4553 = vunpack.c.h.b16 %v4036
        %v4554 = vunpack.c.l.b16 %v4037
        %v4555 = vunpack.c.h.b16 %v4037
        %v4556 = vunpack.c.l.b16 %v4038
        %v4557 = vunpack.c.h.b16 %v4038
        %v4558 = vunpack.c.l.b16 %v4039
        %v4559 = vunpack.c.h.b16 %v4039
        %v4560 = vunpack.c.l.b16 %v4040
        %v4561 = vunpack.c.h.b16 %v4040
        %v4562 = vunpack.c.l.b16 %v4041
        %v4563 = vunpack.c.h.b16 %v4041
        %v4564 = vunpack.c.l.b16 %v4042
        %v4565 = vunpack.c.h.b16 %v4042
        %v4566 = vunpack.c.l.b16 %v4043
        %v4567 = vunpack.c.h.b16 %v4043
        %v4568 = vunpack.c.l.b16 %v4044
        %v4569 = vunpack.c.h.b16 %v4044
        %v4570 = vunpack.c.l.b16 %v4045
        %v4571 = vunpack.c.h.b16 %v4045
        %v4572 = vunpack.c.l.b16 %v4046
        %v4573 = vunpack.c.h.b16 %v4046
        %v4574 = vunpack.c.l.b16 %v4047
        %v4575 = vunpack.c.h.b16 %v4047
        %v4576 = vunpack.c.l.b16 %v4048
        %v4577 = vunpack.c.h.b16 %v4048
        %v4578 = vunpack.c.l.b16 %v4049
        %v4579 = vunpack.c.h.b16 %v4049
        %v4580 = vunpack.c.l.b16 %v4050
        %v4581 = vunpack.c.h.b16 %v4050
        %v4582 = vunpack.c.l.b16 %v4051
        %v4583 = vunpack.c.h.b16 %v4051
        %v4584 = vunpack.c.l.b16 %v4052
        %v4585 = vunpack.c.h.b16 %v4052
        %v4586 = vunpack.c.l.b16 %v4053
        %v4587 = vunpack.c.h.b16 %v4053
        %v4588 = vunpack.c.l.b16 %v4054
        %v4589 = vunpack.c.h.b16 %v4054
        %v4590 = vunpack.c.l.b16 %v4055
        %v4591 = vunpack.c.h.b16 %v4055
        %v4592 = vunpack.c.l.b16 %v4056
        %v4593 = vunpack.c.h.b16 %v4056
        %v4594 = vunpack.c.l.b16 %v4057
        %v4595 = vunpack.c.h.b16 %v4057
        %v4596 = vunpack.c.l.b16 %v4058
        %v4597 = vunpack.c.h.b16 %v4058
        %v4598 = vunpack.c.l.b16 %v4059
        %v4599 = vunpack.c.h.b16 %v4059
        %v4600 = vunpack.c.l.b16 %v4060
        %v4601 = vunpack.c.h.b16 %v4060
        %v4602 = vunpack.c.l.b16 %v4061
        %v4603 = vunpack.c.h.b16 %v4061
        %v4604 = vunpack.c.l.b16 %v4062
        %v4605 = vunpack.c.h.b16 %v4062
        %v4606 = vunpack.c.l.b16 %v4063
        %v4607 = vunpack.c.h.b16 %v4063
        %v4608 = vunpack.c.l.b16 %v4064
        %v4609 = vunpack.c.h.b16 %v4064
        %v4610 = vunpack.c.l.b16 %v4065
        %v4611 = vunpack.c.h.b16 %v4065
        %v4612 = vunpack.c.l.b16 %v4066
        %v4613 = vunpack.c.h.b16 %v4066
        %v4614 = vunpack.c.l.b16 %v4067
        %v4615 = vunpack.c.h.b16 %v4067
        %v4616 = vunpack.c.l.b16 %v4068
        %v4617 = vunpack.c.h.b16 %v4068
        %v4618 = vunpack.c.l.b16 %v4069
        %v4619 = vunpack.c.h.b16 %v4069
        %v4620 = vunpack.c.l.b16 %v4070
        %v4621 = vunpack.c.h.b16 %v4070
        %v4622 = vunpack.c.l.b16 %v4071
        %v4623 = vunpack.c.h.b16 %v4071
        %v4624 = vunpack.c.l.b16 %v4072
        %v4625 = vunpack.c.h.b16 %v4072
        %v4626 = vunpack.c.l.b16 %v4073
        %v4627 = vunpack.c.h.b16 %v4073
        %v4628 = vunpack.c.l.b16 %v4074
        %v4629 = vunpack.c.h.b16 %v4074
        %v4630 = vunpack.c.l.b16 %v4075
        %v4631 = vunpack.c.h.b16 %v4075
        %v4632 = vunpack.c.l.b16 %v4076
        %v4633 = vunpack.c.h.b16 %v4076
        %v4634 = vunpack.c.l.b16 %v4077
        %v4635 = vunpack.c.h.b16 %v4077
        %v4636 = vunpack.c.l.b16 %v4078
        %v4637 = vunpack.c.h.b16 %v4078
        %v4638 = vunpack.c.l.b16 %v4079
        %v4639 = vunpack.c.h.b16 %v4079
        %v4640 = vunpack.c.l.b16 %v4080
        %v4641 = vunpack.c.h.b16 %v4080
        %v4642 = vunpack.c.l.b16 %v4081
        %v4643 = vunpack.c.h.b16 %v4081
        %v4644 = vunpack.c.l.b16 %v4082
        %v4645 = vunpack.c.h.b16 %v4082
        %v4646 = vunpack.c.l.b16 %v4083
        %v4647 = vunpack.c.h.b16 %v4083
        %v4648 = vunpack.c.l.b16 %v4084
        %v4649 = vunpack.c.h.b16 %v4084
        %v4650 = vunpack.c.l.b16 %v4085
        %v4651 = vunpack.c.h.b16 %v4085
        %v4652 = vunpack.c.l.b16 %v4086
        %v4653 = vunpack.c.h.b16 %v4086
        %v4654 = vunpack.c.l.b16 %v4087
        %v4655 = vunpack.c.h.b16 %v4087
        %v4656 = vunpack.c.l.b16 %v4088
        %v4657 = vunpack.c.h.b16 %v4088
        %v4658 = vunpack.c.l.b16 %v4089
        %v4659 = vunpack.c.h.b16 %v4089
        %v4660 = vunpack.c.l.b16 %v4090
        %v4661 = vunpack.c.h.b16 %v4090
        %v4662 = vunpack.c.l.b16 %v4091
        %v4663 = vunpack.c.h.b16 %v4091
        %v4664 = vunpack.c.l.b16 %v4092
        %v4665 = vunpack.c.h.b16 %v4092
        %v4666 = vunpack.c.l.b16 %v4093
        %v4667 = vunpack.c.h.b16 %v4093
        %v4668 = vunpack.c.l.b16 %v4094
        %v4669 = vunpack.c.h.b16 %v4094
        %v4670 = vunpack.c.l.b16 %v4095
        %v4671 = vunpack.c.h.b16 %v4095
        %v4672 = vunpack.c.l.b16 %v4096
        %v4673 = vunpack.c.h.b16 %v4096
        %v4674 = vunpack.c.l.b16 %v4097
        %v4675 = vunpack.c.h.b16 %v4097
        %v4676 = vunpack.c.l.b16 %v4098
        %v4677 = vunpack.c.h.b16 %v4098
        %v4678 = vunpack.c.l.b16 %v4099
        %v4679 = vunpack.c.h.b16 %v4099
        %v4680 = vunpack.c.l.b16 %v4100
        %v4681 = vunpack.c.h.b16 %v4100
        %v4682 = vunpack.c.l.b16 %v4101
        %v4683 = vunpack.c.h.b16 %v4101
        %v4684 = vunpack.c.l.b16 %v4102
        %v4685 = vunpack.c.h.b16 %v4102
        %v4686 = vunpack.c.l.b16 %v4103
        %v4687 = vunpack.c.h.b16 %v4103
        %v4688 = vunpack.c.l.b16 %v4104
        %v4689 = vunpack.c.h.b16 %v4104
        %v4690 = vunpack.c.l.b16 %v4105
        %v4691 = vunpack.c.h.b16 %v4105
        %v4692 = vunpack.c.l.b16 %v4106
        %v4693 = vunpack.c.h.b16 %v4106
        %v4694 = vunpack.c.l.b16 %v4107
        %v4695 = vunpack.c.h.b16 %v4107
        %v4696 = vunpack.c.l.b16 %v4108
        %v4697 = vunpack.c.h.b16 %v4108
        %v4698 = vunpack.c.l.b16 %v4109
        %v4699 = vunpack.c.h.b16 %v4109
        %v4700 = vunpack.c.l.b16 %v4110
        %v4701 = vunpack.c.h.b16 %v4110
        %v4702 = vunpack.c.l.b16 %v4111
        %v4703 = vunpack.c.h.b16 %v4111
        %v4704 = vunpack.c.l.b16 %v4112
        %v4705 = vunpack.c.h.b16 %v4112
        %v4706 = vunpack.c.l.b16 %v4113
        %v4707 = vunpack.c.h.b16 %v4113
        %v4708 = vunpack.c.l.b16 %v4114
        %v4709 = vunpack.c.h.b16 %v4114
        %v4710 = vunpack.c.l.b16 %v4115
        %v4711 = vunpack.c.h.b16 %v4115
        %v4712 = vunpack.c.l.b16 %v4116
        %v4713 = vunpack.c.h.b16 %v4116
        %v4714 = vunpack.c.l.b16 %v4117
        %v4715 = vunpack.c.h.b16 %v4117
        %v4716 = vunpack.c.l.b16 %v4118
        %v4717 = vunpack.c.h.b16 %v4118
        %v4718 = vunpack.c.l.b16 %v4119
        %v4719 = vunpack.c.h.b16 %v4119
        %v4720 = vunpack.c.l.b16 %v4120
        %v4721 = vunpack.c.h.b16 %v4120
        %v4722 = vunpack.c.l.b16 %v4121
        %v4723 = vunpack.c.h.b16 %v4121
        %v4724 = vunpack.c.l.b16 %v4122
        %v4725 = vunpack.c.h.b16 %v4122
        %v4726 = vunpack.c.l.b16 %v4123
        %v4727 = vunpack.c.h.b16 %v4123
        %v4728 = vunpack.c.l.b16 %v4124
        %v4729 = vunpack.c.h.b16 %v4124
        %v4730 = vunpack.c.l.b16 %v4125
        %v4731 = vunpack.c.h.b16 %v4125
        %v4732 = vunpack.c.l.b16 %v4126
        %v4733 = vunpack.c.h.b16 %v4126
        %v4734 = vunpack.c.l.b16 %v4127
        %v4735 = vunpack.c.h.b16 %v4127
        %v4736 = vunpack.c.l.b16 %v4128
        %v4737 = vunpack.c.h.b16 %v4128
        %v4738 = vunpack.c.l.b16 %v4129
        %v4739 = vunpack.c.h.b16 %v4129
        %v4740 = vunpack.c.l.b16 %v4130
        %v4741 = vunpack.c.h.b16 %v4130
        %v4742 = vunpack.c.l.b16 %v4131
        %v4743 = vunpack.c.h.b16 %v4131
        %v4744 = vunpack.c.l.b16 %v4132
        %v4745 = vunpack.c.h.b16 %v4132
        %v4746 = vunpack.c.l.b16 %v4133
        %v4747 = vunpack.c.h.b16 %v4133
        %v4748 = vunpack.c.l.b16 %v4134
        %v4749 = vunpack.c.h.b16 %v4134
        %v4750 = vunpack.c.l.b16 %v4135
        %v4751 = vunpack.c.h.b16 %v4135
        %v4752 = vunpack.c.l.b16 %v4136
        %v4753 = vunpack.c.h.b16 %v4136
        %v4754 = vunpack.c.l.b16 %v4137
        %v4755 = vunpack.c.h.b16 %v4137
        %v4756 = vunpack.c.l.b16 %v4138
        %v4757 = vunpack.c.h.b16 %v4138
        %v4758 = vunpack.c.l.b16 %v4139
        %v4759 = vunpack.c.h.b16 %v4139
        %v4760 = vunpack.c.l.b16 %v4140
        %v4761 = vunpack.c.h.b16 %v4140
        %v4762 = vunpack.c.l.b16 %v4141
        %v4763 = vunpack.c.h.b16 %v4141
        %v4764 = vunpack.c.l.b16 %v4142
        %v4765 = vunpack.c.h.b16 %v4142
        %v4766 = vunpack.c.l.b16 %v4143
        %v4767 = vunpack.c.h.b16 %v4143
        %v4768 = vunpack.c.l.b16 %v4144
        %v4769 = vunpack.c.h.b16 %v4144
        %v4770 = vunpack.c.l.b16 %v4145
        %v4771 = vunpack.c.h.b16 %v4145
        %v4772 = vunpack.c.l.b16 %v4146
        %v4773 = vunpack.c.h.b16 %v4146
        %v4774 = vunpack.c.l.b16 %v4147
        %v4775 = vunpack.c.h.b16 %v4147
        %v4776 = vunpack.c.l.b16 %v4148
        %v4777 = vunpack.c.h.b16 %v4148
        %v4778 = vunpack.c.l.b16 %v4149
        %v4779 = vunpack.c.h.b16 %v4149
        %v4780 = vunpack.c.l.b16 %v4150
        %v4781 = vunpack.c.h.b16 %v4150
        %v4782 = vunpack.c.l.b16 %v4151
        %v4783 = vunpack.c.h.b16 %v4151
        %v4784 = vunpack.c.l.b16 %v4152
        %v4785 = vunpack.c.h.b16 %v4152
        %v4786 = vunpack.c.l.b16 %v4153
        %v4787 = vunpack.c.h.b16 %v4153
        %v4788 = vunpack.c.l.b16 %v4154
        %v4789 = vunpack.c.h.b16 %v4154
        %v4790 = vunpack.c.l.b16 %v4155
        %v4791 = vunpack.c.h.b16 %v4155
        %v4792 = vunpack.c.l.b16 %v4156
        %v4793 = vunpack.c.h.b16 %v4156
        %v4794 = vunpack.c.l.b16 %v4157
        %v4795 = vunpack.c.h.b16 %v4157
        %v4796 = vunpack.c.l.b16 %v4158
        %v4797 = vunpack.c.h.b16 %v4158
        %v4798 = vunpack.c.l.b16 %v4159
        %v4799 = vunpack.c.h.b16 %v4159
        %v4800 = vunpack.c.l.b16 %v4160
        %v4801 = vunpack.c.h.b16 %v4160
        %v4802 = vunpack.c.l.b16 %v4161
        %v4803 = vunpack.c.h.b16 %v4161
        %v4804 = vunpack.c.l.b16 %v4162
        %v4805 = vunpack.c.h.b16 %v4162
        %v4806 = vunpack.c.l.b16 %v4163
        %v4807 = vunpack.c.h.b16 %v4163
        %v4808 = vunpack.c.l.b16 %v4164
        %v4809 = vunpack.c.h.b16 %v4164
        %v4810 = vunpack.c.l.b16 %v4165
        %v4811 = vunpack.c.h.b16 %v4165
        %v4812 = vunpack.c.l.b16 %v4166
        %v4813 = vunpack.c.h.b16 %v4166
        %v4814 = vunpack.c.l.b16 %v4167
        %v4815 = vunpack.c.h.b16 %v4167
        %v4816 = vunpack.c.l.b16 %v4168
        %v4817 = vunpack.c.h.b16 %v4168
        %v4818 = vunpack.c.l.b16 %v4169
        %v4819 = vunpack.c.h.b16 %v4169
        %v4820 = vunpack.c.l.b16 %v4170
        %v4821 = vunpack.c.h.b16 %v4170
        %v4822 = vunpack.c.l.b16 %v4171
        %v4823 = vunpack.c.h.b16 %v4171
        %v4824 = vunpack.c.l.b16 %v4172
        %v4825 = vunpack.c.h.b16 %v4172
        %v4826 = vunpack.c.l.b16 %v4173
        %v4827 = vunpack.c.h.b16 %v4173
        %v4828 = vunpack.c.l.b16 %v4174
        %v4829 = vunpack.c.h.b16 %v4174
        %v4830 = vunpack.c.l.b16 %v4175
        %v4831 = vunpack.c.h.b16 %v4175
        %v4832 = vunpack.c.l.b16 %v4176
        %v4833 = vunpack.c.h.b16 %v4176
        %v4834 = vunpack.c.l.b16 %v4177
        %v4835 = vunpack.c.h.b16 %v4177
        %v4836 = vunpack.c.l.b16 %v4178
        %v4837 = vunpack.c.h.b16 %v4178
        %v4838 = vunpack.c.l.b16 %v4179
        %v4839 = vunpack.c.h.b16 %v4179
        %v4840 = vunpack.c.l.b16 %v4180
        %v4841 = vunpack.c.h.b16 %v4180
        %v4842 = vunpack.c.l.b16 %v4181
        %v4843 = vunpack.c.h.b16 %v4181
        %v4844 = vunpack.c.l.b16 %v4182
        %v4845 = vunpack.c.h.b16 %v4182
        %v4846 = vunpack.c.l.b16 %v4183
        %v4847 = vunpack.c.h.b16 %v4183
        %v4848 = vunpack.c.l.b16 %v4184
        %v4849 = vunpack.c.h.b16 %v4184
        %v4850 = vunpack.c.l.b16 %v4185
        %v4851 = vunpack.c.h.b16 %v4185
        %v4852 = vunpack.c.l.b16 %v4186
        %v4853 = vunpack.c.h.b16 %v4186
        %v4854 = vunpack.c.l.b16 %v4187
        %v4855 = vunpack.c.h.b16 %v4187
        %v4856 = vunpack.c.l.b16 %v4188
        %v4857 = vunpack.c.h.b16 %v4188
        %v4858 = vunpack.c.l.b16 %v4189
        %v4859 = vunpack.c.h.b16 %v4189
        %v4860 = vunpack.c.l.b16 %v4190
        %v4861 = vunpack.c.h.b16 %v4190
        %v4862 = vunpack.c.l.b16 %v4191
        %v4863 = vunpack.c.h.b16 %v4191
        %v4864 = vunpack.c.l.b16 %v4192
        %v4865 = vunpack.c.h.b16 %v4192
        %v4866 = vunpack.c.l.b16 %v4193
        %v4867 = vunpack.c.h.b16 %v4193
        %v4868 = vunpack.c.l.b16 %v4194
        %v4869 = vunpack.c.h.b16 %v4194
        %v4870 = vunpack.c.l.b16 %v4195
        %v4871 = vunpack.c.h.b16 %v4195
        %v4872 = vunpack.c.l.b16 %v4196
        %v4873 = vunpack.c.h.b16 %v4196
        %v4874 = vunpack.c.l.b16 %v4197
        %v4875 = vunpack.c.h.b16 %v4197
        %v4876 = vunpack.c.l.b16 %v4198
        %v4877 = vunpack.c.h.b16 %v4198
        %v4878 = vunpack.c.l.b16 %v4199
        %v4879 = vunpack.c.h.b16 %v4199
        %v4880 = vunpack.c.l.b16 %v4200
        %v4881 = vunpack.c.h.b16 %v4200
        %v4882 = vunpack.c.l.b16 %v4201
        %v4883 = vunpack.c.h.b16 %v4201
        %v4884 = vunpack.c.l.b16 %v4202
        %v4885 = vunpack.c.h.b16 %v4202
        %v4886 = vunpack.c.l.b16 %v4203
        %v4887 = vunpack.c.h.b16 %v4203
        %v4888 = vunpack.c.l.b16 %v4204
        %v4889 = vunpack.c.h.b16 %v4204
        %v4890 = vunpack.c.l.b16 %v4205
        %v4891 = vunpack.c.h.b16 %v4205
        %v4892 = vunpack.c.l.b16 %v4206
        %v4893 = vunpack.c.h.b16 %v4206
        %v4894 = vunpack.c.l.b16 %v4207
        %v4895 = vunpack.c.h.b16 %v4207
        %v4896 = vunpack.c.l.b16 %v4208
        %v4897 = vunpack.c.h.b16 %v4208
        %v4898 = vunpack.c.l.b16 %v4209
        %v4899 = vunpack.c.h.b16 %v4209
        %v4900 = vunpack.c.l.b16 %v4210
        %v4901 = vunpack.c.h.b16 %v4210
        %v4902 = vunpack.c.l.b16 %v4211
        %v4903 = vunpack.c.h.b16 %v4211
        %v4904 = vunpack.c.l.b16 %v4212
        %v4905 = vunpack.c.h.b16 %v4212
        %v4906 = vunpack.c.l.b16 %v4213
        %v4907 = vunpack.c.h.b16 %v4213
        %v4908 = vunpack.c.l.b16 %v4214
        %v4909 = vunpack.c.h.b16 %v4214
        %v4910 = vunpack.c.l.b16 %v4215
        %v4911 = vunpack.c.h.b16 %v4215
        %v4912 = vunpack.c.l.b16 %v4216
        %v4913 = vunpack.c.h.b16 %v4216
        %v4914 = vunpack.c.l.b16 %v4217
        %v4915 = vunpack.c.h.b16 %v4217
        %v4916 = vunpack.c.l.b16 %v4218
        %v4917 = vunpack.c.h.b16 %v4218
        %v4918 = vunpack.c.l.b16 %v4219
        %v4919 = vunpack.c.h.b16 %v4219
        %v4920 = vunpack.c.l.b16 %v4220
        %v4921 = vunpack.c.h.b16 %v4220
        %v4922 = vunpack.c.l.b16 %v4221
        %v4923 = vunpack.c.h.b16 %v4221
        %v4924 = vunpack.c.l.b16 %v4222
        %v4925 = vunpack.c.h.b16 %v4222
        %v4926 = vunpack.c.l.b16 %v4223
        %v4927 = vunpack.c.h.b16 %v4223
        %v4928 = vunpack.c.l.b16 %v4224
        %v4929 = vunpack.c.h.b16 %v4224
        %v4930 = vunpack.c.l.b16 %v4225
        %v4931 = vunpack.c.h.b16 %v4225
        %v4932 = vunpack.c.l.b16 %v4226
        %v4933 = vunpack.c.h.b16 %v4226
        %v4934 = vunpack.c.l.b16 %v4227
        %v4935 = vunpack.c.h.b16 %v4227
        %v4936 = vunpack.c.l.b16 %v4228
        %v4937 = vunpack.c.h.b16 %v4228
        %v4938 = vunpack.c.l.b16 %v4229
        %v4939 = vunpack.c.h.b16 %v4229
        %v4940 = vunpack.c.l.b16 %v4230
        %v4941 = vunpack.c.h.b16 %v4230
        %v4942 = vunpack.c.l.b16 %v4231
        %v4943 = vunpack.c.h.b16 %v4231
        %v4944 = vunpack.c.l.b16 %v4232
        %v4945 = vunpack.c.h.b16 %v4232
        %v4946 = vunpack.c.l.b16 %v4233
        %v4947 = vunpack.c.h.b16 %v4233
        %v4948 = vunpack.c.l.b16 %v4234
        %v4949 = vunpack.c.h.b16 %v4234
        %v4950 = vunpack.c.l.b16 %v4235
        %v4951 = vunpack.c.h.b16 %v4235
        %v4952 = vunpack.c.l.b16 %v4236
        %v4953 = vunpack.c.h.b16 %v4236
        %v4954 = vunpack.c.l.b16 %v4237
        %v4955 = vunpack.c.h.b16 %v4237
        %v4956 = vunpack.c.l.b16 %v4238
        %v4957 = vunpack.c.h.b16 %v4238
        %v4958 = vunpack.c.l.b16 %v4239
        %v4959 = vunpack.c.h.b16 %v4239
        %v4960 = vunpack.c.l.b16 %v4240
        %v4961 = vunpack.c.h.b16 %v4240
        %v4962 = vunpack.c.l.b16 %v4241
        %v4963 = vunpack.c.h.b16 %v4241
        %v4964 = vunpack.c.l.b16 %v4242
        %v4965 = vunpack.c.h.b16 %v4242
        %v4966 = vunpack.c.l.b16 %v4243
        %v4967 = vunpack.c.h.b16 %v4243
        %v4968 = vunpack.c.l.b16 %v4244
        %v4969 = vunpack.c.h.b16 %v4244
        %v4970 = vunpack.c.l.b16 %v4245
        %v4971 = vunpack.c.h.b16 %v4245
        %v4972 = vunpack.c.l.b16 %v4246
        %v4973 = vunpack.c.h.b16 %v4246
        %v4974 = vunpack.c.l.b16 %v4247
        %v4975 = vunpack.c.h.b16 %v4247
        %v4976 = vunpack.c.l.b16 %v4248
        %v4977 = vunpack.c.h.b16 %v4248
        %v4978 = vunpack.c.l.b16 %v4249
        %v4979 = vunpack.c.h.b16 %v4249
        %v4980 = vunpack.c.l.b16 %v4250
        %v4981 = vunpack.c.h.b16 %v4250
        %v4982 = vunpack.c.l.b16 %v4251
        %v4983 = vunpack.c.h.b16 %v4251
        %v4984 = vunpack.c.l.b16 %v4252
        %v4985 = vunpack.c.h.b16 %v4252
        %v4986 = vunpack.c.l.b16 %v4253
        %v4987 = vunpack.c.h.b16 %v4253
        %v4988 = vunpack.c.l.b16 %v4254
        %v4989 = vunpack.c.h.b16 %v4254
        %v4990 = vunpack.c.l.b16 %v4255
        %v4991 = vunpack.c.h.b16 %v4255
        %v4992 = vunpack.c.l.b16 %v4256
        %v4993 = vunpack.c.h.b16 %v4256
        %v4994 = vunpack.c.l.b16 %v4257
        %v4995 = vunpack.c.h.b16 %v4257
        %v4996 = vunpack.c.l.b16 %v4258
        %v4997 = vunpack.c.h.b16 %v4258
        %v4998 = vunpack.c.l.b16 %v4259
        %v4999 = vunpack.c.h.b16 %v4259
        %v5000 = vunpack.c.l.b16 %v4260
        %v5001 = vunpack.c.h.b16 %v4260
        %v5002 = vunpack.c.l.b16 %v4261
        %v5003 = vunpack.c.h.b16 %v4261
        %v5004 = vunpack.c.l.b16 %v4262
        %v5005 = vunpack.c.h.b16 %v4262
        %v5006 = vunpack.c.l.b16 %v4263
        %v5007 = vunpack.c.h.b16 %v4263
        %v5008 = vunpack.c.l.b16 %v4264
        %v5009 = vunpack.c.h.b16 %v4264
        %v5010 = vunpack.c.l.b16 %v4265
        %v5011 = vunpack.c.h.b16 %v4265
        %v5012 = vunpack.c.l.b16 %v4266
        %v5013 = vunpack.c.h.b16 %v4266
        %v5014 = vunpack.c.l.b16 %v4267
        %v5015 = vunpack.c.h.b16 %v4267
        %v5016 = vunpack.c.l.b16 %v4268
        %v5017 = vunpack.c.h.b16 %v4268
        %v5018 = vunpack.c.l.b16 %v4269
        %v5019 = vunpack.c.h.b16 %v4269
        %v5020 = vunpack.c.l.b16 %v4270
        %v5021 = vunpack.c.h.b16 %v4270
        %v5022 = vunpack.c.l.b16 %v4271
        %v5023 = vunpack.c.h.b16 %v4271
        %v5024 = vunpack.c.l.b16 %v4272
        %v5025 = vunpack.c.h.b16 %v4272
        %v5026 = vunpack.c.l.b16 %v4273
        %v5027 = vunpack.c.h.b16 %v4273
        %v5028 = vunpack.c.l.b16 %v4274
        %v5029 = vunpack.c.h.b16 %v4274
        %v5030 = vunpack.c.l.b16 %v4275
        %v5031 = vunpack.c.h.b16 %v4275
        %v5032 = vunpack.c.l.b16 %v4276
        %v5033 = vunpack.c.h.b16 %v4276
        %v5034 = vunpack.c.l.b16 %v4277
        %v5035 = vunpack.c.h.b16 %v4277
        %v5036 = vunpack.c.l.b16 %v4278
        %v5037 = vunpack.c.h.b16 %v4278
        %v5038 = vunpack.c.l.b16 %v4279
        %v5039 = vunpack.c.h.b16 %v4279
        %v5040 = vunpack.c.l.b16 %v4280
        %v5041 = vunpack.c.h.b16 %v4280
        %v5042 = vunpack.c.l.b16 %v4281
        %v5043 = vunpack.c.h.b16 %v4281
        %v5044 = vunpack.c.l.b16 %v4282
        %v5045 = vunpack.c.h.b16 %v4282
        %v5046 = vunpack.c.l.b16 %v4283
        %v5047 = vunpack.c.h.b16 %v4283
        %v5048 = vunpack.c.l.b16 %v4284
        %v5049 = vunpack.c.h.b16 %v4284
        %v5050 = vunpack.c.l.b16 %v4285
        %v5051 = vunpack.c.h.b16 %v4285
        %v5052 = vunpack.c.l.b16 %v4286
        %v5053 = vunpack.c.h.b16 %v4286
        %v5054 = vunpack.c.l.b16 %v4287
        %v5055 = vunpack.c.h.b16 %v4287
        %v5056 = vpack.c.b16 %v4548, %v4544
        %v5057 = vpack.c.b16 %v4549, %v4545
        %v5058 = vpack.c.b16 %v4550, %v4546
        %v5059 = vpack.c.b16 %v4551, %v4547
        %v5060 = vpack.c.b16 %v4556, %v4552
        %v5061 = vpack.c.b16 %v4557, %v4553
        %v5062 = vpack.c.b16 %v4558, %v4554
        %v5063 = vpack.c.b16 %v4559, %v4555
        %v5064 = vpack.c.b16 %v4564, %v4560
        %v5065 = vpack.c.b16 %v4565, %v4561
        %v5066 = vpack.c.b16 %v4566, %v4562
        %v5067 = vpack.c.b16 %v4567, %v4563
        %v5068 = vpack.c.b16 %v4572, %v4568
        %v5069 = vpack.c.b16 %v4573, %v4569
        %v5070 = vpack.c.b16 %v4574, %v4570
        %v5071 = vpack.c.b16 %v4575, %v4571
        %v5072 = vpack.c.b16 %v4580, %v4576
        %v5073 = vpack.c.b16 %v4581, %v4577
        %v5074 = vpack.c.b16 %v4582, %v4578
        %v5075 = vpack.c.b16 %v4583, %v4579
        %v5076 = vpack.c.b16 %v4588, %v4584
        %v5077 = vpack.c.b16 %v4589, %v4585
        %v5078 = vpack.c.b16 %v4590, %v4586
        %v5079 = vpack.c.b16 %v4591, %v4587
        %v5080 = vpack.c.b16 %v4596, %v4592
        %v5081 = vpack.c.b16 %v4597, %v4593
        %v5082 = vpack.c.b16 %v4598, %v4594
        %v5083 = vpack.c.b16 %v4599, %v4595
        %v5084 = vpack.c.b16 %v4604, %v4600
        %v5085 = vpack.c.b16 %v4605, %v4601
        %v5086 = vpack.c.b16 %v4606, %v4602
        %v5087 = vpack.c.b16 %v4607, %v4603
        %v5088 = vpack.c.b16 %v4612, %v4608
        %v5089 = vpack.c.b16 %v4613, %v4609
        %v5090 = vpack.c.b16 %v4614, %v4610
        %v5091 = vpack.c.b16 %v4615, %v4611
        %v5092 = vpack.c.b16 %v4620, %v4616
        %v5093 = vpack.c.b16 %v4621, %v4617
        %v5094 = vpack.c.b16 %v4622, %v4618
        %v5095 = vpack.c.b16 %v4623, %v4619
        %v5096 = vpack.c.b16 %v4628, %v4624
        %v5097 = vpack.c.b16 %v4629, %v4625
        %v5098 = vpack.c.b16 %v4630, %v4626
        %v5099 = vpack.c.b16 %v4631, %v4627
        %v5100 = vpack.c.b16 %v4636, %v4632
        %v5101 = vpack.c.b16 %v4637, %v4633
        %v5102 = vpack.c.b16 %v4638, %v4634
        %v5103 = vpack.c.b16 %v4639, %v4635
        %v5104 = vpack.c.b16 %v4644, %v4640
        %v5105 = vpack.c.b16 %v4645, %v4641
        %v5106 = vpack.c.b16 %v4646, %v4642
        %v5107 = vpack.c.b16 %v4647, %v4643
        %v5108 = vpack.c.b16 %v4652, %v4648
        %v5109 = vpack.c.b16 %v4653, %v4649
        %v5110 = vpack.c.b16 %v4654, %v4650
        %v5111 = vpack.c.b16 %v4655, %v4651
        %v5112 = vpack.c.b16 %v4660, %v4656
        %v5113 = vpack.c.b16 %v4661, %v4657
        %v5114 = vpack.c.b16 %v4662, %v4658
        %v5115 = vpack.c.b16 %v4663, %v4659
        %v5116 = vpack.c.b16 %v4668, %v4664
        %v5117 = vpack.c.b16 %v4669, %v4665
        %v5118 = vpack.c.b16 %v4670, %v4666
        %v5119 = vpack.c.b16 %v4671, %v4667
        %v5120 = vpack.c.b16 %v4676, %v4672
        %v5121 = vpack.c.b16 %v4677, %v4673
        %v5122 = vpack.c.b16 %v4678, %v4674
        %v5123 = vpack.c.b16 %v4679, %v4675
        %v5124 = vpack.c.b16 %v4684, %v4680
        %v5125 = vpack.c.b16 %v4685, %v4681
        %v5126 = vpack.c.b16 %v4686, %v4682
        %v5127 = vpack.c.b16 %v4687, %v4683
        %v5128 = vpack.c.b16 %v4692, %v4688
        %v5129 = vpack.c.b16 %v4693, %v4689
        %v5130 = vpack.c.b16 %v4694, %v4690
        %v5131 = vpack.c.b16 %v4695, %v4691
        %v5132 = vpack.c.b16 %v4700, %v4696
        %v5133 = vpack.c.b16 %v4701, %v4697
        %v5134 = vpack.c.b16 %v4702, %v4698
        %v5135 = vpack.c.b16 %v4703, %v4699
        %v5136 = vpack.c.b16 %v4708, %v4704
        %v5137 = vpack.c.b16 %v4709, %v4705
        %v5138 = vpack.c.b16 %v4710, %v4706
        %v5139 = vpack.c.b16 %v4711, %v4707
        %v5140 = vpack.c.b16 %v4716, %v4712
        %v5141 = vpack.c.b16 %v4717, %v4713
        %v5142 = vpack.c.b16 %v4718, %v4714
        %v5143 = vpack.c.b16 %v4719, %v4715
        %v5144 = vpack.c.b16 %v4724, %v4720
        %v5145 = vpack.c.b16 %v4725, %v4721
        %v5146 = vpack.c.b16 %v4726, %v4722
        %v5147 = vpack.c.b16 %v4727, %v4723
        %v5148 = vpack.c.b16 %v4732, %v4728
        %v5149 = vpack.c.b16 %v4733, %v4729
        %v5150 = vpack.c.b16 %v4734, %v4730
        %v5151 = vpack.c.b16 %v4735, %v4731
        %v5152 = vpack.c.b16 %v4740, %v4736
        %v5153 = vpack.c.b16 %v4741, %v4737
        %v5154 = vpack.c.b16 %v4742, %v4738
        %v5155 = vpack.c.b16 %v4743, %v4739
        %v5156 = vpack.c.b16 %v4748, %v4744
        %v5157 = vpack.c.b16 %v4749, %v4745
        %v5158 = vpack.c.b16 %v4750, %v4746
        %v5159 = vpack.c.b16 %v4751, %v4747
        %v5160 = vpack.c.b16 %v4756, %v4752
        %v5161 = vpack.c.b16 %v4757, %v4753
        %v5162 = vpack.c.b16 %v4758, %v4754
        %v5163 = vpack.c.b16 %v4759, %v4755
        %v5164 = vpack.c.b16 %v4764, %v4760
        %v5165 = vpack.c.b16 %v4765, %v4761
        %v5166 = vpack.c.b16 %v4766, %v4762
        %v5167 = vpack.c.b16 %v4767, %v4763
        %v5168 = vpack.c.b16 %v4772, %v4768
        %v5169 = vpack.c.b16 %v4773, %v4769
        %v5170 = vpack.c.b16 %v4774, %v4770
        %v5171 = vpack.c.b16 %v4775, %v4771
        %v5172 = vpack.c.b16 %v4780, %v4776
        %v5173 = vpack.c.b16 %v4781, %v4777
        %v5174 = vpack.c.b16 %v4782, %v4778
        %v5175 = vpack.c.b16 %v4783, %v4779
        %v5176 = vpack.c.b16 %v4788, %v4784
        %v5177 = vpack.c.b16 %v4789, %v4785
        %v5178 = vpack.c.b16 %v4790, %v4786
        %v5179 = vpack.c.b16 %v4791, %v4787
        %v5180 = vpack.c.b16 %v4796, %v4792
        %v5181 = vpack.c.b16 %v4797, %v4793
        %v5182 = vpack.c.b16 %v4798, %v4794
        %v5183 = vpack.c.b16 %v4799, %v4795
        %v5184 = vpack.c.b16 %v4804, %v4800
        %v5185 = vpack.c.b16 %v4805, %v4801
        %v5186 = vpack.c.b16 %v4806, %v4802
        %v5187 = vpack.c.b16 %v4807, %v4803
        %v5188 = vpack.c.b16 %v4812, %v4808
        %v5189 = vpack.c.b16 %v4813, %v4809
        %v5190 = vpack.c.b16 %v4814, %v4810
        %v5191 = vpack.c.b16 %v4815, %v4811
        %v5192 = vpack.c.b16 %v4820, %v4816
        %v5193 = vpack.c.b16 %v4821, %v4817
        %v5194 = vpack.c.b16 %v4822, %v4818
        %v5195 = vpack.c.b16 %v4823, %v4819
        %v5196 = vpack.c.b16 %v4828, %v4824
        %v5197 = vpack.c.b16 %v4829, %v4825
        %v5198 = vpack.c.b16 %v4830, %v4826
        %v5199 = vpack.c.b16 %v4831, %v4827
        %v5200 = vpack.c.b16 %v4836, %v4832
        %v5201 = vpack.c.b16 %v4837, %v4833
        %v5202 = vpack.c.b16 %v4838, %v4834
        %v5203 = vpack.c.b16 %v4839, %v4835
        %v5204 = vpack.c.b16 %v4844, %v4840
        %v5205 = vpack.c.b16 %v4845, %v4841
        %v5206 = vpack.c.b16 %v4846, %v4842
        %v5207 = vpack.c.b16 %v4847, %v4843
        %v5208 = vpack.c.b16 %v4852, %v4848
        %v5209 = vpack.c.b16 %v4853, %v4849
        %v5210 = vpack.c.b16 %v4854, %v4850
        %v5211 = vpack.c.b16 %v4855, %v4851
        %v5212 = vpack.c.b16 %v4860, %v4856
        %v5213 = vpack.c.b16 %v4861, %v4857
        %v5214 = vpack.c.b16 %v4862, %v4858
        %v5215 = vpack.c.b16 %v4863, %v4859
        %v5216 = vpack.c.b16 %v4868, %v4864
        %v5217 = vpack.c.b16 %v4869, %v4865
        %v5218 = vpack.c.b16 %v4870, %v4866
        %v5219 = vpack.c.b16 %v4871, %v4867
        %v5220 = vpack.c.b16 %v4876, %v4872
        %v5221 = vpack.c.b16 %v4877, %v4873
        %v5222 = vpack.c.b16 %v4878, %v4874
        %v5223 = vpack.c.b16 %v4879, %v4875
        %v5224 = vpack.c.b16 %v4884, %v4880
        %v5225 = vpack.c.b16 %v4885, %v4881
        %v5226 = vpack.c.b16 %v4886, %v4882
        %v5227 = vpack.c.b16 %v4887, %v4883
        %v5228 = vpack.c.b16 %v4892, %v4888
        %v5229 = vpack.c.b16 %v4893, %v4889
        %v5230 = vpack.c.b16 %v4894, %v4890
        %v5231 = vpack.c.b16 %v4895, %v4891
        %v5232 = vpack.c.b16 %v4900, %v4896
        %v5233 = vpack.c.b16 %v4901, %v4897
        %v5234 = vpack.c.b16 %v4902, %v4898
        %v5235 = vpack.c.b16 %v4903, %v4899
        %v5236 = vpack.c.b16 %v4908, %v4904
        %v5237 = vpack.c.b16 %v4909, %v4905
        %v5238 = vpack.c.b16 %v4910, %v4906
        %v5239 = vpack.c.b16 %v4911, %v4907
        %v5240 = vpack.c.b16 %v4916, %v4912
        %v5241 = vpack.c.b16 %v4917, %v4913
        %v5242 = vpack.c.b16 %v4918, %v4914
        %v5243 = vpack.c.b16 %v4919, %v4915
        %v5244 = vpack.c.b16 %v4924, %v4920
        %v5245 = vpack.c.b16 %v4925, %v4921
        %v5246 = vpack.c.b16 %v4926, %v4922
        %v5247 = vpack.c.b16 %v4927, %v4923
        %v5248 = vpack.c.b16 %v4932, %v4928
        %v5249 = vpack.c.b16 %v4933, %v4929
        %v5250 = vpack.c.b16 %v4934, %v4930
        %v5251 = vpack.c.b16 %v4935, %v4931
        %v5252 = vpack.c.b16 %v4940, %v4936
        %v5253 = vpack.c.b16 %v4941, %v4937
        %v5254 = vpack.c.b16 %v4942, %v4938
        %v5255 = vpack.c.b16 %v4943, %v4939
        %v5256 = vpack.c.b16 %v4948, %v4944
        %v5257 = vpack.c.b16 %v4949, %v4945
        %v5258 = vpack.c.b16 %v4950, %v4946
        %v5259 = vpack.c.b16 %v4951, %v4947
        %v5260 = vpack.c.b16 %v4956, %v4952
        %v5261 = vpack.c.b16 %v4957, %v4953
        %v5262 = vpack.c.b16 %v4958, %v4954
        %v5263 = vpack.c.b16 %v4959, %v4955
        %v5264 = vpack.c.b16 %v4964, %v4960
        %v5265 = vpack.c.b16 %v4965, %v4961
        %v5266 = vpack.c.b16 %v4966, %v4962
        %v5267 = vpack.c.b16 %v4967, %v4963
        %v5268 = vpack.c.b16 %v4972, %v4968
        %v5269 = vpack.c.b16 %v4973, %v4969
        %v5270 = vpack.c.b16 %v4974, %v4970
        %v5271 = vpack.c.b16 %v4975, %v4971
        %v5272 = vpack.c.b16 %v4980, %v4976
        %v5273 = vpack.c.b16 %v4981, %v4977
        %v5274 = vpack.c.b16 %v4982, %v4978
        %v5275 = vpack.c.b16 %v4983, %v4979
        %v5276 = vpack.c.b16 %v4988, %v4984
        %v5277 = vpack.c.b16 %v4989, %v4985
        %v5278 = vpack.c.b16 %v4990, %v4986
        %v5279 = vpack.c.b16 %v4991, %v4987
        %v5280 = vpack.c.b16 %v4996, %v4992
        %v5281 = vpack.c.b16 %v4997, %v4993
        %v5282 = vpack.c.b16 %v4998, %v4994
        %v5283 = vpack.c.b16 %v4999, %v4995
        %v5284 = vpack.c.b16 %v5004, %v5000
        %v5285 = vpack.c.b16 %v5005, %v5001
        %v5286 = vpack.c.b16 %v5006, %v5002
        %v5287 = vpack.c.b16 %v5007, %v5003
        %v5288 = vpack.c.b16 %v5012, %v5008
        %v5289 = vpack.c.b16 %v5013, %v5009
        %v5290 = vpack.c.b16 %v5014, %v5010
        %v5291 = vpack.c.b16 %v5015, %v5011
        %v5292 = vpack.c.b16 %v5020, %v5016
        %v5293 = vpack.c.b16 %v5021, %v5017
        %v5294 = vpack.c.b16 %v5022, %v5018
        %v5295 = vpack.c.b16 %v5023, %v5019
        %v5296 = vpack.c.b16 %v5028, %v5024
        %v5297 = vpack.c.b16 %v5029, %v5025
        %v5298 = vpack.c.b16 %v5030, %v5026
        %v5299 = vpack.c.b16 %v5031, %v5027
        %v5300 = vpack.c.b16 %v5036, %v5032
        %v5301 = vpack.c.b16 %v5037, %v5033
        %v5302 = vpack.c.b16 %v5038, %v5034
        %v5303 = vpack.c.b16 %v5039, %v5035
        %v5304 = vpack.c.b16 %v5044, %v5040
        %v5305 = vpack.c.b16 %v5045, %v5041
        %v5306 = vpack.c.b16 %v5046, %v5042
        %v5307 = vpack.c.b16 %v5047, %v5043
        %v5308 = vpack.c.b16 %v5052, %v5048
        %v5309 = vpack.c.b16 %v5053, %v5049
        %v5310 = vpack.c.b16 %v5054, %v5050
        %v5311 = vpack.c.b16 %v5055, %v5051
        %5568 = vmatprep.subr.bf16.mxu0 %v5057
        %5569 = vmatpush1.bf16.msra.mxu0 %v5056
        %5570 = vmatprep.subr.bf16.mxu0 %v5061
        %5571 = vmatpush1.bf16.msra.mxu0 %v5060
        %5572 = vmatprep.subr.bf16.mxu0 %v5065
        %5573 = vmatpush1.bf16.msra.mxu0 %v5064
        %5574 = vmatprep.subr.bf16.mxu0 %v5069
        %5575 = vmatpush1.bf16.msra.mxu0 %v5068
        %5576 = vmatprep.subr.bf16.mxu0 %v5073
        %5577 = vmatpush1.bf16.msra.mxu0 %v5072
        %5578 = vmatprep.subr.bf16.mxu0 %v5077
        %5579 = vmatpush1.bf16.msra.mxu0 %v5076
        %5580 = vmatprep.subr.bf16.mxu0 %v5081
        %5581 = vmatpush1.bf16.msra.mxu0 %v5080
        %5582 = vmatprep.subr.bf16.mxu0 %v5085
        %5583 = vmatpush1.bf16.msra.mxu0 %v5084
        %5584 = vmatprep.subr.bf16.mxu0 %v5089
        %5585 = vmatpush1.bf16.msra.mxu0 %v5088
        %5586 = vmatprep.subr.bf16.mxu0 %v5093
        %5587 = vmatpush1.bf16.msra.mxu0 %v5092
        %5588 = vmatprep.subr.bf16.mxu0 %v5097
        %5589 = vmatpush1.bf16.msra.mxu0 %v5096
        %5590 = vmatprep.subr.bf16.mxu0 %v5101
        %5591 = vmatpush1.bf16.msra.mxu0 %v5100
        %5592 = vmatprep.subr.bf16.mxu0 %v5105
        %5593 = vmatpush1.bf16.msra.mxu0 %v5104
        %5594 = vmatprep.subr.bf16.mxu0 %v5109
        %5595 = vmatpush1.bf16.msra.mxu0 %v5108
        %5596 = vmatprep.subr.bf16.mxu0 %v5113
        %5597 = vmatpush1.bf16.msra.mxu0 %v5112
        %5598 = vmatprep.subr.bf16.mxu0 %v5117
        %5599 = vmatpush1.bf16.msra.mxu0 %v5116
        %5600 = vmatprep.mubr.bf16.mxu0 %v4001
        %5601 = vmatmul.mubr.bf16.gmra.mrb[0].mxu0 %v4000
        %v5602 = vpop.f32.mrb[0].mxu0
        %v5603 = vadd.f32 0.0, %v5602
        %v5604 = vpop.f32.mrb[0].mxu0
        %v5605 = vadd.f32 0.0, %v5604
        %v5606 = vpop.f32.mrb[0].mxu0
        %v5607 = vadd.f32 0.0, %v5606
        %v5608 = vpop.f32.mrb[0].mxu0
        %v5609 = vadd.f32 0.0, %v5608
        %5610 = vmatprep.mubr.bf16.mxu0 %v4009
        %5611 = vmatmul.mubr.bf16.gmra.mrb[0].mxu0 %v4008
        %v5612 = vpop.f32.mrb[0].mxu0
        %v5613 = vadd.f32 0.0, %v5612
        %v5614 = vpop.f32.mrb[0].mxu0
        %v5615 = vadd.f32 0.0, %v5614
        %v5616 = vpop.f32.mrb[0].mxu0
        %v5617 = vadd.f32 0.0, %v5616
        %v5618 = vpop.f32.mrb[0].mxu0
        %v5619 = vadd.f32 0.0, %v5618
        %5620 = vmatprep.mubr.bf16.mxu0 %v4017
        %5621 = vmatmul.mubr.bf16.gmra.mrb[0].mxu0 %v4016
        %v5622 = vpop.f32.mrb[0].mxu0
        %v5623 = vadd.f32 0.0, %v5622
        %v5624 = vpop.f32.mrb[0].mxu0
        %v5625 = vadd.f32 0.0, %v5624
        %v5626 = vpop.f32.mrb[0].mxu0
        %v5627 = vadd.f32 0.0, %v5626
        %v5628 = vpop.f32.mrb[0].mxu0
        %v5629 = vadd.f32 0.0, %v5628
        %5630 = vmatprep.mubr.bf16.mxu0 %v4025
        %5631 = vmatmul.mubr.bf16.gmra.mrb[0].mxu0 %v4024
        %v5632 = vpop.f32.mrb[0].mxu0
        %v5633 = vadd.f32 0.0, %v5632
        %v5634 = vpop.f32.mrb[0].mxu0
        %v5635 = vadd.f32 0.0, %v5634
        %v5636 = vpop.f32.mrb[0].mxu0
        %v5637 = vpop.f32.mrb[0].mxu0
        %5638 = vdwg.mxu0
        %5639 = vmatprep.subr.bf16.mxu0 %v5121
        %5640 = vmatpush1.bf16.msra.mxu0 %v5120
        %5641 = vmatprep.subr.bf16.mxu0 %v5125
        %5642 = vmatpush1.bf16.msra.mxu0 %v5124
        %5643 = vmatprep.subr.bf16.mxu0 %v5129
        %5644 = vmatpush1.bf16.msra.mxu0 %v5128
        %5645 = vmatprep.subr.bf16.mxu0 %v5133
        %5646 = vmatpush1.bf16.msra.mxu0 %v5132
        %5647 = vmatprep.subr.bf16.mxu0 %v5137
        %5648 = vmatpush1.bf16.msra.mxu0 %v5136
        %5649 = vmatprep.subr.bf16.mxu0 %v5141
        %5650 = vmatpush1.bf16.msra.mxu0 %v5140
        %5651 = vmatprep.subr.bf16.mxu0 %v5145
        %5652 = vmatpush1.bf16.msra.mxu0 %v5144
        %5653 = vmatprep.subr.bf16.mxu0 %v5149
        %5654 = vmatpush1.bf16.msra.mxu0 %v5148
        %5655 = vmatprep.subr.bf16.mxu0 %v5153
        %5656 = vmatpush1.bf16.msra.mxu0 %v5152
        %5657 = vmatprep.subr.bf16.mxu0 %v5157
        %5658 = vmatpush1.bf16.msra.mxu0 %v5156
        %5659 = vmatprep.subr.bf16.mxu0 %v5161
        %5660 = vmatpush1.bf16.msra.mxu0 %v5160
        %5661 = vmatprep.subr.bf16.mxu0 %v5165
        %5662 = vmatpush1.bf16.msra.mxu0 %v5164
        %5663 = vmatprep.subr.bf16.mxu0 %v5169
        %5664 = vmatpush1.bf16.msra.mxu0 %v5168
        %5665 = vmatprep.subr.bf16.mxu0 %v5173
        %5666 = vmatpush1.bf16.msra.mxu0 %v5172
        %5667 = vmatprep.subr.bf16.mxu0 %v5177
        %5668 = vmatpush1.bf16.msra.mxu0 %v5176
        %5669 = vmatprep.subr.bf16.mxu0 %v5181
        %5670 = vmatpush1.bf16.msra.mxu0 %v5180
        %5671 = vmatprep.mubr.bf16.mxu0 %v4003
        %5672 = vmatmul.mubr.bf16.gmra.mrb[0].mxu0 %v4002
        %v5673 = vpop.f32.mrb[0].mxu0
        %v5674 = vadd.f32 %v5603, %v5673
        %v5675 = vpop.f32.mrb[0].mxu0
        %v5676 = vadd.f32 %v5605, %v5675
        %v5677 = vpop.f32.mrb[0].mxu0
        %v5678 = vadd.f32 %v5607, %v5677
        %v5679 = vpop.f32.mrb[0].mxu0
        %v5680 = vadd.f32 %v5609, %v5679
        %5681 = vmatprep.mubr.bf16.mxu0 %v4011
        %5682 = vmatmul.mubr.bf16.gmra.mrb[0].mxu0 %v4010
        %v5683 = vpop.f32.mrb[0].mxu0
        %v5684 = vadd.f32 %v5613, %v5683
        %v5685 = vpop.f32.mrb[0].mxu0
        %v5686 = vadd.f32 %v5615, %v5685
        %v5687 = vpop.f32.mrb[0].mxu0
        %v5688 = vadd.f32 %v5617, %v5687
        %v5689 = vpop.f32.mrb[0].mxu0
        %v5690 = vadd.f32 %v5619, %v5689
        %5691 = vmatprep.mubr.bf16.mxu0 %v4019
        %5692 = vmatmul.mubr.bf16.gmra.mrb[0].mxu0 %v4018
        %v5693 = vpop.f32.mrb[0].mxu0
        %v5694 = vadd.f32 %v5623, %v5693
        %v5695 = vpop.f32.mrb[0].mxu0
        %v5696 = vadd.f32 %v5625, %v5695
        %v5697 = vpop.f32.mrb[0].mxu0
        %v5698 = vadd.f32 %v5627, %v5697
        %v5699 = vpop.f32.mrb[0].mxu0
        %v5700 = vadd.f32 %v5629, %v5699
        %5701 = vmatprep.mubr.bf16.mxu0 %v4027
        %5702 = vmatmul.mubr.bf16.gmra.mrb[0].mxu0 %v4026
        %v5703 = vpop.f32.mrb[0].mxu0
        %v5704 = vadd.f32 %v5633, %v5703
        %v5705 = vpop.f32.mrb[0].mxu0
        %v5706 = vadd.f32 %v5635, %v5705
        %v5707 = vpop.f32.mrb[0].mxu0
        %v5708 = vpop.f32.mrb[0].mxu0
        %5709 = vdwg.mxu0
        %5710 = vmatprep.subr.bf16.mxu0 %v5185
        %5711 = vmatpush1.bf16.msra.mxu0 %v5184
        %5712 = vmatprep.subr.bf16.mxu0 %v5189
        %5713 = vmatpush1.bf16.msra.mxu0 %v5188
        %5714 = vmatprep.subr.bf16.mxu0 %v5193
        %5715 = vmatpush1.bf16.msra.mxu0 %v5192
        %5716 = vmatprep.subr.bf16.mxu0 %v5197
        %5717 = vmatpush1.bf16.msra.mxu0 %v5196
        %5718 = vmatprep.subr.bf16.mxu0 %v5201
        %5719 = vmatpush1.bf16.msra.mxu0 %v5200
        %5720 = vmatprep.subr.bf16.mxu0 %v5205
        %5721 = vmatpush1.bf16.msra.mxu0 %v5204
        %5722 = vmatprep.subr.bf16.mxu0 %v5209
        %5723 = vmatpush1.bf16.msra.mxu0 %v5208
        %5724 = vmatprep.subr.bf16.mxu0 %v5213
        %5725 = vmatpush1.bf16.msra.mxu0 %v5212
        %5726 = vmatprep.subr.bf16.mxu0 %v5217
        %5727 = vmatpush1.bf16.msra.mxu0 %v5216
        %5728 = vmatprep.subr.bf16.mxu0 %v5221
        %5729 = vmatpush1.bf16.msra.mxu0 %v5220
        %5730 = vmatprep.subr.bf16.mxu0 %v5225
        %5731 = vmatpush1.bf16.msra.mxu0 %v5224
        %5732 = vmatprep.subr.bf16.mxu0 %v5229
        %5733 = vmatpush1.bf16.msra.mxu0 %v5228
        %5734 = vmatprep.subr.bf16.mxu0 %v5233
        %5735 = vmatpush1.bf16.msra.mxu0 %v5232
        %5736 = vmatprep.subr.bf16.mxu0 %v5237
        %5737 = vmatpush1.bf16.msra.mxu0 %v5236
        %5738 = vmatprep.subr.bf16.mxu0 %v5241
        %5739 = vmatpush1.bf16.msra.mxu0 %v5240
        %5740 = vmatprep.subr.bf16.mxu0 %v5245
        %5741 = vmatpush1.bf16.msra.mxu0 %v5244
        %5742 = vmatprep.mubr.bf16.mxu0 %v4005
        %5743 = vmatmul.mubr.bf16.gmra.mrb[0].mxu0 %v4004
        %v5744 = vpop.f32.mrb[0].mxu0
        %v5745 = vadd.f32 %v5674, %v5744
        %v5746 = vpop.f32.mrb[0].mxu0
        %v5747 = vadd.f32 %v5676, %v5746
        %v5748 = vpop.f32.mrb[0].mxu0
        %v5749 = vadd.f32 %v5678, %v5748
        %v5750 = vpop.f32.mrb[0].mxu0
        %v5751 = vadd.f32 %v5680, %v5750
        %5752 = vmatprep.mubr.bf16.mxu0 %v4013
        %5753 = vmatmul.mubr.bf16.gmra.mrb[0].mxu0 %v4012
        %v5754 = vpop.f32.mrb[0].mxu0
        %v5755 = vadd.f32 %v5684, %v5754
        %v5756 = vpop.f32.mrb[0].mxu0
        %v5757 = vadd.f32 %v5686, %v5756
        %v5758 = vpop.f32.mrb[0].mxu0
        %v5759 = vadd.f32 %v5688, %v5758
        %v5760 = vpop.f32.mrb[0].mxu0
        %v5761 = vadd.f32 %v5690, %v5760
        %5762 = vmatprep.mubr.bf16.mxu0 %v4021
        %5763 = vmatmul.mubr.bf16.gmra.mrb[0].mxu0 %v4020
        %v5764 = vpop.f32.mrb[0].mxu0
        %v5765 = vadd.f32 %v5694, %v5764
        %v5766 = vpop.f32.mrb[0].mxu0
        %v5767 = vadd.f32 %v5696, %v5766
        %v5768 = vpop.f32.mrb[0].mxu0
        %v5769 = vadd.f32 %v5698, %v5768
        %v5770 = vpop.f32.mrb[0].mxu0
        %v5771 = vadd.f32 %v5700, %v5770
        %5772 = vmatprep.mubr.bf16.mxu0 %v4029
        %5773 = vmatmul.mubr.bf16.gmra.mrb[0].mxu0 %v4028
        %v5774 = vpop.f32.mrb[0].mxu0
        %v5775 = vadd.f32 %v5704, %v5774
        %v5776 = vpop.f32.mrb[0].mxu0
        %v5777 = vadd.f32 %v5706, %v5776
        %v5778 = vpop.f32.mrb[0].mxu0
        %v5779 = vpop.f32.mrb[0].mxu0
        %5780 = vdwg.mxu0
        %5781 = vmatprep.subr.bf16.mxu0 %v5249
        %5782 = vmatpush1.bf16.msra.mxu0 %v5248
        %5783 = vmatprep.subr.bf16.mxu0 %v5253
        %5784 = vmatpush1.bf16.msra.mxu0 %v5252
        %5785 = vmatprep.subr.bf16.mxu0 %v5257
        %5786 = vmatpush1.bf16.msra.mxu0 %v5256
        %5787 = vmatprep.subr.bf16.mxu0 %v5261
        %5788 = vmatpush1.bf16.msra.mxu0 %v5260
        %5789 = vmatprep.subr.bf16.mxu0 %v5265
        %5790 = vmatpush1.bf16.msra.mxu0 %v5264
        %5791 = vmatprep.subr.bf16.mxu0 %v5269
        %5792 = vmatpush1.bf16.msra.mxu0 %v5268
        %5793 = vmatprep.subr.bf16.mxu0 %v5273
        %5794 = vmatpush1.bf16.msra.mxu0 %v5272
        %5795 = vmatprep.subr.bf16.mxu0 %v5277
        %5796 = vmatpush1.bf16.msra.mxu0 %v5276
        %5797 = vmatprep.subr.bf16.mxu0 %v5281
        %5798 = vmatpush1.bf16.msra.mxu0 %v5280
        %5799 = vmatprep.subr.bf16.mxu0 %v5285
        %5800 = vmatpush1.bf16.msra.mxu0 %v5284
        %5801 = vmatprep.subr.bf16.mxu0 %v5289
        %5802 = vmatpush1.bf16.msra.mxu0 %v5288
        %5803 = vmatprep.subr.bf16.mxu0 %v5293
        %5804 = vmatpush1.bf16.msra.mxu0 %v5292
        %5805 = vmatprep.subr.bf16.mxu0 %v5297
        %5806 = vmatpush1.bf16.msra.mxu0 %v5296
        %5807 = vmatprep.subr.bf16.mxu0 %v5301
        %5808 = vmatpush1.bf16.msra.mxu0 %v5300
        %5809 = vmatprep.subr.bf16.mxu0 %v5305
        %5810 = vmatpush1.bf16.msra.mxu0 %v5304
        %5811 = vmatprep.subr.bf16.mxu0 %v5309
        %5812 = vmatpush1.bf16.msra.mxu0 %v5308
        %5813 = vmatprep.mubr.bf16.mxu0 %v4007
        %5814 = vmatmul.mubr.bf16.gmra.mrb[0].mxu0 %v4006
        %v5815 = vpop.f32.mrb[0].mxu0
        %v5816 = vadd.f32 %v5745, %v5815
        %v5817 = vpop.f32.mrb[0].mxu0
        %v5818 = vadd.f32 %v5747, %v5817
        %v5819 = vpop.f32.mrb[0].mxu0
        %v5820 = vadd.f32 %v5749, %v5819
        %v5821 = vpop.f32.mrb[0].mxu0
        %v5822 = vadd.f32 %v5751, %v5821
        %5823 = vmatprep.mubr.bf16.mxu0 %v4015
        %5824 = vmatmul.mubr.bf16.gmra.mrb[0].mxu0 %v4014
        %v5825 = vpop.f32.mrb[0].mxu0
        %v5826 = vadd.f32 %v5755, %v5825
        %v5827 = vpop.f32.mrb[0].mxu0
        %v5828 = vadd.f32 %v5757, %v5827
        %v5829 = vpop.f32.mrb[0].mxu0
        %v5830 = vadd.f32 %v5759, %v5829
        %v5831 = vpop.f32.mrb[0].mxu0
        %v5832 = vadd.f32 %v5761, %v5831
        %5833 = vmatprep.mubr.bf16.mxu0 %v4023
        %5834 = vmatmul.mubr.bf16.gmra.mrb[0].mxu0 %v4022
        %v5835 = vpop.f32.mrb[0].mxu0
        %v5836 = vadd.f32 %v5765, %v5835
        %v5837 = vpop.f32.mrb[0].mxu0
        %v5838 = vadd.f32 %v5767, %v5837
        %v5839 = vpop.f32.mrb[0].mxu0
        %v5840 = vadd.f32 %v5769, %v5839
        %v5841 = vpop.f32.mrb[0].mxu0
        %v5842 = vadd.f32 %v5771, %v5841
        %5843 = vmatprep.mubr.bf16.mxu0 %v4031
        %5844 = vmatmul.mubr.bf16.gmra.mrb[0].mxu0 %v4030
        %v5845 = vpop.f32.mrb[0].mxu0
        %v5846 = vadd.f32 %v5775, %v5845
        %v5847 = vpop.f32.mrb[0].mxu0
        %v5848 = vadd.f32 %v5777, %v5847
        %v5849 = vpop.f32.mrb[0].mxu0
        %v5850 = vpop.f32.mrb[0].mxu0
        %5851 = vdwg.mxu0
        %5852 = vmatprep.subr.bf16.mxu0 %v5059
        %5853 = vmatpush1.bf16.msra.mxu0 %v5058
        %5854 = vmatprep.subr.bf16.mxu0 %v5063
        %5855 = vmatpush1.bf16.msra.mxu0 %v5062
        %5856 = vmatprep.subr.bf16.mxu0 %v5067
        %5857 = vmatpush1.bf16.msra.mxu0 %v5066
        %5858 = vmatprep.subr.bf16.mxu0 %v5071
        %5859 = vmatpush1.bf16.msra.mxu0 %v5070
        %5860 = vmatprep.subr.bf16.mxu0 %v5075
        %5861 = vmatpush1.bf16.msra.mxu0 %v5074
        %5862 = vmatprep.subr.bf16.mxu0 %v5079
        %5863 = vmatpush1.bf16.msra.mxu0 %v5078
        %5864 = vmatprep.subr.bf16.mxu0 %v5083
        %5865 = vmatpush1.bf16.msra.mxu0 %v5082
        %5866 = vmatprep.subr.bf16.mxu0 %v5087
        %5867 = vmatpush1.bf16.msra.mxu0 %v5086
        %5868 = vmatprep.subr.bf16.mxu0 %v5091
        %5869 = vmatpush1.bf16.msra.mxu0 %v5090
        %5870 = vmatprep.subr.bf16.mxu0 %v5095
        %5871 = vmatpush1.bf16.msra.mxu0 %v5094
        %5872 = vmatprep.subr.bf16.mxu0 %v5099
        %5873 = vmatpush1.bf16.msra.mxu0 %v5098
        %5874 = vmatprep.subr.bf16.mxu0 %v5103
        %5875 = vmatpush1.bf16.msra.mxu0 %v5102
        %5876 = vmatprep.subr.bf16.mxu0 %v5107
        %5877 = vmatpush1.bf16.msra.mxu0 %v5106
        %5878 = vmatprep.subr.bf16.mxu0 %v5111
        %5879 = vmatpush1.bf16.msra.mxu0 %v5110
        %5880 = vmatprep.subr.bf16.mxu0 %v5115
        %5881 = vmatpush1.bf16.msra.mxu0 %v5114
        %5882 = vmatprep.subr.bf16.mxu0 %v5119
        %5883 = vmatpush1.bf16.msra.mxu0 %v5118
        %5884 = vmatprep.mubr.bf16.mxu0 %v4001
        %5885 = vmatmul.mubr.bf16.gmra.mrb[0].mxu0 %v4000
        %v5886 = vpop.f32.mrb[0].mxu0
        %v5887 = vadd.f32 0.0, %v5886
        %v5888 = vpop.f32.mrb[0].mxu0
        %v5889 = vadd.f32 0.0, %v5888
        %v5890 = vpop.f32.mrb[0].mxu0
        %v5891 = vadd.f32 0.0, %v5890
        %v5892 = vpop.f32.mrb[0].mxu0
        %v5893 = vadd.f32 0.0, %v5892
        %5894 = vmatprep.mubr.bf16.mxu0 %v4009
        %5895 = vmatmul.mubr.bf16.gmra.mrb[0].mxu0 %v4008
        %v5896 = vpop.f32.mrb[0].mxu0
        %v5897 = vadd.f32 0.0, %v5896
        %v5898 = vpop.f32.mrb[0].mxu0
        %v5899 = vadd.f32 0.0, %v5898
        %v5900 = vpop.f32.mrb[0].mxu0
        %v5901 = vadd.f32 0.0, %v5900
        %v5902 = vpop.f32.mrb[0].mxu0
        %v5903 = vadd.f32 0.0, %v5902
        %5904 = vmatprep.mubr.bf16.mxu0 %v4017
        %5905 = vmatmul.mubr.bf16.gmra.mrb[0].mxu0 %v4016
        %v5906 = vpop.f32.mrb[0].mxu0
        %v5907 = vadd.f32 0.0, %v5906
        %v5908 = vpop.f32.mrb[0].mxu0
        %v5909 = vadd.f32 0.0, %v5908
        %v5910 = vpop.f32.mrb[0].mxu0
        %v5911 = vadd.f32 0.0, %v5910
        %v5912 = vpop.f32.mrb[0].mxu0
        %v5913 = vadd.f32 0.0, %v5912
        %5914 = vmatprep.mubr.bf16.mxu0 %v4025
        %5915 = vmatmul.mubr.bf16.gmra.mrb[0].mxu0 %v4024
        %v5916 = vpop.f32.mrb[0].mxu0
        %v5917 = vadd.f32 0.0, %v5916
        %v5918 = vpop.f32.mrb[0].mxu0
        %v5919 = vadd.f32 0.0, %v5918
        %v5920 = vpop.f32.mrb[0].mxu0
        %v5921 = vpop.f32.mrb[0].mxu0
        %5922 = vdwg.mxu0
        %5923 = vmatprep.subr.bf16.mxu0 %v5123
        %5924 = vmatpush1.bf16.msra.mxu0 %v5122
        %5925 = vmatprep.subr.bf16.mxu0 %v5127
        %5926 = vmatpush1.bf16.msra.mxu0 %v5126
        %5927 = vmatprep.subr.bf16.mxu0 %v5131
        %5928 = vmatpush1.bf16.msra.mxu0 %v5130
        %5929 = vmatprep.subr.bf16.mxu0 %v5135
        %5930 = vmatpush1.bf16.msra.mxu0 %v5134
        %5931 = vmatprep.subr.bf16.mxu0 %v5139
        %5932 = vmatpush1.bf16.msra.mxu0 %v5138
        %5933 = vmatprep.subr.bf16.mxu0 %v5143
        %5934 = vmatpush1.bf16.msra.mxu0 %v5142
        %5935 = vmatprep.subr.bf16.mxu0 %v5147
        %5936 = vmatpush1.bf16.msra.mxu0 %v5146
        %5937 = vmatprep.subr.bf16.mxu0 %v5151
        %5938 = vmatpush1.bf16.msra.mxu0 %v5150
        %5939 = vmatprep.subr.bf16.mxu0 %v5155
        %5940 = vmatpush1.bf16.msra.mxu0 %v5154
        %5941 = vmatprep.subr.bf16.mxu0 %v5159
        %5942 = vmatpush1.bf16.msra.mxu0 %v5158
        %5943 = vmatprep.subr.bf16.mxu0 %v5163
        %5944 = vmatpush1.bf16.msra.mxu0 %v5162
        %5945 = vmatprep.subr.bf16.mxu0 %v5167
        %5946 = vmatpush1.bf16.msra.mxu0 %v5166
        %5947 = vmatprep.subr.bf16.mxu0 %v5171
        %5948 = vmatpush1.bf16.msra.mxu0 %v5170
        %5949 = vmatprep.subr.bf16.mxu0 %v5175
        %5950 = vmatpush1.bf16.msra.mxu0 %v5174
        %5951 = vmatprep.subr.bf16.mxu0 %v5179
        %5952 = vmatpush1.bf16.msra.mxu0 %v5178
        %5953 = vmatprep.subr.bf16.mxu0 %v5183
        %5954 = vmatpush1.bf16.msra.mxu0 %v5182
        %5955 = vmatprep.mubr.bf16.mxu0 %v4003
        %5956 = vmatmul.mubr.bf16.gmra.mrb[0].mxu0 %v4002
        %v5957 = vpop.f32.mrb[0].mxu0
        %v5958 = vadd.f32 %v5887, %v5957
        %v5959 = vpop.f32.mrb[0].mxu0
        %v5960 = vadd.f32 %v5889, %v5959
        %v5961 = vpop.f32.mrb[0].mxu0
        %v5962 = vadd.f32 %v5891, %v5961
        %v5963 = vpop.f32.mrb[0].mxu0
        %v5964 = vadd.f32 %v5893, %v5963
        %5965 = vmatprep.mubr.bf16.mxu0 %v4011
        %5966 = vmatmul.mubr.bf16.gmra.mrb[0].mxu0 %v4010
        %v5967 = vpop.f32.mrb[0].mxu0
        %v5968 = vadd.f32 %v5897, %v5967
        %v5969 = vpop.f32.mrb[0].mxu0
        %v5970 = vadd.f32 %v5899, %v5969
        %v5971 = vpop.f32.mrb[0].mxu0
        %v5972 = vadd.f32 %v5901, %v5971
        %v5973 = vpop.f32.mrb[0].mxu0
        %v5974 = vadd.f32 %v5903, %v5973
        %5975 = vmatprep.mubr.bf16.mxu0 %v4019
        %5976 = vmatmul.mubr.bf16.gmra.mrb[0].mxu0 %v4018
        %v5977 = vpop.f32.mrb[0].mxu0
        %v5978 = vadd.f32 %v5907, %v5977
        %v5979 = vpop.f32.mrb[0].mxu0
        %v5980 = vadd.f32 %v5909, %v5979
        %v5981 = vpop.f32.mrb[0].mxu0
        %v5982 = vadd.f32 %v5911, %v5981
        %v5983 = vpop.f32.mrb[0].mxu0
        %v5984 = vadd.f32 %v5913, %v5983
        %5985 = vmatprep.mubr.bf16.mxu0 %v4027
        %5986 = vmatmul.mubr.bf16.gmra.mrb[0].mxu0 %v4026
        %v5987 = vpop.f32.mrb[0].mxu0
        %v5988 = vadd.f32 %v5917, %v5987
        %v5989 = vpop.f32.mrb[0].mxu0
        %v5990 = vadd.f32 %v5919, %v5989
        %v5991 = vpop.f32.mrb[0].mxu0
        %v5992 = vpop.f32.mrb[0].mxu0
        %5993 = vdwg.mxu0
        %5994 = vmatprep.subr.bf16.mxu0 %v5187
        %5995 = vmatpush1.bf16.msra.mxu0 %v5186
        %5996 = vmatprep.subr.bf16.mxu0 %v5191
        %5997 = vmatpush1.bf16.msra.mxu0 %v5190
        %5998 = vmatprep.subr.bf16.mxu0 %v5195
        %5999 = vmatpush1.bf16.msra.mxu0 %v5194
        %6000 = vmatprep.subr.bf16.mxu0 %v5199
        %6001 = vmatpush1.bf16.msra.mxu0 %v5198
        %6002 = vmatprep.subr.bf16.mxu0 %v5203
        %6003 = vmatpush1.bf16.msra.mxu0 %v5202
        %6004 = vmatprep.subr.bf16.mxu0 %v5207
        %6005 = vmatpush1.bf16.msra.mxu0 %v5206
        %6006 = vmatprep.subr.bf16.mxu0 %v5211
        %6007 = vmatpush1.bf16.msra.mxu0 %v5210
        %6008 = vmatprep.subr.bf16.mxu0 %v5215
        %6009 = vmatpush1.bf16.msra.mxu0 %v5214
        %6010 = vmatprep.subr.bf16.mxu0 %v5219
        %6011 = vmatpush1.bf16.msra.mxu0 %v5218
        %6012 = vmatprep.subr.bf16.mxu0 %v5223
        %6013 = vmatpush1.bf16.msra.mxu0 %v5222
        %6014 = vmatprep.subr.bf16.mxu0 %v5227
        %6015 = vmatpush1.bf16.msra.mxu0 %v5226
        %6016 = vmatprep.subr.bf16.mxu0 %v5231
        %6017 = vmatpush1.bf16.msra.mxu0 %v5230
        %6018 = vmatprep.subr.bf16.mxu0 %v5235
        %6019 = vmatpush1.bf16.msra.mxu0 %v5234
        %6020 = vmatprep.subr.bf16.mxu0 %v5239
        %6021 = vmatpush1.bf16.msra.mxu0 %v5238
        %6022 = vmatprep.subr.bf16.mxu0 %v5243
        %6023 = vmatpush1.bf16.msra.mxu0 %v5242
        %6024 = vmatprep.subr.bf16.mxu0 %v5247
        %6025 = vmatpush1.bf16.msra.mxu0 %v5246
        %6026 = vmatprep.mubr.bf16.mxu0 %v4005
        %6027 = vmatmul.mubr.bf16.gmra.mrb[0].mxu0 %v4004
        %v6028 = vpop.f32.mrb[0].mxu0
        %v6029 = vadd.f32 %v5958, %v6028
        %v6030 = vpop.f32.mrb[0].mxu0
        %v6031 = vadd.f32 %v5960, %v6030
        %v6032 = vpop.f32.mrb[0].mxu0
        %v6033 = vadd.f32 %v5962, %v6032
        %v6034 = vpop.f32.mrb[0].mxu0
        %v6035 = vadd.f32 %v5964, %v6034
        %6036 = vmatprep.mubr.bf16.mxu0 %v4013
        %6037 = vmatmul.mubr.bf16.gmra.mrb[0].mxu0 %v4012
        %v6038 = vpop.f32.mrb[0].mxu0
        %v6039 = vadd.f32 %v5968, %v6038
        %v6040 = vpop.f32.mrb[0].mxu0
        %v6041 = vadd.f32 %v5970, %v6040
        %v6042 = vpop.f32.mrb[0].mxu0
        %v6043 = vadd.f32 %v5972, %v6042
        %v6044 = vpop.f32.mrb[0].mxu0
        %v6045 = vadd.f32 %v5974, %v6044
        %6046 = vmatprep.mubr.bf16.mxu0 %v4021
        %6047 = vmatmul.mubr.bf16.gmra.mrb[0].mxu0 %v4020
        %v6048 = vpop.f32.mrb[0].mxu0
        %v6049 = vadd.f32 %v5978, %v6048
        %v6050 = vpop.f32.mrb[0].mxu0
        %v6051 = vadd.f32 %v5980, %v6050
        %v6052 = vpop.f32.mrb[0].mxu0
        %v6053 = vadd.f32 %v5982, %v6052
        %v6054 = vpop.f32.mrb[0].mxu0
        %v6055 = vadd.f32 %v5984, %v6054
        %6056 = vmatprep.mubr.bf16.mxu0 %v4029
        %6057 = vmatmul.mubr.bf16.gmra.mrb[0].mxu0 %v4028
        %v6058 = vpop.f32.mrb[0].mxu0
        %v6059 = vadd.f32 %v5988, %v6058
        %v6060 = vpop.f32.mrb[0].mxu0
        %v6061 = vadd.f32 %v5990, %v6060
        %v6062 = vpop.f32.mrb[0].mxu0
        %v6063 = vpop.f32.mrb[0].mxu0
        %6064 = vdwg.mxu0
        %6065 = vmatprep.subr.bf16.mxu0 %v5251
        %6066 = vmatpush1.bf16.msra.mxu0 %v5250
        %6067 = vmatprep.subr.bf16.mxu0 %v5255
        %6068 = vmatpush1.bf16.msra.mxu0 %v5254
        %6069 = vmatprep.subr.bf16.mxu0 %v5259
        %6070 = vmatpush1.bf16.msra.mxu0 %v5258
        %6071 = vmatprep.subr.bf16.mxu0 %v5263
        %6072 = vmatpush1.bf16.msra.mxu0 %v5262
        %6073 = vmatprep.subr.bf16.mxu0 %v5267
        %6074 = vmatpush1.bf16.msra.mxu0 %v5266
        %6075 = vmatprep.subr.bf16.mxu0 %v5271
        %6076 = vmatpush1.bf16.msra.mxu0 %v5270
        %6077 = vmatprep.subr.bf16.mxu0 %v5275
        %6078 = vmatpush1.bf16.msra.mxu0 %v5274
        %6079 = vmatprep.subr.bf16.mxu0 %v5279
        %6080 = vmatpush1.bf16.msra.mxu0 %v5278
        %6081 = vmatprep.subr.bf16.mxu0 %v5283
        %6082 = vmatpush1.bf16.msra.mxu0 %v5282
        %6083 = vmatprep.subr.bf16.mxu0 %v5287
        %6084 = vmatpush1.bf16.msra.mxu0 %v5286
        %6085 = vmatprep.subr.bf16.mxu0 %v5291
        %6086 = vmatpush1.bf16.msra.mxu0 %v5290
        %6087 = vmatprep.subr.bf16.mxu0 %v5295
        %6088 = vmatpush1.bf16.msra.mxu0 %v5294
        %6089 = vmatprep.subr.bf16.mxu0 %v5299
        %6090 = vmatpush1.bf16.msra.mxu0 %v5298
        %6091 = vmatprep.subr.bf16.mxu0 %v5303
        %6092 = vmatpush1.bf16.msra.mxu0 %v5302
        %6093 = vmatprep.subr.bf16.mxu0 %v5307
        %6094 = vmatpush1.bf16.msra.mxu0 %v5306
        %6095 = vmatprep.subr.bf16.mxu0 %v5311
        %6096 = vmatpush1.bf16.msra.mxu0 %v5310
        %6097 = vmatprep.mubr.bf16.mxu0 %v4007
        %6098 = vmatmul.mubr.bf16.gmra.mrb[0].mxu0 %v4006
        %v6099 = vpop.f32.mrb[0].mxu0
        %v6100 = vadd.f32 %v6029, %v6099
        %v6101 = vpop.f32.mrb[0].mxu0
        %v6102 = vadd.f32 %v6031, %v6101
        %v6103 = vpop.f32.mrb[0].mxu0
        %v6104 = vadd.f32 %v6033, %v6103
        %v6105 = vpop.f32.mrb[0].mxu0
        %v6106 = vadd.f32 %v6035, %v6105
        %6107 = vmatprep.mubr.bf16.mxu0 %v4015
        %6108 = vmatmul.mubr.bf16.gmra.mrb[0].mxu0 %v4014
        %v6109 = vpop.f32.mrb[0].mxu0
        %v6110 = vadd.f32 %v6039, %v6109
        %v6111 = vpop.f32.mrb[0].mxu0
        %v6112 = vadd.f32 %v6041, %v6111
        %v6113 = vpop.f32.mrb[0].mxu0
        %v6114 = vadd.f32 %v6043, %v6113
        %v6115 = vpop.f32.mrb[0].mxu0
        %v6116 = vadd.f32 %v6045, %v6115
        %6117 = vmatprep.mubr.bf16.mxu0 %v4023
        %6118 = vmatmul.mubr.bf16.gmra.mrb[0].mxu0 %v4022
        %v6119 = vpop.f32.mrb[0].mxu0
        %v6120 = vadd.f32 %v6049, %v6119
        %v6121 = vpop.f32.mrb[0].mxu0
        %v6122 = vadd.f32 %v6051, %v6121
        %v6123 = vpop.f32.mrb[0].mxu0
        %v6124 = vadd.f32 %v6053, %v6123
        %v6125 = vpop.f32.mrb[0].mxu0
        %v6126 = vadd.f32 %v6055, %v6125
        %6127 = vmatprep.mubr.bf16.mxu0 %v4031
        %6128 = vmatmul.mubr.bf16.gmra.mrb[0].mxu0 %v4030
        %v6129 = vpop.f32.mrb[0].mxu0
        %v6130 = vadd.f32 %v6059, %v6129
        %v6131 = vpop.f32.mrb[0].mxu0
        %v6132 = vadd.f32 %v6061, %v6131
        %v6133 = vpop.f32.mrb[0].mxu0
        %v6134 = vpop.f32.mrb[0].mxu0
        %6135 = vdwg.mxu0
        %6136 = vst [vmem:[%s996] sm:$0xff] %v5816
        %6137 = vst [vmem:[%s996 + $0x8] sm:$0xff] %v5818
        %6138 = vst [vmem:[%s996 + $0x10] sm:$0xff] %v6100
        %6139 = vst [vmem:[%s996 + $0x18] sm:$0xff] %v6102
        %6140 = vst [vmem:[%s996 + $0x20] sm:$0xff] %v5820
        %6141 = vst [vmem:[%s996 + $0x28] sm:$0xff] %v5822
        %6142 = vst [vmem:[%s996 + $0x30] sm:$0xff] %v6104
        %6143 = vst [vmem:[%s996 + $0x38] sm:$0xff] %v6106
        %6144 = vst [vmem:[%s996 + $0x40] sm:$0xff] %v5826
        %6145 = vst [vmem:[%s996 + $0x48] sm:$0xff] %v5828
        %6146 = vst [vmem:[%s996 + $0x50] sm:$0xff] %v6110
        %6147 = vst [vmem:[%s996 + $0x58] sm:$0xff] %v6112
        %6148 = vst [vmem:[%s996 + $0x60] sm:$0xff] %v5830
        %6149 = vst [vmem:[%s996 + $0x68] sm:$0xff] %v5832
        %6150 = vst [vmem:[%s996 + $0x70] sm:$0xff] %v6114
        %6151 = vst [vmem:[%s996 + $0x78] sm:$0xff] %v6116
        %6152 = vst [vmem:[%s996 + $0x80] sm:$0xff] %v5836
        %6153 = vst [vmem:[%s996 + $0x88] sm:$0xff] %v5838
        %6154 = vst [vmem:[%s996 + $0x90] sm:$0xff] %v6120
        %6155 = vst [vmem:[%s996 + $0x98] sm:$0xff] %v6122
        %6156 = vst [vmem:[%s996 + $0xa0] sm:$0xff] %v5840
        %6157 = vst [vmem:[%s996 + $0xa8] sm:$0xff] %v5842
        %6158 = vst [vmem:[%s996 + $0xb0] sm:$0xff] %v6124
        %6159 = vst [vmem:[%s996 + $0xb8] sm:$0xff] %v6126
        %6160 = vst [vmem:[%s996 + $0xc0] sm:$0x1] %v5846
        %6161 = vst [vmem:[%s996 + $0xc8] sm:$0x1] %v5848
        %6162 = vst [vmem:[%s996 + $0xd0] sm:$0x1] %v6130
        %6163 = vst [vmem:[%s996 + $0xd8] sm:$0x1] %v6132
        %p6164 = scmp.lt.s32.totalorder %s17, 1
        %s6165 = scalar_select %p6164, %s17, 1
        %s6166 = smul.addr %s6165, 28
        %s6167 = smul.addr %s6166, 8
        %s6168 = scalar_lea.vmem %s6, %s6167
        // Predicated region
        $region91: #{fused_block.1} parent=81 // pred_check
          %p6169 = pneg %p186
        $region92: #{fused_block.1} parent=81 // pred_check_branch
          %6171 = sbr.rel (%p6169) target = $region94
        $region93: #{fused_block.1} parent=81 // pred_region
          _
        $region94: #{fused_block.1} parent=81 // pred_fallthru
          _
      $region82: #{fused_block.1} parent=5 // pred_fallthru
        _
      %p6172 = scmp.le.s32.totalorder 2, %s12
      // Predicated region
      $region95: #{fused_block.1} parent=5 // pred_check
        %p6173 = pneg %p6172
      $region96: #{fused_block.1} parent=5 // pred_check_branch
        %6175 = sbr.rel (%p6173) target = $region98
      $region97: #{fused_block.1} parent=5 // pred_region
        %s6176 = ssub.s32 %s12, 2
        // Predicated region
        $region99: #{fused_block.1} parent=97 // pred_check
          %p6177 = pneg %p192
        $region100: #{fused_block.1} parent=97 // pred_check_branch
          %6179 = sbr.rel (%p6177) target = $region102
        $region101: #{fused_block.1} parent=97 // pred_region
          %p6180 = scmp.lt.s32.totalorder %s18, 1
          %s6181 = scalar_select %p6180, %s18, 1
          %s6182 = smul.addr %s6181, 28
          %s6183 = smul.addr %s6182, 8
          %s6184 = scalar_lea.vmem %s6, %s6183
        $region102: #{fused_block.1} parent=97 // pred_fallthru
          _
      $region98: #{fused_block.1} parent=5 // pred_fallthru
        _
    $region6: #{fused_block.1} parent=1 // loop_footer
      %s16 = sadd.s32 1, %s12
    $region7: #{fused_block.1} parent=1 // loop_footer_branch
      %11 = sbr.rel target = $region3
    $region8: #{fused_block.1} parent=1 // loop_exit
      _

</llo_original>
